<compile_context>
chip_gen: v6e
topology: v6e:2x2x1
jax: 0.10.0
libtpu: 0.0.40
codegen_flags: <defaults>
</compile_context>

<pallas_src>
import functools

import jax
import jax.numpy as jnp
from jax.experimental import pallas as pl
from jax.experimental.pallas import tpu as pltpu

# Small synthetic text-tower config.
B, S, D, H, L, E = 2, 8, 32, 4, 2, 16    # batch, seq, width, heads, layers, embed dim
DH = D // H
E_PAD = 128                              # lane-dense padded output width
OUT_ROWS = 8                             # sublane-padded output tile height
EPS = 1e-5


def _layer_norm(x, w, b):
    mu = jnp.mean(x, axis=-1, keepdims=True)
    var = jnp.mean((x - mu) ** 2, axis=-1, keepdims=True)
    return (x - mu) * jax.lax.rsqrt(var + EPS) * w + b


def _split_heads(qkv, use_einshape):
    """(S, 3*D) -> (3*H, S, DH): q heads 0..H-1, k heads H..2H-1, v heads 2H..3H-1."""
    if use_einshape:
        return pltpu.einshape("s(hd)->hsd", qkv, h=3 * H, d=DH)
    # portable fallback: lane slices + one stack (more XLU relayouts, same result)
    return jnp.stack([qkv[:, i * DH:(i + 1) * DH] for i in range(3 * H)], axis=0)


def _merge_heads(oh, use_einshape):
    """(H, S, DH) -> (S, D) with head h at lanes [h*DH, (h+1)*DH)."""
    if use_einshape:
        return pltpu.einshape("hsd->s(hd)", oh)
    return jnp.concatenate([oh[h] for h in range(H)], axis=-1)


def text_encoder_kernel(eot_ref,              # (B,) int32 EOT row per example (SMEM)
                        prompts_ref,          # (1, S, D) this example's prompt embeds
                        misc_ref,             # (S+2, D): pos rows, ln_final w, ln_final b
                        small_ref,            # (L, 13*D) packed per-layer LN params + biases
                        wqkv_ref,             # (L, D, 3D) fused in_proj.T (Q slice pre-scaled)
                        wo_ref,               # (L, D, D)  out_proj.T
                        wfc_ref,              # (L, D, 4D) mlp.c_fc.T
                        wpj_ref,              # (L, 4D, D) mlp.c_proj.T
                        tproj_ref,            # (D, E_PAD) lane-dense text projection
                        o_ref,                # (1, OUT_ROWS, E_PAD) output tile
                        xf_ref,               # (S, D) VMEM scratch for the EOT row gather
                        *, use_einshape):
    b = pl.program_id(0)
    misc = misc_ref[...]                                    # (S+2, D)
    x = prompts_ref[0] + misc[0:S]                          # (S, D)

    # Causal mask. The diagonal is always unmasked, so every softmax row has a
    # finite max and the -inf additive mask cannot produce NaNs.
    row = jax.lax.broadcasted_iota(jnp.int32, (S, S), 0)
    col = jax.lax.broadcasted_iota(jnp.int32, (S, S), 1)
    mask = jnp.where(col <= row, 0.0, -jnp.inf).astype(jnp.float32)[None]   # (1, S, S)

    for l in range(L):
        # Packed small params: [ln1_w|ln1_b|ln2_w|ln2_b|bqkv(3D)|bo|bfc(4D)|bpj]
        sp = small_ref[l]                                   # (13*D,)
        ln1_w, ln1_b = sp[0:D], sp[D:2 * D]
        ln2_w, ln2_b = sp[2 * D:3 * D], sp[3 * D:4 * D]
        bqkv = sp[4 * D:7 * D]
        bo = sp[7 * D:8 * D]
        bfc = sp[8 * D:12 * D]
        bpj = sp[12 * D:13 * D]

        # --- pre-LN causal multi-head self-attention, single fused QKV matmul ---
        xn = _layer_norm(x, ln1_w, ln1_b)
        qkv = jnp.dot(xn, wqkv_ref[l],
                      preferred_element_type=jnp.float32) + bqkv            # (S, 3D)

        qkvh = _split_heads(qkv, use_einshape)                              # (3H, S, DH)
        qh, kh, vh = qkvh[:H], qkvh[H:2 * H], qkvh[2 * H:]

        s = jnp.einsum('hqd,hkd->hqk', qh, kh,
                       preferred_element_type=jnp.float32) + mask           # (H, S, S)
        s = s - jnp.max(s, axis=-1, keepdims=True)
        p = jnp.exp(s)
        # approx reciprocal runs on the EUP slot; fine at L=2 / 2e-3 tolerance.
        p = p * pl.reciprocal(jnp.sum(p, axis=-1, keepdims=True), approx=True)
        oh = jnp.einsum('hqk,hkd->hqd', p, vh,
                        preferred_element_type=jnp.float32)                 # (H, S, DH)

        attn = _merge_heads(oh, use_einshape)                               # (S, D)
        x = x + jnp.dot(attn, wo_ref[l],
                        preferred_element_type=jnp.float32) + bo

        # --- MLP: Linear -> QuickGELU -> Linear ---
        xn = _layer_norm(x, ln2_w, ln2_b)
        hid = jnp.dot(xn, wfc_ref[l], preferred_element_type=jnp.float32) + bfc
        hid = hid * jax.nn.sigmoid(1.702 * hid)
        x = x + jnp.dot(hid, wpj_ref[l], preferred_element_type=jnp.float32) + bpj

    # --- gather this example's EOT row FIRST, then LayerNorm / project only it ---
    xf_ref[...] = x
    xe = xf_ref[pl.ds(eot_ref[b], 1), :]                    # (1, D) dynamic sublane slice
    xe = _layer_norm(xe, misc[S], misc[S + 1])              # ln_final on one row only
    e = jnp.dot(xe, tproj_ref[...], preferred_element_type=jnp.float32)     # (1, E_PAD)
    o_ref[...] = jnp.broadcast_to(e, (1, OUT_ROWS, E_PAD))  # lane-dense store


def prepare_params(params):
    """One-time conversion of PyTorch-layout params into kernel layout.

    Hoisted out of the jitted forward: nn.Linear stores (out, in) and computes
    x @ W.T + b, so transpose once here; keep the in_proj fused and fold the
    1/sqrt(DH) attention scale into its Q slice; pack all tiny per-layer vectors
    into one slab; zero-pad the text projection to a 128-lane-dense output.
    """
    (pos, ln1_w, ln1_b, in_w, in_b, out_w, out_b, ln2_w, ln2_b,
     fc_w, fc_b, pj_w, pj_b, lnf_w, lnf_b, tproj) = params
    scale = 1.0 / (DH ** 0.5)

    wqkv = jnp.swapaxes(in_w, 1, 2)                       # (L, D, 3D)
    wqkv = wqkv.at[:, :, :D].multiply(scale)              # fold scale into Q columns
    bqkv = in_b.at[:, :D].multiply(scale)                 # (L, 3D)
    wo = jnp.swapaxes(out_w, 1, 2)                        # (L, D, D)
    wfc = jnp.swapaxes(fc_w, 1, 2)                        # (L, D, 4D)
    wpj = jnp.swapaxes(pj_w, 1, 2)                        # (L, 4D, D)

    # One DMA for all tiny per-layer params:
    # [ln1_w | ln1_b | ln2_w | ln2_b | bqkv(3D) | bo | bfc(4D) | bpj]  -> (L, 13*D)
    small = jnp.concatenate(
        [ln1_w, ln1_b, ln2_w, ln2_b, bqkv, out_b, fc_b, pj_b], axis=-1)
    # positional embedding rows + ln_final weight/bias in one slab -> (S+2, D)
    misc = jnp.concatenate([pos, lnf_w, lnf_b], axis=0)
    # lane-dense padded text projection
    tproj_pad = jnp.zeros((D, E_PAD), jnp.float32).at[:, :E].set(tproj)
    return (misc, small, wqkv, wo, wfc, wpj, tproj_pad)


def build_text_encoder(use_einshape):
    kernel = functools.partial(text_encoder_kernel, use_einshape=use_einshape)

    @jax.jit
    def text_encoder(prompts, tokenized_prompts, kparams):
        """prompts: (B, S, D) float32; tokenized_prompts: (B, S) int32."""
        eot = jnp.argmax(tokenized_prompts, axis=-1).astype(jnp.int32)      # (B,)

        def const_spec(a):
            return pl.BlockSpec(a.shape, lambda i, eot_ref, n=a.ndim: (0,) * n)

        grid_spec = pltpu.PrefetchScalarGridSpec(
            num_scalar_prefetch=1,
            grid=(B,),                                   # one example per grid step
            in_specs=[pl.BlockSpec((1, S, D), lambda i, eot_ref: (i, 0, 0))]  # prompts
                     + [const_spec(a) for a in kparams],
            out_specs=pl.BlockSpec((1, OUT_ROWS, E_PAD),
                                   lambda i, eot_ref: (i, 0, 0)),
            scratch_shapes=[pltpu.VMEM((S, D), jnp.float32)],
        )
        out = pl.pallas_call(
            kernel,
            out_shape=jax.ShapeDtypeStruct((B, OUT_ROWS, E_PAD), jnp.float32),
            grid_spec=grid_spec,
            compiler_params=pltpu.CompilerParams(
                dimension_semantics=("parallel",)),      # batch axis -> both TCs on v7x
        )(eot, prompts, *kparams)
        return out[:, 0, :E]

    return text_encoder


def init_params(key):
    """Deterministic synthetic text-tower parameters (PyTorch shapes)."""
    ks = iter(jax.random.split(key, 32))
    f = lambda shape, s=0.02: s * jax.random.normal(next(ks), shape, jnp.float32)
    pos = f((S, D), 0.01)                              # positional_embedding
    ln1_w = 1.0 + f((L, D)); ln1_b = f((L, D))         # ln_1
    in_w = f((L, 3 * D, D)); in_b = f((L, 3 * D))      # attn.in_proj
    out_w = f((L, D, D));    out_b = f((L, D))         # attn.out_proj
    ln2_w = 1.0 + f((L, D)); ln2_b = f((L, D))         # ln_2
    fc_w = f((L, 4 * D, D)); fc_b = f((L, 4 * D))      # mlp.c_fc
    pj_w = f((L, D, 4 * D)); pj_b = f((L, D))          # mlp.c_proj
    lnf_w = 1.0 + f((1, D)); lnf_b = f((1, D))         # ln_final
    tproj = f((D, E))                                  # text_projection
    return (pos, ln1_w, ln1_b, in_w, in_b, out_w, out_b, ln2_w, ln2_b,
            fc_w, fc_b, pj_w, pj_b, lnf_w, lnf_b, tproj)


def ref_forward(prompts, tokenized, params):
    """Pure-JAX reference mirroring the PyTorch semantics (nn.Linear: x @ W.T + b)."""
    (pos, ln1_w, ln1_b, in_w, in_b, out_w, out_b, ln2_w, ln2_b,
     fc_w, fc_b, pj_w, pj_b, lnf_w, lnf_b, tproj) = params
    x = prompts + pos[None]
    col = jnp.arange(S)[None, :]
    row = jnp.arange(S)[:, None]
    causal = jnp.where(col > row, -jnp.inf, 0.0)
    scale = 1.0 / (DH ** 0.5)
    for l in range(L):
        xn = _layer_norm(x, ln1_w[l], ln1_b[l])
        qkv = xn @ in_w[l].T + in_b[l]
        q, k, v = jnp.split(qkv, 3, axis=-1)
        q = q.reshape(B, S, H, DH).transpose(0, 2, 1, 3) * scale
        k = k.reshape(B, S, H, DH).transpose(0, 2, 1, 3)
        v = v.reshape(B, S, H, DH).transpose(0, 2, 1, 3)
        s = q @ k.transpose(0, 1, 3, 2) + causal
        p = jax.nn.softmax(s, axis=-1)
        a = (p @ v).transpose(0, 2, 1, 3).reshape(B, S, D)
        x = x + (a @ out_w[l].T + out_b[l])
        xn = _layer_norm(x, ln2_w[l], ln2_b[l])
        hid = xn @ fc_w[l].T + fc_b[l]
        hid = hid * jax.nn.sigmoid(1.702 * hid)
        x = x + (hid @ pj_w[l].T + pj_b[l])
    x = _layer_norm(x, lnf_w[0], lnf_b[0])
    eot = jnp.argmax(tokenized, axis=-1)
    return x[jnp.arange(B), eot] @ tproj


if __name__ == "__main__":
    key = jax.random.PRNGKey(0)
    kp, kx, kt = jax.random.split(key, 3)
    params = init_params(kp)
    kparams = prepare_params(params)        # one-time prep, outside the jitted forward

    prompts = 0.1 * jax.random.normal(kx, (B, S, D), jnp.float32)
    # synthetic tokenized prompts: the EOT token (largest id) sits at a known position
    tokenized = jax.random.randint(kt, (B, S), 1, 100)
    eot_pos = jnp.array([5, 7], dtype=jnp.int32)
    tokenized = tokenized.at[jnp.arange(B), eot_pos].set(1000)

    ref = ref_forward(prompts, tokenized, params)

    def run(use_einshape):
        fwd = build_text_encoder(use_einshape)
        out = jax.block_until_ready(fwd(prompts, tokenized, kparams))
        assert out.shape == (B, E), out.shape
        err = float(jnp.max(jnp.abs(out - ref)))
        assert jnp.allclose(out, ref, atol=2e-3, rtol=2e-3), err
        return out

    try:
        # preferred path: single einshape relayout per head split/merge
        run(use_einshape=True)
    except Exception:
        # portable fallback if grouped einshape is unavailable in this jax build
        run(use_einshape=False)
    print("KERNEL_OK")
</pallas_src>

<mosaic_0001>
module attributes {stable_mosaic.version = 11 : i64} {
  func.func @text_encoder_kernel(%arg0: i32, %arg1: memref<2xi32, #tpu.memory_space<smem>>, %arg2: memref<1x8x32xf32, #tpu.memory_space<vmem>>, %arg3: memref<10x32xf32, #tpu.memory_space<vmem>>, %arg4: memref<2x416xf32, #tpu.memory_space<vmem>>, %arg5: memref<2x32x96xf32, #tpu.memory_space<vmem>>, %arg6: memref<2x32x32xf32, #tpu.memory_space<vmem>>, %arg7: memref<2x32x128xf32, #tpu.memory_space<vmem>>, %arg8: memref<2x128x32xf32, #tpu.memory_space<vmem>>, %arg9: memref<32x128xf32, #tpu.memory_space<vmem>>, %arg10: memref<1x8x128xf32, #tpu.memory_space<vmem>>, %arg11: memref<8x32xf32, #tpu.memory_space<vmem>>) attributes {dimension_semantics = [#tpu.dimension_semantics<parallel>], iteration_bounds = array<i64: 2>, scalar_prefetch = 1 : i64, scratch_operands = 1 : i64, tpu.core_type = #tpu.core_type<tc>, window_params = [{transform_indices = @transform_0, window_bounds = array<i64: 1, 8, 32>}, {pipeline_mode = #tpu.pipeline_mode<synchronous>, transform_indices = @transform_1, window_bounds = array<i64: 10, 32>}, {pipeline_mode = #tpu.pipeline_mode<synchronous>, transform_indices = @transform_2, window_bounds = array<i64: 2, 416>}, {pipeline_mode = #tpu.pipeline_mode<synchronous>, transform_indices = @transform_3, window_bounds = array<i64: 2, 32, 96>}, {pipeline_mode = #tpu.pipeline_mode<synchronous>, transform_indices = @transform_4, window_bounds = array<i64: 2, 32, 32>}, {pipeline_mode = #tpu.pipeline_mode<synchronous>, transform_indices = @transform_5, window_bounds = array<i64: 2, 32, 128>}, {pipeline_mode = #tpu.pipeline_mode<synchronous>, transform_indices = @transform_6, window_bounds = array<i64: 2, 128, 32>}, {pipeline_mode = #tpu.pipeline_mode<synchronous>, transform_indices = @transform_7, window_bounds = array<i64: 32, 128>}, {transform_indices = @transform_8, window_bounds = array<i64: 1, 8, 128>}]} {
    %c0 = arith.constant 0 : index
    %c0_0 = arith.constant 0 : index
    %0 = vector.load %arg3[%c0, %c0_0] : memref<10x32xf32, #tpu.memory_space<vmem>>, vector<10x32xf32>
    %c0_1 = arith.constant 0 : index
    %c0_2 = arith.constant 0 : index
    %c0_3 = arith.constant 0 : index
    %1 = vector.load %arg2[%c0_1, %c0_2, %c0_3] : memref<1x8x32xf32, #tpu.memory_space<vmem>>, vector<1x8x32xf32>
    %2 = vector.shape_cast %1 : vector<1x8x32xf32> to vector<8x32xf32>
    %3 = vector.extract_strided_slice %0 {offsets = [0, 0], sizes = [8, 32], strides = [1, 1]} : vector<10x32xf32> to vector<8x32xf32>
    %4 = arith.addf %2, %3 : vector<8x32xf32>
    %5 = tpu.iota {dimensions = array<i32: 0>} : vector<8x8xi32>
    %6 = tpu.iota {dimensions = array<i32: 1>} : vector<8x8xi32>
    %7 = arith.cmpi sle, %6, %5 : vector<8x8xi32>
    %cst = arith.constant 0.000000e+00 : f32
    %cst_4 = arith.constant 0xFF800000 : f32
    %8 = vector.broadcast %cst : f32 to vector<8x8xf32>
    %9 = vector.broadcast %cst_4 : f32 to vector<8x8xf32>
    %10 = arith.select %7, %8, %9 : vector<8x8xi1>, vector<8x8xf32>
    %11 = vector.shape_cast %10 : vector<8x8xf32> to vector<1x8x8xf32>
    %c0_5 = arith.constant 0 : index
    %c0_6 = arith.constant 0 : index
    %12 = vector.load %arg4[%c0_5, %c0_6] : memref<2x416xf32, #tpu.memory_space<vmem>>, vector<1x416xf32>
    %13 = vector.shape_cast %12 : vector<1x416xf32> to vector<416xf32>
    %14 = vector.extract_strided_slice %13 {offsets = [0], sizes = [32], strides = [1]} : vector<416xf32> to vector<32xf32>
    %15 = vector.extract_strided_slice %13 {offsets = [32], sizes = [32], strides = [1]} : vector<416xf32> to vector<32xf32>
    %16 = vector.extract_strided_slice %13 {offsets = [64], sizes = [32], strides = [1]} : vector<416xf32> to vector<32xf32>
    %17 = vector.extract_strided_slice %13 {offsets = [96], sizes = [32], strides = [1]} : vector<416xf32> to vector<32xf32>
    %18 = vector.extract_strided_slice %13 {offsets = [128], sizes = [96], strides = [1]} : vector<416xf32> to vector<96xf32>
    %19 = vector.extract_strided_slice %13 {offsets = [224], sizes = [32], strides = [1]} : vector<416xf32> to vector<32xf32>
    %20 = vector.extract_strided_slice %13 {offsets = [256], sizes = [128], strides = [1]} : vector<416xf32> to vector<128xf32>
    %21 = vector.extract_strided_slice %13 {offsets = [384], sizes = [32], strides = [1]} : vector<416xf32> to vector<32xf32>
    %cst_7 = arith.constant dense<0.000000e+00> : vector<8xf32>
    %22 = vector.multi_reduction <add>, %4, %cst_7 [1] : vector<8x32xf32> to vector<8xf32>
    %23 = vector.shape_cast %22 : vector<8xf32> to vector<8x1xf32>
    %cst_8 = arith.constant 3.200000e+01 : f32
    %24 = vector.broadcast %cst_8 : f32 to vector<8x1xf32>
    %25 = arith.divf %23, %24 : vector<8x1xf32>
    %26 = vector.broadcast %25 : vector<8x1xf32> to vector<8x32xf32>
    %27 = arith.subf %4, %26 : vector<8x32xf32>
    %28 = arith.mulf %27, %27 : vector<8x32xf32>
    %cst_9 = arith.constant dense<0.000000e+00> : vector<8xf32>
    %29 = vector.multi_reduction <add>, %28, %cst_9 [1] : vector<8x32xf32> to vector<8xf32>
    %30 = vector.shape_cast %29 : vector<8xf32> to vector<8x1xf32>
    %cst_10 = arith.constant 3.200000e+01 : f32
    %31 = vector.broadcast %cst_10 : f32 to vector<8x1xf32>
    %32 = arith.divf %30, %31 : vector<8x1xf32>
    %33 = vector.broadcast %25 : vector<8x1xf32> to vector<8x32xf32>
    %34 = arith.subf %4, %33 : vector<8x32xf32>
    %cst_11 = arith.constant 9.99999974E-6 : f32
    %35 = vector.broadcast %cst_11 : f32 to vector<8x1xf32>
    %36 = arith.addf %32, %35 : vector<8x1xf32>
    %37 = math.rsqrt %36 : vector<8x1xf32>
    %38 = vector.broadcast %37 : vector<8x1xf32> to vector<8x32xf32>
    %39 = arith.mulf %34, %38 : vector<8x32xf32>
    %40 = vector.shape_cast %14 : vector<32xf32> to vector<1x32xf32>
    %41 = vector.broadcast %40 : vector<1x32xf32> to vector<8x32xf32>
    %42 = arith.mulf %39, %41 : vector<8x32xf32>
    %43 = vector.shape_cast %15 : vector<32xf32> to vector<1x32xf32>
    %44 = vector.broadcast %43 : vector<1x32xf32> to vector<8x32xf32>
    %45 = arith.addf %42, %44 : vector<8x32xf32>
    %c0_12 = arith.constant 0 : index
    %c0_13 = arith.constant 0 : index
    %c0_14 = arith.constant 0 : index
    %46 = vector.load %arg5[%c0_12, %c0_13, %c0_14] : memref<2x32x96xf32, #tpu.memory_space<vmem>>, vector<1x32x96xf32>
    %47 = vector.shape_cast %46 : vector<1x32x96xf32> to vector<32x96xf32>
    %cst_15 = arith.constant dense<0.000000e+00> : vector<8x96xf32>
    %48 = tpu.matmul %45, %47, %cst_15 {dimension_numbers = #tpu.dot_dimension_numbers<[1], [0], [0], [1], [0, 0, 1, 1], [], []>} : vector<8x32xf32>, vector<32x96xf32>, vector<8x96xf32> -> vector<8x96xf32>
    %49 = vector.shape_cast %18 : vector<96xf32> to vector<1x96xf32>
    %50 = vector.broadcast %49 : vector<1x96xf32> to vector<8x96xf32>
    %51 = arith.addf %48, %50 : vector<8x96xf32>
    %52 = vector.extract_strided_slice %51 {offsets = [0, 0], sizes = [8, 8], strides = [1, 1]} : vector<8x96xf32> to vector<8x8xf32>
    %53 = vector.extract_strided_slice %51 {offsets = [0, 8], sizes = [8, 8], strides = [1, 1]} : vector<8x96xf32> to vector<8x8xf32>
    %54 = vector.extract_strided_slice %51 {offsets = [0, 16], sizes = [8, 8], strides = [1, 1]} : vector<8x96xf32> to vector<8x8xf32>
    %55 = vector.extract_strided_slice %51 {offsets = [0, 24], sizes = [8, 8], strides = [1, 1]} : vector<8x96xf32> to vector<8x8xf32>
    %56 = vector.extract_strided_slice %51 {offsets = [0, 32], sizes = [8, 8], strides = [1, 1]} : vector<8x96xf32> to vector<8x8xf32>
    %57 = vector.extract_strided_slice %51 {offsets = [0, 40], sizes = [8, 8], strides = [1, 1]} : vector<8x96xf32> to vector<8x8xf32>
    %58 = vector.extract_strided_slice %51 {offsets = [0, 48], sizes = [8, 8], strides = [1, 1]} : vector<8x96xf32> to vector<8x8xf32>
    %59 = vector.extract_strided_slice %51 {offsets = [0, 56], sizes = [8, 8], strides = [1, 1]} : vector<8x96xf32> to vector<8x8xf32>
    %60 = vector.extract_strided_slice %51 {offsets = [0, 64], sizes = [8, 8], strides = [1, 1]} : vector<8x96xf32> to vector<8x8xf32>
    %61 = vector.extract_strided_slice %51 {offsets = [0, 72], sizes = [8, 8], strides = [1, 1]} : vector<8x96xf32> to vector<8x8xf32>
    %62 = vector.extract_strided_slice %51 {offsets = [0, 80], sizes = [8, 8], strides = [1, 1]} : vector<8x96xf32> to vector<8x8xf32>
    %63 = vector.extract_strided_slice %51 {offsets = [0, 88], sizes = [8, 8], strides = [1, 1]} : vector<8x96xf32> to vector<8x8xf32>
    %64 = vector.shape_cast %52 : vector<8x8xf32> to vector<1x8x8xf32>
    %65 = vector.shape_cast %53 : vector<8x8xf32> to vector<1x8x8xf32>
    %66 = vector.shape_cast %54 : vector<8x8xf32> to vector<1x8x8xf32>
    %67 = vector.shape_cast %55 : vector<8x8xf32> to vector<1x8x8xf32>
    %68 = vector.shape_cast %56 : vector<8x8xf32> to vector<1x8x8xf32>
    %69 = vector.shape_cast %57 : vector<8x8xf32> to vector<1x8x8xf32>
    %70 = vector.shape_cast %58 : vector<8x8xf32> to vector<1x8x8xf32>
    %71 = vector.shape_cast %59 : vector<8x8xf32> to vector<1x8x8xf32>
    %72 = vector.shape_cast %60 : vector<8x8xf32> to vector<1x8x8xf32>
    %73 = vector.shape_cast %61 : vector<8x8xf32> to vector<1x8x8xf32>
    %74 = vector.shape_cast %62 : vector<8x8xf32> to vector<1x8x8xf32>
    %75 = vector.shape_cast %63 : vector<8x8xf32> to vector<1x8x8xf32>
    %76 = tpu.concatenate %64, %65, %66, %67, %68, %69, %70, %71, %72, %73, %74, %75 in 0 : vector<1x8x8xf32>, vector<1x8x8xf32>, vector<1x8x8xf32>, vector<1x8x8xf32>, vector<1x8x8xf32>, vector<1x8x8xf32>, vector<1x8x8xf32>, vector<1x8x8xf32>, vector<1x8x8xf32>, vector<1x8x8xf32>, vector<1x8x8xf32>, vector<1x8x8xf32> -> vector<12x8x8xf32>
    %77 = vector.extract_strided_slice %76 {offsets = [0, 0, 0], sizes = [4, 8, 8], strides = [1, 1, 1]} : vector<12x8x8xf32> to vector<4x8x8xf32>
    %78 = vector.extract_strided_slice %76 {offsets = [4, 0, 0], sizes = [4, 8, 8], strides = [1, 1, 1]} : vector<12x8x8xf32> to vector<4x8x8xf32>
    %79 = vector.extract_strided_slice %76 {offsets = [8, 0, 0], sizes = [4, 8, 8], strides = [1, 1, 1]} : vector<12x8x8xf32> to vector<4x8x8xf32>
    "tpu.trace_start"() <{level = 10 : i32, message = "hqd,hkd->hqk"}> : () -> ()
    %cst_16 = arith.constant dense<0.000000e+00> : vector<4x8x8xf32>
    %80 = tpu.matmul %77, %78, %cst_16 {dimension_numbers = #tpu.dot_dimension_numbers<[2], [2], [1], [1], [0, 0, 0, 1, 1, 1], [0], [0]>} : vector<4x8x8xf32>, vector<4x8x8xf32>, vector<4x8x8xf32> -> vector<4x8x8xf32>
    "tpu.trace_stop"() : () -> ()
    %81 = vector.broadcast %11 : vector<1x8x8xf32> to vector<4x8x8xf32>
    %82 = arith.addf %80, %81 : vector<4x8x8xf32>
    %cst_17 = arith.constant dense<0xFF800000> : vector<4x8xf32>
    %83 = vector.multi_reduction <maximumf>, %82, %cst_17 [2] : vector<4x8x8xf32> to vector<4x8xf32>
    %84 = vector.shape_cast %83 : vector<4x8xf32> to vector<4x8x1xf32>
    %85 = vector.broadcast %84 : vector<4x8x1xf32> to vector<4x8x8xf32>
    %86 = arith.subf %82, %85 : vector<4x8x8xf32>
    %87 = math.exp %86 : vector<4x8x8xf32>
    %cst_18 = arith.constant dense<0.000000e+00> : vector<4x8xf32>
    %88 = vector.multi_reduction <add>, %87, %cst_18 [2] : vector<4x8x8xf32> to vector<4x8xf32>
    %89 = vector.shape_cast %88 : vector<4x8xf32> to vector<4x8x1xf32>
    %90 = tpu.reciprocal %89 {approx = true} : vector<4x8x1xf32> -> vector<4x8x1xf32>
    %91 = vector.broadcast %90 : vector<4x8x1xf32> to vector<4x8x8xf32>
    %92 = arith.mulf %87, %91 : vector<4x8x8xf32>
    "tpu.trace_start"() <{level = 10 : i32, message = "hqk,hkd->hqd"}> : () -> ()
    %cst_19 = arith.constant dense<0.000000e+00> : vector<4x8x8xf32>
    %93 = tpu.matmul %92, %79, %cst_19 {dimension_numbers = #tpu.dot_dimension_numbers<[2], [1], [1], [2], [0, 0, 0, 1, 1, 2], [0], [0]>} : vector<4x8x8xf32>, vector<4x8x8xf32>, vector<4x8x8xf32> -> vector<4x8x8xf32>
    "tpu.trace_stop"() : () -> ()
    %94 = vector.extract_strided_slice %93 {offsets = [0, 0, 0], sizes = [1, 8, 8], strides = [1, 1, 1]} : vector<4x8x8xf32> to vector<1x8x8xf32>
    %95 = vector.shape_cast %94 : vector<1x8x8xf32> to vector<8x8xf32>
    %96 = vector.extract_strided_slice %93 {offsets = [1, 0, 0], sizes = [1, 8, 8], strides = [1, 1, 1]} : vector<4x8x8xf32> to vector<1x8x8xf32>
    %97 = vector.shape_cast %96 : vector<1x8x8xf32> to vector<8x8xf32>
    %98 = vector.extract_strided_slice %93 {offsets = [2, 0, 0], sizes = [1, 8, 8], strides = [1, 1, 1]} : vector<4x8x8xf32> to vector<1x8x8xf32>
    %99 = vector.shape_cast %98 : vector<1x8x8xf32> to vector<8x8xf32>
    %100 = vector.extract_strided_slice %93 {offsets = [3, 0, 0], sizes = [1, 8, 8], strides = [1, 1, 1]} : vector<4x8x8xf32> to vector<1x8x8xf32>
    %101 = vector.shape_cast %100 : vector<1x8x8xf32> to vector<8x8xf32>
    %102 = tpu.concatenate %95, %97, %99, %101 in 1 : vector<8x8xf32>, vector<8x8xf32>, vector<8x8xf32>, vector<8x8xf32> -> vector<8x32xf32>
    %c0_20 = arith.constant 0 : index
    %c0_21 = arith.constant 0 : index
    %c0_22 = arith.constant 0 : index
    %103 = vector.load %arg6[%c0_20, %c0_21, %c0_22] : memref<2x32x32xf32, #tpu.memory_space<vmem>>, vector<1x32x32xf32>
    %104 = vector.shape_cast %103 : vector<1x32x32xf32> to vector<32x32xf32>
    %cst_23 = arith.constant dense<0.000000e+00> : vector<8x32xf32>
    %105 = tpu.matmul %102, %104, %cst_23 {dimension_numbers = #tpu.dot_dimension_numbers<[1], [0], [0], [1], [0, 0, 1, 1], [], []>} : vector<8x32xf32>, vector<32x32xf32>, vector<8x32xf32> -> vector<8x32xf32>
    %106 = arith.addf %4, %105 : vector<8x32xf32>
    %107 = vector.shape_cast %19 : vector<32xf32> to vector<1x32xf32>
    %108 = vector.broadcast %107 : vector<1x32xf32> to vector<8x32xf32>
    %109 = arith.addf %106, %108 : vector<8x32xf32>
    %cst_24 = arith.constant dense<0.000000e+00> : vector<8xf32>
    %110 = vector.multi_reduction <add>, %109, %cst_24 [1] : vector<8x32xf32> to vector<8xf32>
    %111 = vector.shape_cast %110 : vector<8xf32> to vector<8x1xf32>
    %cst_25 = arith.constant 3.200000e+01 : f32
    %112 = vector.broadcast %cst_25 : f32 to vector<8x1xf32>
    %113 = arith.divf %111, %112 : vector<8x1xf32>
    %114 = vector.broadcast %113 : vector<8x1xf32> to vector<8x32xf32>
    %115 = arith.subf %109, %114 : vector<8x32xf32>
    %116 = arith.mulf %115, %115 : vector<8x32xf32>
    %cst_26 = arith.constant dense<0.000000e+00> : vector<8xf32>
    %117 = vector.multi_reduction <add>, %116, %cst_26 [1] : vector<8x32xf32> to vector<8xf32>
    %118 = vector.shape_cast %117 : vector<8xf32> to vector<8x1xf32>
    %cst_27 = arith.constant 3.200000e+01 : f32
    %119 = vector.broadcast %cst_27 : f32 to vector<8x1xf32>
    %120 = arith.divf %118, %119 : vector<8x1xf32>
    %121 = vector.broadcast %113 : vector<8x1xf32> to vector<8x32xf32>
    %122 = arith.subf %109, %121 : vector<8x32xf32>
    %cst_28 = arith.constant 9.99999974E-6 : f32
    %123 = vector.broadcast %cst_28 : f32 to vector<8x1xf32>
    %124 = arith.addf %120, %123 : vector<8x1xf32>
    %125 = math.rsqrt %124 : vector<8x1xf32>
    %126 = vector.broadcast %125 : vector<8x1xf32> to vector<8x32xf32>
    %127 = arith.mulf %122, %126 : vector<8x32xf32>
    %128 = vector.shape_cast %16 : vector<32xf32> to vector<1x32xf32>
    %129 = vector.broadcast %128 : vector<1x32xf32> to vector<8x32xf32>
    %130 = arith.mulf %127, %129 : vector<8x32xf32>
    %131 = vector.shape_cast %17 : vector<32xf32> to vector<1x32xf32>
    %132 = vector.broadcast %131 : vector<1x32xf32> to vector<8x32xf32>
    %133 = arith.addf %130, %132 : vector<8x32xf32>
    %c0_29 = arith.constant 0 : index
    %c0_30 = arith.constant 0 : index
    %c0_31 = arith.constant 0 : index
    %134 = vector.load %arg7[%c0_29, %c0_30, %c0_31] : memref<2x32x128xf32, #tpu.memory_space<vmem>>, vector<1x32x128xf32>
    %135 = vector.shape_cast %134 : vector<1x32x128xf32> to vector<32x128xf32>
    %cst_32 = arith.constant dense<0.000000e+00> : vector<8x128xf32>
    %136 = tpu.matmul %133, %135, %cst_32 {dimension_numbers = #tpu.dot_dimension_numbers<[1], [0], [0], [1], [0, 0, 1, 1], [], []>} : vector<8x32xf32>, vector<32x128xf32>, vector<8x128xf32> -> vector<8x128xf32>
    %137 = vector.shape_cast %20 : vector<128xf32> to vector<1x128xf32>
    %138 = vector.broadcast %137 : vector<1x128xf32> to vector<8x128xf32>
    %139 = arith.addf %136, %138 : vector<8x128xf32>
    %cst_33 = arith.constant 1.702000e+00 : f32
    %140 = vector.broadcast %cst_33 : f32 to vector<8x128xf32>
    %141 = arith.mulf %140, %139 : vector<8x128xf32>
    %142 = arith.negf %141 : vector<8x128xf32>
    %143 = math.exp %142 : vector<8x128xf32>
    %cst_34 = arith.constant 1.000000e+00 : f32
    %144 = vector.broadcast %cst_34 : f32 to vector<8x128xf32>
    %145 = arith.addf %144, %143 : vector<8x128xf32>
    %146 = arith.divf %144, %145 : vector<8x128xf32>
    %147 = arith.mulf %139, %146 : vector<8x128xf32>
    %c0_35 = arith.constant 0 : index
    %c0_36 = arith.constant 0 : index
    %c0_37 = arith.constant 0 : index
    %148 = vector.load %arg8[%c0_35, %c0_36, %c0_37] : memref<2x128x32xf32, #tpu.memory_space<vmem>>, vector<1x128x32xf32>
    %149 = vector.shape_cast %148 : vector<1x128x32xf32> to vector<128x32xf32>
    %cst_38 = arith.constant dense<0.000000e+00> : vector<8x32xf32>
    %150 = tpu.matmul %147, %149, %cst_38 {dimension_numbers = #tpu.dot_dimension_numbers<[1], [0], [0], [1], [0, 0, 1, 1], [], []>} : vector<8x128xf32>, vector<128x32xf32>, vector<8x32xf32> -> vector<8x32xf32>
    %151 = arith.addf %109, %150 : vector<8x32xf32>
    %152 = vector.shape_cast %21 : vector<32xf32> to vector<1x32xf32>
    %153 = vector.broadcast %152 : vector<1x32xf32> to vector<8x32xf32>
    %154 = arith.addf %151, %153 : vector<8x32xf32>
    %c1 = arith.constant 1 : index
    %c0_39 = arith.constant 0 : index
    %155 = vector.load %arg4[%c1, %c0_39] : memref<2x416xf32, #tpu.memory_space<vmem>>, vector<1x416xf32>
    %156 = vector.shape_cast %155 : vector<1x416xf32> to vector<416xf32>
    %157 = vector.extract_strided_slice %156 {offsets = [0], sizes = [32], strides = [1]} : vector<416xf32> to vector<32xf32>
    %158 = vector.extract_strided_slice %156 {offsets = [32], sizes = [32], strides = [1]} : vector<416xf32> to vector<32xf32>
    %159 = vector.extract_strided_slice %156 {offsets = [64], sizes = [32], strides = [1]} : vector<416xf32> to vector<32xf32>
    %160 = vector.extract_strided_slice %156 {offsets = [96], sizes = [32], strides = [1]} : vector<416xf32> to vector<32xf32>
    %161 = vector.extract_strided_slice %156 {offsets = [128], sizes = [96], strides = [1]} : vector<416xf32> to vector<96xf32>
    %162 = vector.extract_strided_slice %156 {offsets = [224], sizes = [32], strides = [1]} : vector<416xf32> to vector<32xf32>
    %163 = vector.extract_strided_slice %156 {offsets = [256], sizes = [128], strides = [1]} : vector<416xf32> to vector<128xf32>
    %164 = vector.extract_strided_slice %156 {offsets = [384], sizes = [32], strides = [1]} : vector<416xf32> to vector<32xf32>
    %cst_40 = arith.constant dense<0.000000e+00> : vector<8xf32>
    %165 = vector.multi_reduction <add>, %154, %cst_40 [1] : vector<8x32xf32> to vector<8xf32>
    %166 = vector.shape_cast %165 : vector<8xf32> to vector<8x1xf32>
    %cst_41 = arith.constant 3.200000e+01 : f32
    %167 = vector.broadcast %cst_41 : f32 to vector<8x1xf32>
    %168 = arith.divf %166, %167 : vector<8x1xf32>
    %169 = vector.broadcast %168 : vector<8x1xf32> to vector<8x32xf32>
    %170 = arith.subf %154, %169 : vector<8x32xf32>
    %171 = arith.mulf %170, %170 : vector<8x32xf32>
    %cst_42 = arith.constant dense<0.000000e+00> : vector<8xf32>
    %172 = vector.multi_reduction <add>, %171, %cst_42 [1] : vector<8x32xf32> to vector<8xf32>
    %173 = vector.shape_cast %172 : vector<8xf32> to vector<8x1xf32>
    %cst_43 = arith.constant 3.200000e+01 : f32
    %174 = vector.broadcast %cst_43 : f32 to vector<8x1xf32>
    %175 = arith.divf %173, %174 : vector<8x1xf32>
    %176 = vector.broadcast %168 : vector<8x1xf32> to vector<8x32xf32>
    %177 = arith.subf %154, %176 : vector<8x32xf32>
    %cst_44 = arith.constant 9.99999974E-6 : f32
    %178 = vector.broadcast %cst_44 : f32 to vector<8x1xf32>
    %179 = arith.addf %175, %178 : vector<8x1xf32>
    %180 = math.rsqrt %179 : vector<8x1xf32>
    %181 = vector.broadcast %180 : vector<8x1xf32> to vector<8x32xf32>
    %182 = arith.mulf %177, %181 : vector<8x32xf32>
    %183 = vector.shape_cast %157 : vector<32xf32> to vector<1x32xf32>
    %184 = vector.broadcast %183 : vector<1x32xf32> to vector<8x32xf32>
    %185 = arith.mulf %182, %184 : vector<8x32xf32>
    %186 = vector.shape_cast %158 : vector<32xf32> to vector<1x32xf32>
    %187 = vector.broadcast %186 : vector<1x32xf32> to vector<8x32xf32>
    %188 = arith.addf %185, %187 : vector<8x32xf32>
    %c1_45 = arith.constant 1 : index
    %c0_46 = arith.constant 0 : index
    %c0_47 = arith.constant 0 : index
    %189 = vector.load %arg5[%c1_45, %c0_46, %c0_47] : memref<2x32x96xf32, #tpu.memory_space<vmem>>, vector<1x32x96xf32>
    %190 = vector.shape_cast %189 : vector<1x32x96xf32> to vector<32x96xf32>
    %cst_48 = arith.constant dense<0.000000e+00> : vector<8x96xf32>
    %191 = tpu.matmul %188, %190, %cst_48 {dimension_numbers = #tpu.dot_dimension_numbers<[1], [0], [0], [1], [0, 0, 1, 1], [], []>} : vector<8x32xf32>, vector<32x96xf32>, vector<8x96xf32> -> vector<8x96xf32>
    %192 = vector.shape_cast %161 : vector<96xf32> to vector<1x96xf32>
    %193 = vector.broadcast %192 : vector<1x96xf32> to vector<8x96xf32>
    %194 = arith.addf %191, %193 : vector<8x96xf32>
    %195 = vector.extract_strided_slice %194 {offsets = [0, 0], sizes = [8, 8], strides = [1, 1]} : vector<8x96xf32> to vector<8x8xf32>
    %196 = vector.extract_strided_slice %194 {offsets = [0, 8], sizes = [8, 8], strides = [1, 1]} : vector<8x96xf32> to vector<8x8xf32>
    %197 = vector.extract_strided_slice %194 {offsets = [0, 16], sizes = [8, 8], strides = [1, 1]} : vector<8x96xf32> to vector<8x8xf32>
    %198 = vector.extract_strided_slice %194 {offsets = [0, 24], sizes = [8, 8], strides = [1, 1]} : vector<8x96xf32> to vector<8x8xf32>
    %199 = vector.extract_strided_slice %194 {offsets = [0, 32], sizes = [8, 8], strides = [1, 1]} : vector<8x96xf32> to vector<8x8xf32>
    %200 = vector.extract_strided_slice %194 {offsets = [0, 40], sizes = [8, 8], strides = [1, 1]} : vector<8x96xf32> to vector<8x8xf32>
    %201 = vector.extract_strided_slice %194 {offsets = [0, 48], sizes = [8, 8], strides = [1, 1]} : vector<8x96xf32> to vector<8x8xf32>
    %202 = vector.extract_strided_slice %194 {offsets = [0, 56], sizes = [8, 8], strides = [1, 1]} : vector<8x96xf32> to vector<8x8xf32>
    %203 = vector.extract_strided_slice %194 {offsets = [0, 64], sizes = [8, 8], strides = [1, 1]} : vector<8x96xf32> to vector<8x8xf32>
    %204 = vector.extract_strided_slice %194 {offsets = [0, 72], sizes = [8, 8], strides = [1, 1]} : vector<8x96xf32> to vector<8x8xf32>
    %205 = vector.extract_strided_slice %194 {offsets = [0, 80], sizes = [8, 8], strides = [1, 1]} : vector<8x96xf32> to vector<8x8xf32>
    %206 = vector.extract_strided_slice %194 {offsets = [0, 88], sizes = [8, 8], strides = [1, 1]} : vector<8x96xf32> to vector<8x8xf32>
    %207 = vector.shape_cast %195 : vector<8x8xf32> to vector<1x8x8xf32>
    %208 = vector.shape_cast %196 : vector<8x8xf32> to vector<1x8x8xf32>
    %209 = vector.shape_cast %197 : vector<8x8xf32> to vector<1x8x8xf32>
    %210 = vector.shape_cast %198 : vector<8x8xf32> to vector<1x8x8xf32>
    %211 = vector.shape_cast %199 : vector<8x8xf32> to vector<1x8x8xf32>
    %212 = vector.shape_cast %200 : vector<8x8xf32> to vector<1x8x8xf32>
    %213 = vector.shape_cast %201 : vector<8x8xf32> to vector<1x8x8xf32>
    %214 = vector.shape_cast %202 : vector<8x8xf32> to vector<1x8x8xf32>
    %215 = vector.shape_cast %203 : vector<8x8xf32> to vector<1x8x8xf32>
    %216 = vector.shape_cast %204 : vector<8x8xf32> to vector<1x8x8xf32>
    %217 = vector.shape_cast %205 : vector<8x8xf32> to vector<1x8x8xf32>
    %218 = vector.shape_cast %206 : vector<8x8xf32> to vector<1x8x8xf32>
    %219 = tpu.concatenate %207, %208, %209, %210, %211, %212, %213, %214, %215, %216, %217, %218 in 0 : vector<1x8x8xf32>, vector<1x8x8xf32>, vector<1x8x8xf32>, vector<1x8x8xf32>, vector<1x8x8xf32>, vector<1x8x8xf32>, vector<1x8x8xf32>, vector<1x8x8xf32>, vector<1x8x8xf32>, vector<1x8x8xf32>, vector<1x8x8xf32>, vector<1x8x8xf32> -> vector<12x8x8xf32>
    %220 = vector.extract_strided_slice %219 {offsets = [0, 0, 0], sizes = [4, 8, 8], strides = [1, 1, 1]} : vector<12x8x8xf32> to vector<4x8x8xf32>
    %221 = vector.extract_strided_slice %219 {offsets = [4, 0, 0], sizes = [4, 8, 8], strides = [1, 1, 1]} : vector<12x8x8xf32> to vector<4x8x8xf32>
    %222 = vector.extract_strided_slice %219 {offsets = [8, 0, 0], sizes = [4, 8, 8], strides = [1, 1, 1]} : vector<12x8x8xf32> to vector<4x8x8xf32>
    "tpu.trace_start"() <{level = 10 : i32, message = "hqd,hkd->hqk"}> : () -> ()
    %cst_49 = arith.constant dense<0.000000e+00> : vector<4x8x8xf32>
    %223 = tpu.matmul %220, %221, %cst_49 {dimension_numbers = #tpu.dot_dimension_numbers<[2], [2], [1], [1], [0, 0, 0, 1, 1, 1], [0], [0]>} : vector<4x8x8xf32>, vector<4x8x8xf32>, vector<4x8x8xf32> -> vector<4x8x8xf32>
    "tpu.trace_stop"() : () -> ()
    %224 = vector.broadcast %11 : vector<1x8x8xf32> to vector<4x8x8xf32>
    %225 = arith.addf %223, %224 : vector<4x8x8xf32>
    %cst_50 = arith.constant dense<0xFF800000> : vector<4x8xf32>
    %226 = vector.multi_reduction <maximumf>, %225, %cst_50 [2] : vector<4x8x8xf32> to vector<4x8xf32>
    %227 = vector.shape_cast %226 : vector<4x8xf32> to vector<4x8x1xf32>
    %228 = vector.broadcast %227 : vector<4x8x1xf32> to vector<4x8x8xf32>
    %229 = arith.subf %225, %228 : vector<4x8x8xf32>
    %230 = math.exp %229 : vector<4x8x8xf32>
    %cst_51 = arith.constant dense<0.000000e+00> : vector<4x8xf32>
    %231 = vector.multi_reduction <add>, %230, %cst_51 [2] : vector<4x8x8xf32> to vector<4x8xf32>
    %232 = vector.shape_cast %231 : vector<4x8xf32> to vector<4x8x1xf32>
    %233 = tpu.reciprocal %232 {approx = true} : vector<4x8x1xf32> -> vector<4x8x1xf32>
    %234 = vector.broadcast %233 : vector<4x8x1xf32> to vector<4x8x8xf32>
    %235 = arith.mulf %230, %234 : vector<4x8x8xf32>
    "tpu.trace_start"() <{level = 10 : i32, message = "hqk,hkd->hqd"}> : () -> ()
    %cst_52 = arith.constant dense<0.000000e+00> : vector<4x8x8xf32>
    %236 = tpu.matmul %235, %222, %cst_52 {dimension_numbers = #tpu.dot_dimension_numbers<[2], [1], [1], [2], [0, 0, 0, 1, 1, 2], [0], [0]>} : vector<4x8x8xf32>, vector<4x8x8xf32>, vector<4x8x8xf32> -> vector<4x8x8xf32>
    "tpu.trace_stop"() : () -> ()
    %237 = vector.extract_strided_slice %236 {offsets = [0, 0, 0], sizes = [1, 8, 8], strides = [1, 1, 1]} : vector<4x8x8xf32> to vector<1x8x8xf32>
    %238 = vector.shape_cast %237 : vector<1x8x8xf32> to vector<8x8xf32>
    %239 = vector.extract_strided_slice %236 {offsets = [1, 0, 0], sizes = [1, 8, 8], strides = [1, 1, 1]} : vector<4x8x8xf32> to vector<1x8x8xf32>
    %240 = vector.shape_cast %239 : vector<1x8x8xf32> to vector<8x8xf32>
    %241 = vector.extract_strided_slice %236 {offsets = [2, 0, 0], sizes = [1, 8, 8], strides = [1, 1, 1]} : vector<4x8x8xf32> to vector<1x8x8xf32>
    %242 = vector.shape_cast %241 : vector<1x8x8xf32> to vector<8x8xf32>
    %243 = vector.extract_strided_slice %236 {offsets = [3, 0, 0], sizes = [1, 8, 8], strides = [1, 1, 1]} : vector<4x8x8xf32> to vector<1x8x8xf32>
    %244 = vector.shape_cast %243 : vector<1x8x8xf32> to vector<8x8xf32>
    %245 = tpu.concatenate %238, %240, %242, %244 in 1 : vector<8x8xf32>, vector<8x8xf32>, vector<8x8xf32>, vector<8x8xf32> -> vector<8x32xf32>
    %c1_53 = arith.constant 1 : index
    %c0_54 = arith.constant 0 : index
    %c0_55 = arith.constant 0 : index
    %246 = vector.load %arg6[%c1_53, %c0_54, %c0_55] : memref<2x32x32xf32, #tpu.memory_space<vmem>>, vector<1x32x32xf32>
    %247 = vector.shape_cast %246 : vector<1x32x32xf32> to vector<32x32xf32>
    %cst_56 = arith.constant dense<0.000000e+00> : vector<8x32xf32>
    %248 = tpu.matmul %245, %247, %cst_56 {dimension_numbers = #tpu.dot_dimension_numbers<[1], [0], [0], [1], [0, 0, 1, 1], [], []>} : vector<8x32xf32>, vector<32x32xf32>, vector<8x32xf32> -> vector<8x32xf32>
    %249 = arith.addf %154, %248 : vector<8x32xf32>
    %250 = vector.shape_cast %162 : vector<32xf32> to vector<1x32xf32>
    %251 = vector.broadcast %250 : vector<1x32xf32> to vector<8x32xf32>
    %252 = arith.addf %249, %251 : vector<8x32xf32>
    %cst_57 = arith.constant dense<0.000000e+00> : vector<8xf32>
    %253 = vector.multi_reduction <add>, %252, %cst_57 [1] : vector<8x32xf32> to vector<8xf32>
    %254 = vector.shape_cast %253 : vector<8xf32> to vector<8x1xf32>
    %cst_58 = arith.constant 3.200000e+01 : f32
    %255 = vector.broadcast %cst_58 : f32 to vector<8x1xf32>
    %256 = arith.divf %254, %255 : vector<8x1xf32>
    %257 = vector.broadcast %256 : vector<8x1xf32> to vector<8x32xf32>
    %258 = arith.subf %252, %257 : vector<8x32xf32>
    %259 = arith.mulf %258, %258 : vector<8x32xf32>
    %cst_59 = arith.constant dense<0.000000e+00> : vector<8xf32>
    %260 = vector.multi_reduction <add>, %259, %cst_59 [1] : vector<8x32xf32> to vector<8xf32>
    %261 = vector.shape_cast %260 : vector<8xf32> to vector<8x1xf32>
    %cst_60 = arith.constant 3.200000e+01 : f32
    %262 = vector.broadcast %cst_60 : f32 to vector<8x1xf32>
    %263 = arith.divf %261, %262 : vector<8x1xf32>
    %264 = vector.broadcast %256 : vector<8x1xf32> to vector<8x32xf32>
    %265 = arith.subf %252, %264 : vector<8x32xf32>
    %cst_61 = arith.constant 9.99999974E-6 : f32
    %266 = vector.broadcast %cst_61 : f32 to vector<8x1xf32>
    %267 = arith.addf %263, %266 : vector<8x1xf32>
    %268 = math.rsqrt %267 : vector<8x1xf32>
    %269 = vector.broadcast %268 : vector<8x1xf32> to vector<8x32xf32>
    %270 = arith.mulf %265, %269 : vector<8x32xf32>
    %271 = vector.shape_cast %159 : vector<32xf32> to vector<1x32xf32>
    %272 = vector.broadcast %271 : vector<1x32xf32> to vector<8x32xf32>
    %273 = arith.mulf %270, %272 : vector<8x32xf32>
    %274 = vector.shape_cast %160 : vector<32xf32> to vector<1x32xf32>
    %275 = vector.broadcast %274 : vector<1x32xf32> to vector<8x32xf32>
    %276 = arith.addf %273, %275 : vector<8x32xf32>
    %c1_62 = arith.constant 1 : index
    %c0_63 = arith.constant 0 : index
    %c0_64 = arith.constant 0 : index
    %277 = vector.load %arg7[%c1_62, %c0_63, %c0_64] : memref<2x32x128xf32, #tpu.memory_space<vmem>>, vector<1x32x128xf32>
    %278 = vector.shape_cast %277 : vector<1x32x128xf32> to vector<32x128xf32>
    %cst_65 = arith.constant dense<0.000000e+00> : vector<8x128xf32>
    %279 = tpu.matmul %276, %278, %cst_65 {dimension_numbers = #tpu.dot_dimension_numbers<[1], [0], [0], [1], [0, 0, 1, 1], [], []>} : vector<8x32xf32>, vector<32x128xf32>, vector<8x128xf32> -> vector<8x128xf32>
    %280 = vector.shape_cast %163 : vector<128xf32> to vector<1x128xf32>
    %281 = vector.broadcast %280 : vector<1x128xf32> to vector<8x128xf32>
    %282 = arith.addf %279, %281 : vector<8x128xf32>
    %cst_66 = arith.constant 1.702000e+00 : f32
    %283 = vector.broadcast %cst_66 : f32 to vector<8x128xf32>
    %284 = arith.mulf %283, %282 : vector<8x128xf32>
    %285 = arith.negf %284 : vector<8x128xf32>
    %286 = math.exp %285 : vector<8x128xf32>
    %cst_67 = arith.constant 1.000000e+00 : f32
    %287 = vector.broadcast %cst_67 : f32 to vector<8x128xf32>
    %288 = arith.addf %287, %286 : vector<8x128xf32>
    %289 = arith.divf %287, %288 : vector<8x128xf32>
    %290 = arith.mulf %282, %289 : vector<8x128xf32>
    %c1_68 = arith.constant 1 : index
    %c0_69 = arith.constant 0 : index
    %c0_70 = arith.constant 0 : index
    %291 = vector.load %arg8[%c1_68, %c0_69, %c0_70] : memref<2x128x32xf32, #tpu.memory_space<vmem>>, vector<1x128x32xf32>
    %292 = vector.shape_cast %291 : vector<1x128x32xf32> to vector<128x32xf32>
    %cst_71 = arith.constant dense<0.000000e+00> : vector<8x32xf32>
    %293 = tpu.matmul %290, %292, %cst_71 {dimension_numbers = #tpu.dot_dimension_numbers<[1], [0], [0], [1], [0, 0, 1, 1], [], []>} : vector<8x128xf32>, vector<128x32xf32>, vector<8x32xf32> -> vector<8x32xf32>
    %294 = arith.addf %252, %293 : vector<8x32xf32>
    %295 = vector.shape_cast %164 : vector<32xf32> to vector<1x32xf32>
    %296 = vector.broadcast %295 : vector<1x32xf32> to vector<8x32xf32>
    %297 = arith.addf %294, %296 : vector<8x32xf32>
    %c0_72 = arith.constant 0 : index
    %c0_73 = arith.constant 0 : index
    %298 = vector.load %arg11[%c0_72, %c0_73] : memref<8x32xf32, #tpu.memory_space<vmem>>, vector<8x32xf32>
    tpu.vector_store %arg11[%c0_72, %c0_73], %297 {strides = array<i32>} : memref<8x32xf32, #tpu.memory_space<vmem>>, vector<8x32xf32>,
    %299 = arith.index_cast %arg0 : i32 to index
    %300 = memref.load %arg1[%299] : memref<2xi32, #tpu.memory_space<smem>>
    %301 = arith.index_cast %300 : i32 to index
    %c0_74 = arith.constant 0 : index
    %302 = vector.load %arg11[%301, %c0_74] : memref<8x32xf32, #tpu.memory_space<vmem>>, vector<1x32xf32>
    %303 = vector.extract_strided_slice %0 {offsets = [8, 0], sizes = [1, 32], strides = [1, 1]} : vector<10x32xf32> to vector<1x32xf32>
    %304 = vector.shape_cast %303 : vector<1x32xf32> to vector<32xf32>
    %305 = vector.extract_strided_slice %0 {offsets = [9, 0], sizes = [1, 32], strides = [1, 1]} : vector<10x32xf32> to vector<1x32xf32>
    %306 = vector.shape_cast %305 : vector<1x32xf32> to vector<32xf32>
    %cst_75 = arith.constant dense<0.000000e+00> : vector<1xf32>
    %307 = vector.multi_reduction <add>, %302, %cst_75 [1] : vector<1x32xf32> to vector<1xf32>
    %308 = vector.shape_cast %307 : vector<1xf32> to vector<1x1xf32>
    %cst_76 = arith.constant 3.200000e+01 : f32
    %309 = vector.broadcast %cst_76 : f32 to vector<1x1xf32>
    %310 = arith.divf %308, %309 : vector<1x1xf32>
    %311 = vector.broadcast %310 : vector<1x1xf32> to vector<1x32xf32>
    %312 = arith.subf %302, %311 : vector<1x32xf32>
    %313 = arith.mulf %312, %312 : vector<1x32xf32>
    %cst_77 = arith.constant dense<0.000000e+00> : vector<1xf32>
    %314 = vector.multi_reduction <add>, %313, %cst_77 [1] : vector<1x32xf32> to vector<1xf32>
    %315 = vector.shape_cast %314 : vector<1xf32> to vector<1x1xf32>
    %cst_78 = arith.constant 3.200000e+01 : f32
    %316 = vector.broadcast %cst_78 : f32 to vector<1x1xf32>
    %317 = arith.divf %315, %316 : vector<1x1xf32>
    %318 = vector.broadcast %310 : vector<1x1xf32> to vector<1x32xf32>
    %319 = arith.subf %302, %318 : vector<1x32xf32>
    %cst_79 = arith.constant 9.99999974E-6 : f32
    %320 = vector.broadcast %cst_79 : f32 to vector<1x1xf32>
    %321 = arith.addf %317, %320 : vector<1x1xf32>
    %322 = math.rsqrt %321 : vector<1x1xf32>
    %323 = vector.broadcast %322 : vector<1x1xf32> to vector<1x32xf32>
    %324 = arith.mulf %319, %323 : vector<1x32xf32>
    %325 = vector.shape_cast %304 : vector<32xf32> to vector<1x32xf32>
    %326 = arith.mulf %324, %325 : vector<1x32xf32>
    %327 = vector.shape_cast %306 : vector<32xf32> to vector<1x32xf32>
    %328 = arith.addf %326, %327 : vector<1x32xf32>
    %c0_80 = arith.constant 0 : index
    %c0_81 = arith.constant 0 : index
    %329 = vector.load %arg9[%c0_80, %c0_81] : memref<32x128xf32, #tpu.memory_space<vmem>>, vector<32x128xf32>
    %cst_82 = arith.constant dense<0.000000e+00> : vector<1x128xf32>
    %330 = tpu.matmul %328, %329, %cst_82 {dimension_numbers = #tpu.dot_dimension_numbers<[1], [0], [0], [1], [0, 0, 1, 1], [], []>} : vector<1x32xf32>, vector<32x128xf32>, vector<1x128xf32> -> vector<1x128xf32>
    %331 = vector.shape_cast %330 : vector<1x128xf32> to vector<1x1x128xf32>
    %332 = vector.broadcast %331 : vector<1x1x128xf32> to vector<1x8x128xf32>
    %c0_83 = arith.constant 0 : index
    %c0_84 = arith.constant 0 : index
    %c0_85 = arith.constant 0 : index
    %333 = vector.load %arg10[%c0_83, %c0_84, %c0_85] : memref<1x8x128xf32, #tpu.memory_space<vmem>>, vector<1x8x128xf32>
    tpu.vector_store %arg10[%c0_83, %c0_84, %c0_85], %332 {strides = array<i32>} : memref<1x8x128xf32, #tpu.memory_space<vmem>>, vector<1x8x128xf32>,
    return
  }
  func.func @transform_0(%arg0: i32, %arg1: memref<2xi32, #tpu.memory_space<smem>>) -> (i32, i32, i32) {
    %c0_i32 = arith.constant 0 : i32
    %c0_i32_0 = arith.constant 0 : i32
    %c0_i32_1 = arith.constant 0 : i32
    return %arg0, %c0_i32, %c0_i32_0 : i32, i32, i32
  }
  func.func @transform_1(%arg0: i32, %arg1: memref<2xi32, #tpu.memory_space<smem>>) -> (i32, i32) {
    %c0_i32 = arith.constant 0 : i32
    %c0_i32_0 = arith.constant 0 : i32
    %c0_i32_1 = arith.constant 0 : i32
    return %c0_i32, %c0_i32_0 : i32, i32
  }
  func.func @transform_2(%arg0: i32, %arg1: memref<2xi32, #tpu.memory_space<smem>>) -> (i32, i32) {
    %c0_i32 = arith.constant 0 : i32
    %c0_i32_0 = arith.constant 0 : i32
    %c0_i32_1 = arith.constant 0 : i32
    return %c0_i32, %c0_i32_0 : i32, i32
  }
  func.func @transform_3(%arg0: i32, %arg1: memref<2xi32, #tpu.memory_space<smem>>) -> (i32, i32, i32) {
    %c0_i32 = arith.constant 0 : i32
    %c0_i32_0 = arith.constant 0 : i32
    %c0_i32_1 = arith.constant 0 : i32
    %c0_i32_2 = arith.constant 0 : i32
    return %c0_i32, %c0_i32_0, %c0_i32_1 : i32, i32, i32
  }
  func.func @transform_4(%arg0: i32, %arg1: memref<2xi32, #tpu.memory_space<smem>>) -> (i32, i32, i32) {
    %c0_i32 = arith.constant 0 : i32
    %c0_i32_0 = arith.constant 0 : i32
    %c0_i32_1 = arith.constant 0 : i32
    %c0_i32_2 = arith.constant 0 : i32
    return %c0_i32, %c0_i32_0, %c0_i32_1 : i32, i32, i32
  }
  func.func @transform_5(%arg0: i32, %arg1: memref<2xi32, #tpu.memory_space<smem>>) -> (i32, i32, i32) {
    %c0_i32 = arith.constant 0 : i32
    %c0_i32_0 = arith.constant 0 : i32
    %c0_i32_1 = arith.constant 0 : i32
    %c0_i32_2 = arith.constant 0 : i32
    return %c0_i32, %c0_i32_0, %c0_i32_1 : i32, i32, i32
  }
  func.func @transform_6(%arg0: i32, %arg1: memref<2xi32, #tpu.memory_space<smem>>) -> (i32, i32, i32) {
    %c0_i32 = arith.constant 0 : i32
    %c0_i32_0 = arith.constant 0 : i32
    %c0_i32_1 = arith.constant 0 : i32
    %c0_i32_2 = arith.constant 0 : i32
    return %c0_i32, %c0_i32_0, %c0_i32_1 : i32, i32, i32
  }
  func.func @transform_7(%arg0: i32, %arg1: memref<2xi32, #tpu.memory_space<smem>>) -> (i32, i32) {
    %c0_i32 = arith.constant 0 : i32
    %c0_i32_0 = arith.constant 0 : i32
    %c0_i32_1 = arith.constant 0 : i32
    return %c0_i32, %c0_i32_0 : i32, i32
  }
  func.func @transform_8(%arg0: i32, %arg1: memref<2xi32, #tpu.memory_space<smem>>) -> (i32, i32, i32) {
    %c0_i32 = arith.constant 0 : i32
    %c0_i32_0 = arith.constant 0 : i32
    %c0_i32_1 = arith.constant 0 : i32
    return %arg0, %c0_i32, %c0_i32_0 : i32, i32, i32
  }
}

</mosaic_0001>

<llo_original>
// kernel: text_encoder.1
$region0: #{text_encoder.1}
  #allocation0 [shape = 'u32[]', space=smem, size = 0x4, offset = 0x4, fixed_abs, tag = 'smem constant byte address 0x4 - core index']
  #allocation1 [shape = 'u32[144,128]{1,0:T(1,128)}', space=vmem, size = 0x12000, scoped, tag = 'internal scratch']
  #allocation2 [shape = 'f32[8,32]{1,0:T(8,128)}', space=vmem, size = 0x1000, scoped, tag = 'scratch operand']
  #allocation3 [shape = 's32[1]{0}', space=sflag, size = 0x4, scoped, tag = 'scoped memory for text_encoder.1']
  #allocation4 [shape = 'u8[512]{0}', space=smem, size = 0x200, scoped, tag = 'prefetched SMEM operand 0']
  %s0 = inlined_call_operand.vmem [shape: s32[2], index: 0, kind: input, shape index: {}]
  %s1 = inlined_call_operand.vmem [shape: f32[2,8,32], index: 1, kind: input, shape index: {}]
  %s2 = inlined_call_operand.vmem [shape: f32[10,32], index: 2, kind: input, shape index: {}]
  %s3 = inlined_call_operand.vmem [shape: f32[2,416], index: 3, kind: input, shape index: {}]
  %s4 = inlined_call_operand.vmem [shape: f32[2,32,96], index: 4, kind: input, shape index: {}]
  %s5 = inlined_call_operand.vmem [shape: f32[2,32,32], index: 5, kind: input, shape index: {}]
  %s6 = inlined_call_operand.vmem [shape: f32[2,32,128], index: 6, kind: input, shape index: {}]
  %s7 = inlined_call_operand.vmem [shape: f32[2,128,32], index: 7, kind: input, shape index: {}]
  %s8 = inlined_call_operand.vmem [shape: f32[32,128], index: 8, kind: input, shape index: {}]
  %s9 = inlined_call_operand.vmem [shape: f32[2,8,128], index: 9, kind: output, shape index: {}]
  %s10 = sld [smem:[#allocation0]]
  $region65: #{text_encoder.1} parent=0
    _
  %s12 = ssub.s32 1, %s10
  %s13 = scalar_select 0, %s12, %s10
  %s14 = sshll.u32 %s0, 4
  %s15 = int_to_ptr.vmem [resolvable:$true] %s14
  %17 = dma.vmem_to_smem %s15, 16, [#allocation4], [#allocation3]
  %18 = dma.done [#allocation3], 16
  %19 = sfence
  loop: start=0, step=1, limit=4
  $region2: #{text_encoder.1} parent=0 // loop_pre_header
    _
  $region3: #{text_encoder.1} parent=0 // loop_header
    %s21 = sphi 0, %s25
    %p22 = scmp.ge.s32.totalorder %s21, 4
    %s31 = sphi 0, %s33
    %s34 = sphi 0, %s31
    %s35 = sphi 0, %s34
    %s51 = sphi 0, %s35
    %s55 = sphi 0, %s55
    %s57 = sphi 0, %s55
    %s58 = sphi 0, %s57
    %s72 = sphi 0, %s58
    %s76 = sphi 0, %s76
    %s78 = sphi 0, %s76
    %s79 = sphi 0, %s78
    %s93 = sphi 0, %s79
    %s97 = sphi 0, %s97
    %s99 = sphi 0, %s97
    %s100 = sphi 0, %s99
    %s114 = sphi 0, %s100
    %s118 = sphi 0, %s118
    %s120 = sphi 0, %s118
    %s121 = sphi 0, %s120
    %s135 = sphi 0, %s121
    %s139 = sphi 0, %s139
    %s141 = sphi 0, %s139
    %s142 = sphi 0, %s141
    %s156 = sphi 0, %s142
    %s160 = sphi 0, %s160
    %s162 = sphi 0, %s160
    %s163 = sphi 0, %s162
    %s177 = sphi 0, %s163
    %s181 = sphi 0, %s181
    %s183 = sphi 0, %s181
    %s184 = sphi 0, %s183
    %s198 = sphi 0, %s184
    %s204 = sphi 0, %s206
    %s207 = sphi 0, %s204
    %s208 = sphi 0, %s207
    %s224 = sphi 0, %s208
  $region4: #{text_encoder.1} parent=0 // loop_header_branch
    %24 = sbr.rel (%p22) target = $region8
  $region5: #{text_encoder.1} parent=0 // loop_body
    %s26 = ssub.s32 %s21, 1
    %s27 = ssub.s32 %s21, 2
    %s28 = sadd.s32 %s21, 1
    %s29 = ssub.s32 %s21, %s28
    %p30 = scmp.eq.s32.totalorder %s29, 0
    %s32 = sadd.s32 %s31, 1
    %s33 = scalar_select %p30, %s31, %s32
    %p36 = pneg %p30
    %p37 = scmp.eq.s32.totalorder %s21, 1
    %p38 = por %p36, %p37
    %p39 = scmp.ne.s32.totalorder %s31, %s34
    %p40 = scmp.eq.s32.totalorder %s21, 0
    %p41 = por %p39, %p40
    %p42 = scmp.ne.s32.totalorder %s31, %s34
    %p43 = scmp.eq.s32.totalorder %s26, 1
    %p44 = por %p42, %p43
    %p45 = scmp.ne.s32.totalorder %s34, %s35
    %p46 = scmp.eq.s32.totalorder %s26, 0
    %p47 = por %p45, %p46
    %p48 = scmp.ne.s32.totalorder %s34, %s35
    %p49 = scmp.eq.s32.totalorder %s27, 1
    %p50 = por %p48, %p49
    %p52 = scmp.ne.s32.totalorder %s35, %s51
    %p53 = scmp.eq.s32.totalorder %s27, 0
    %p54 = por %p52, %p53
    %s56 = sadd.s32 %s55, 1
    %p59 = scmp.eq.s32.totalorder %s21, 1
    %p60 = scmp.ne.s32.totalorder %s55, %s57
    %p61 = scmp.eq.s32.totalorder %s21, 0
    %p62 = por %p60, %p61
    %p63 = scmp.ne.s32.totalorder %s55, %s57
    %p64 = scmp.eq.s32.totalorder %s26, 1
    %p65 = por %p63, %p64
    %p66 = scmp.ne.s32.totalorder %s57, %s58
    %p67 = scmp.eq.s32.totalorder %s26, 0
    %p68 = por %p66, %p67
    %p69 = scmp.ne.s32.totalorder %s57, %s58
    %p70 = scmp.eq.s32.totalorder %s27, 1
    %p71 = por %p69, %p70
    %p73 = scmp.ne.s32.totalorder %s58, %s72
    %p74 = scmp.eq.s32.totalorder %s27, 0
    %p75 = por %p73, %p74
    %s77 = sadd.s32 %s76, 1
    %p80 = scmp.eq.s32.totalorder %s21, 1
    %p81 = scmp.ne.s32.totalorder %s76, %s78
    %p82 = scmp.eq.s32.totalorder %s21, 0
    %p83 = por %p81, %p82
    %p84 = scmp.ne.s32.totalorder %s76, %s78
    %p85 = scmp.eq.s32.totalorder %s26, 1
    %p86 = por %p84, %p85
    %p87 = scmp.ne.s32.totalorder %s78, %s79
    %p88 = scmp.eq.s32.totalorder %s26, 0
    %p89 = por %p87, %p88
    %p90 = scmp.ne.s32.totalorder %s78, %s79
    %p91 = scmp.eq.s32.totalorder %s27, 1
    %p92 = por %p90, %p91
    %p94 = scmp.ne.s32.totalorder %s79, %s93
    %p95 = scmp.eq.s32.totalorder %s27, 0
    %p96 = por %p94, %p95
    %s98 = sadd.s32 %s97, 1
    %p101 = scmp.eq.s32.totalorder %s21, 1
    %p102 = scmp.ne.s32.totalorder %s97, %s99
    %p103 = scmp.eq.s32.totalorder %s21, 0
    %p104 = por %p102, %p103
    %p105 = scmp.ne.s32.totalorder %s97, %s99
    %p106 = scmp.eq.s32.totalorder %s26, 1
    %p107 = por %p105, %p106
    %p108 = scmp.ne.s32.totalorder %s99, %s100
    %p109 = scmp.eq.s32.totalorder %s26, 0
    %p110 = por %p108, %p109
    %p111 = scmp.ne.s32.totalorder %s99, %s100
    %p112 = scmp.eq.s32.totalorder %s27, 1
    %p113 = por %p111, %p112
    %p115 = scmp.ne.s32.totalorder %s100, %s114
    %p116 = scmp.eq.s32.totalorder %s27, 0
    %p117 = por %p115, %p116
    %s119 = sadd.s32 %s118, 1
    %p122 = scmp.eq.s32.totalorder %s21, 1
    %p123 = scmp.ne.s32.totalorder %s118, %s120
    %p124 = scmp.eq.s32.totalorder %s21, 0
    %p125 = por %p123, %p124
    %p126 = scmp.ne.s32.totalorder %s118, %s120
    %p127 = scmp.eq.s32.totalorder %s26, 1
    %p128 = por %p126, %p127
    %p129 = scmp.ne.s32.totalorder %s120, %s121
    %p130 = scmp.eq.s32.totalorder %s26, 0
    %p131 = por %p129, %p130
    %p132 = scmp.ne.s32.totalorder %s120, %s121
    %p133 = scmp.eq.s32.totalorder %s27, 1
    %p134 = por %p132, %p133
    %p136 = scmp.ne.s32.totalorder %s121, %s135
    %p137 = scmp.eq.s32.totalorder %s27, 0
    %p138 = por %p136, %p137
    %s140 = sadd.s32 %s139, 1
    %p143 = scmp.eq.s32.totalorder %s21, 1
    %p144 = scmp.ne.s32.totalorder %s139, %s141
    %p145 = scmp.eq.s32.totalorder %s21, 0
    %p146 = por %p144, %p145
    %p147 = scmp.ne.s32.totalorder %s139, %s141
    %p148 = scmp.eq.s32.totalorder %s26, 1
    %p149 = por %p147, %p148
    %p150 = scmp.ne.s32.totalorder %s141, %s142
    %p151 = scmp.eq.s32.totalorder %s26, 0
    %p152 = por %p150, %p151
    %p153 = scmp.ne.s32.totalorder %s141, %s142
    %p154 = scmp.eq.s32.totalorder %s27, 1
    %p155 = por %p153, %p154
    %p157 = scmp.ne.s32.totalorder %s142, %s156
    %p158 = scmp.eq.s32.totalorder %s27, 0
    %p159 = por %p157, %p158
    %s161 = sadd.s32 %s160, 1
    %p164 = scmp.eq.s32.totalorder %s21, 1
    %p165 = scmp.ne.s32.totalorder %s160, %s162
    %p166 = scmp.eq.s32.totalorder %s21, 0
    %p167 = por %p165, %p166
    %p168 = scmp.ne.s32.totalorder %s160, %s162
    %p169 = scmp.eq.s32.totalorder %s26, 1
    %p170 = por %p168, %p169
    %p171 = scmp.ne.s32.totalorder %s162, %s163
    %p172 = scmp.eq.s32.totalorder %s26, 0
    %p173 = por %p171, %p172
    %p174 = scmp.ne.s32.totalorder %s162, %s163
    %p175 = scmp.eq.s32.totalorder %s27, 1
    %p176 = por %p174, %p175
    %p178 = scmp.ne.s32.totalorder %s163, %s177
    %p179 = scmp.eq.s32.totalorder %s27, 0
    %p180 = por %p178, %p179
    %s182 = sadd.s32 %s181, 1
    %p185 = scmp.eq.s32.totalorder %s21, 1
    %p186 = scmp.ne.s32.totalorder %s181, %s183
    %p187 = scmp.eq.s32.totalorder %s21, 0
    %p188 = por %p186, %p187
    %p189 = scmp.ne.s32.totalorder %s181, %s183
    %p190 = scmp.eq.s32.totalorder %s26, 1
    %p191 = por %p189, %p190
    %p192 = scmp.ne.s32.totalorder %s183, %s184
    %p193 = scmp.eq.s32.totalorder %s26, 0
    %p194 = por %p192, %p193
    %p195 = scmp.ne.s32.totalorder %s183, %s184
    %p196 = scmp.eq.s32.totalorder %s27, 1
    %p197 = por %p195, %p196
    %p199 = scmp.ne.s32.totalorder %s184, %s198
    %p200 = scmp.eq.s32.totalorder %s27, 0
    %p201 = por %p199, %p200
    %s202 = ssub.s32 %s21, %s28
    %p203 = scmp.eq.s32.totalorder %s202, 0
    %s205 = sadd.s32 %s204, 1
    %s206 = scalar_select %p203, %s204, %s205
    %p209 = pneg %p203
    %p210 = scmp.eq.s32.totalorder %s21, 1
    %p211 = por %p209, %p210
    %p212 = scmp.ne.s32.totalorder %s204, %s207
    %p213 = scmp.eq.s32.totalorder %s21, 0
    %p214 = por %p212, %p213
    %p215 = scmp.ne.s32.totalorder %s204, %s207
    %p216 = scmp.eq.s32.totalorder %s26, 1
    %p217 = por %p215, %p216
    %p218 = scmp.ne.s32.totalorder %s207, %s208
    %p219 = scmp.eq.s32.totalorder %s26, 0
    %p220 = por %p218, %p219
    %p221 = scmp.ne.s32.totalorder %s207, %s208
    %p222 = scmp.eq.s32.totalorder %s27, 1
    %p223 = por %p221, %p222
    %p225 = scmp.ne.s32.totalorder %s208, %s224
    %p226 = scmp.eq.s32.totalorder %s27, 0
    %p227 = por %p225, %p226
    %p228 = scmp.le.s32.totalorder 1, %s21
    %p229 = scmp.lt.s32.totalorder %s21, 3
    %p230 = pnand %p228, %p229
    %p231 = pneg %p230
    // Predicated region
    $region9: #{text_encoder.1} parent=5 // pred_check
      _
    $region10: #{text_encoder.1} parent=5 // pred_check_branch
      %233 = sbr.rel (%p230) target = $region12
    $region11: #{text_encoder.1} parent=5 // pred_region
      %s234 = ssub.s32 %s21, 1
      // Predicated region
      $region13: #{text_encoder.1} parent=11 // pred_check
        %p235 = pneg %p68
      $region14: #{text_encoder.1} parent=11 // pred_check_branch
        %237 = sbr.rel (%p235) target = $region16
      $region15: #{text_encoder.1} parent=11 // pred_region
        _
      $region16: #{text_encoder.1} parent=11 // pred_fallthru
        _
      // Predicated region
      $region17: #{text_encoder.1} parent=11 // pred_check
        %p238 = pneg %p89
      $region18: #{text_encoder.1} parent=11 // pred_check_branch
        %240 = sbr.rel (%p238) target = $region20
      $region19: #{text_encoder.1} parent=11 // pred_region
        _
      $region20: #{text_encoder.1} parent=11 // pred_fallthru
        _
      // Predicated region
      $region21: #{text_encoder.1} parent=11 // pred_check
        %p241 = pneg %p110
      $region22: #{text_encoder.1} parent=11 // pred_check_branch
        %243 = sbr.rel (%p241) target = $region24
      $region23: #{text_encoder.1} parent=11 // pred_region
        _
      $region24: #{text_encoder.1} parent=11 // pred_fallthru
        _
      // Predicated region
      $region25: #{text_encoder.1} parent=11 // pred_check
        %p244 = pneg %p131
      $region26: #{text_encoder.1} parent=11 // pred_check_branch
        %246 = sbr.rel (%p244) target = $region28
      $region27: #{text_encoder.1} parent=11 // pred_region
        _
      $region28: #{text_encoder.1} parent=11 // pred_fallthru
        _
      // Predicated region
      $region29: #{text_encoder.1} parent=11 // pred_check
        %p247 = pneg %p152
      $region30: #{text_encoder.1} parent=11 // pred_check_branch
        %249 = sbr.rel (%p247) target = $region32
      $region31: #{text_encoder.1} parent=11 // pred_region
        _
      $region32: #{text_encoder.1} parent=11 // pred_fallthru
        _
      // Predicated region
      $region33: #{text_encoder.1} parent=11 // pred_check
        %p250 = pneg %p173
      $region34: #{text_encoder.1} parent=11 // pred_check_branch
        %252 = sbr.rel (%p250) target = $region36
      $region35: #{text_encoder.1} parent=11 // pred_region
        _
      $region36: #{text_encoder.1} parent=11 // pred_fallthru
        _
      // Predicated region
      $region37: #{text_encoder.1} parent=11 // pred_check
        %p253 = pneg %p194
      $region38: #{text_encoder.1} parent=11 // pred_check_branch
        %255 = sbr.rel (%p253) target = $region40
      $region39: #{text_encoder.1} parent=11 // pred_region
        _
      $region40: #{text_encoder.1} parent=11 // pred_fallthru
        _
    $region12: #{text_encoder.1} parent=5 // pred_fallthru
      _
    %p256 = scmp.lt.s32.totalorder %s21, 2
    // Predicated region
    $region41: #{text_encoder.1} parent=5 // pred_check
      %p257 = pneg %p256
    $region42: #{text_encoder.1} parent=5 // pred_check_branch
      %259 = sbr.rel (%p257) target = $region44
    $region43: #{text_encoder.1} parent=5 // pred_region
      // Predicated region
      $region45: #{text_encoder.1} parent=43 // pred_check
        %p260 = pneg %p41
      $region46: #{text_encoder.1} parent=43 // pred_check_branch
        %262 = sbr.rel (%p260) target = $region48
      $region47: #{text_encoder.1} parent=43 // pred_region
        %p263 = scmp.lt.s32.totalorder %s21, 1
        %s264 = scalar_select %p263, %s21, 1
        %s265 = smul.addr %s264, 8
        %s266 = scalar_lea.vmem %s1, %s265
      $region48: #{text_encoder.1} parent=43 // pred_fallthru
        _
    $region44: #{text_encoder.1} parent=5 // pred_fallthru
      _
    %p267 = scmp.le.s32.totalorder 1, %s21
    %p268 = scmp.lt.s32.totalorder %s21, 3
    %p269 = pnand %p267, %p268
    %p270 = pneg %p269
    // Predicated region
    $region49: #{text_encoder.1} parent=5 // pred_check
      _
    $region50: #{text_encoder.1} parent=5 // pred_check_branch
      %272 = sbr.rel (%p269) target = $region52
    $region51: #{text_encoder.1} parent=5 // pred_region
      %s273 = ssub.s32 %s21, 1
      %p274 = scmp.lt.s32.totalorder %s26, 1
      %s275 = scalar_select %p274, %s26, 1
      %s276 = smul.addr %s275, 8
      %s277 = scalar_lea.vmem %s1, %s276
      %p278 = pneg %p47
      %p279 = pneg %p44
      %p280 = pneg %p68
      %p281 = pneg %p65
      %p282 = pneg %p89
      %p283 = pneg %p86
      %p284 = pneg %p110
      %p285 = pneg %p107
      %p286 = pneg %p131
      %p287 = pneg %p128
      %p288 = pneg %p152
      %p289 = pneg %p149
      %p290 = pneg %p173
      %p291 = pneg %p170
      %p292 = pneg %p194
      %p293 = pneg %p191
      %p294 = pneg %p220
      %p295 = pneg %p217
      %p296 = scmp.lt.s32.totalorder %s26, 1
      %s297 = scalar_select %p296, %s26, 1
      %s298 = smul.addr %s297, 8
      %s299 = scalar_lea.vmem %s9, %s298
      %p300 = scmp.lt.s32.totalorder %s26, 1
      %s301 = scalar_select %p300, %s26, 1
      %s302 = smul.addr %s301, 8
      %s303 = scalar_lea.vmem %s1, %s302
      %p304 = scmp.lt.s32.totalorder %s26, 1
      %s305 = scalar_select %p304, %s26, 1
      %s306 = smul.addr %s305, 8
      %s307 = scalar_lea.vmem %s9, %s306
      %v308 = vld [vmem:[%s2] sm:$0xff]
      %v309 = vld [vmem:[%s2 + $0x8] sm:$0x3]
      %v310 = vld [vmem:[%s303] sm:$0xff]
      %v311 = vadd.f32 %v310, %v308
      %v312 = vlaneseq
      %v313 = vshrl.u32 %v312, 7
      %v314 = vlaneseq
      %v315 = vand.u32 %v314, 127
      %vm316 = vcmp.le.s32.totalorder %v315, %v313
      %v317 = vsel %vm316, 0.0, -inf
      %v318 = vld [vmem:[%s3] ss:$2 sm:$0xf]
      %vm319 = vcmask 261120
      %v320 = vsel %vm319, %v311, 0.0
      %321 = vadd.xlane.f32.xlu0 %v320
      %v322 = vpop.xlane.xlu0 %321
      %v323 = vrcp.pop 32.0
      %v324 = vmul.f32 %v322, %v323
      %v325 = vsub.f32 %v311, %v324
      %v326 = vmul.f32 %v325, %v325
      %v327 = vsel %vm319, %v326, 0.0
      %328 = vadd.xlane.f32.xlu0 %v327
      %v329 = vpop.xlane.xlu0 %328
      %v330 = vmul.f32 %v329, %v323
      %v331 = vadd.f32 %v330, 1e-05
      %v332 = vrsqrt.pop %v331
      %v333 = vmul.f32 %v325, %v332
      %v335 = vlaneseq
      %v336 = vshrl.u32 %v335, 7
      %v337 = vsub.s32 0, %v336
      %v338 = vrot.slane %v318, %v337
      %v340 = vmul.f32 %v333, %v338
      %341 = vrot.lane.b32.xlu0 %v338, 96
      %v342 = vpop.permute.xlu0 %341
      %v344 = vadd.f32 %v340, %v342
      %v345 = vld [vmem:[%s4] sm:$0xff]
      %v346 = vld [vmem:[%s4 + $0x8] sm:$0xff]
      %v347 = vld [vmem:[%s4 + $0x10] sm:$0xff]
      %v348 = vld [vmem:[%s4 + $0x18] sm:$0xff]
      %v349 = vrot.slane %v318, 1
      %v350 = vlaneseq
      %v351 = vshrl.u32 %v350, 7
      %v352 = vsub.s32 0, %v351
      %v353 = vrot.slane %v349, %v352
      %v356 = vsel %vm319, %v344, 0
      %358 = vmatprep.subr.mxu0 0.0
      %359 = vmatpush1.msra.mxu0 0.0
      %360 = vmatprep.subr.mxu0 0.0
      %361 = vmatpush1.msra.mxu0 0.0
      %362 = vmatprep.subr.mxu0 0.0
      %363 = vmatpush1.msra.mxu0 0.0
      %364 = vmatprep.subr.mxu0 0.0
      %365 = vmatpush1.msra.mxu0 0.0
      %366 = vmatprep.subr.mxu0 0.0
      %367 = vmatpush1.msra.mxu0 0.0
      %368 = vmatprep.subr.mxu0 0.0
      %369 = vmatpush1.msra.mxu0 0.0
      %370 = vmatprep.subr.mxu0 0.0
      %371 = vmatpush1.msra.mxu0 0.0
      %372 = vmatprep.subr.mxu0 0.0
      %373 = vmatpush1.msra.mxu0 0.0
      %374 = vmatprep.subr.mxu0 0.0
      %375 = vmatpush1.msra.mxu0 0.0
      %376 = vmatprep.subr.mxu0 0.0
      %377 = vmatpush1.msra.mxu0 0.0
      %378 = vmatprep.subr.mxu0 0.0
      %379 = vmatpush1.msra.mxu0 0.0
      %380 = vmatprep.subr.mxu0 0.0
      %381 = vmatpush1.msra.mxu0 0.0
      %382 = vmatprep.subr.mxu0 0.0
      %383 = vmatpush1.msra.mxu0 %v348
      %384 = vmatprep.subr.mxu0 0.0
      %385 = vmatpush1.msra.mxu0 %v347
      %386 = vmatprep.subr.mxu0 0.0
      %387 = vmatpush1.msra.mxu0 %v346
      %388 = vmatprep.subr.mxu0 0.0
      %389 = vmatpush1.msra.mxu0 %v345
      %390 = vmatprep.subr.mxu0 0.0
      %391 = vmatpush2.msra.mxu0 0.0
      %392 = vmatprep.subr.mxu0 0.0
      %393 = vmatpush2.msra.mxu0 0.0
      %394 = vmatprep.subr.mxu0 0.0
      %395 = vmatpush2.msra.mxu0 0.0
      %396 = vmatprep.subr.mxu0 0.0
      %397 = vmatpush2.msra.mxu0 0.0
      %398 = vmatprep.subr.mxu0 0.0
      %399 = vmatpush2.msra.mxu0 0.0
      %400 = vmatprep.subr.mxu0 0.0
      %401 = vmatpush2.msra.mxu0 0.0
      %402 = vmatprep.subr.mxu0 0.0
      %403 = vmatpush2.msra.mxu0 0.0
      %404 = vmatprep.subr.mxu0 0.0
      %405 = vmatpush2.msra.mxu0 0.0
      %406 = vmatprep.subr.mxu0 0.0
      %407 = vmatpush2.msra.mxu0 0.0
      %408 = vmatprep.subr.mxu0 0.0
      %409 = vmatpush2.msra.mxu0 0.0
      %410 = vmatprep.subr.mxu0 0.0
      %411 = vmatpush2.msra.mxu0 0.0
      %412 = vmatprep.subr.mxu0 0.0
      %413 = vmatpush2.msra.mxu0 0.0
      %414 = vmatprep.subr.mxu0 0.0
      %415 = vmatpush2.msra.mxu0 0.0
      %416 = vmatprep.subr.mxu0 0.0
      %417 = vmatpush2.msra.mxu0 0.0
      %418 = vmatprep.subr.mxu0 0.0
      %419 = vmatpush2.msra.mxu0 0.0
      %420 = vmatprep.subr.mxu0 0.0
      %421 = vmatpush2.msra.mxu0 0.0
      %422 = vmatprep.mubr.f32.mxu0 0.0
      %423 = vmatmul.mubr.f32.gmra.mxu0 %v356
      %v424 = vpop.f32.mrf.mxu0
      %v425 = vadd.f32 %v353, %v424
      %v426 = vpop.f32.mrf.mxu0
      %427 = vdwg.mxu0
      %429 = vrot.lane.b32.xlu0 %v425, 120
      %v430 = vpop.permute.xlu0 %429
      %431 = vrot.lane.b32.xlu0 %v425, 112
      %v432 = vpop.permute.xlu0 %431
      %433 = vrot.lane.b32.xlu0 %v425, 104
      %v434 = vpop.permute.xlu0 %433
      %435 = vrot.lane.b32.xlu0 %v425, 96
      %v436 = vpop.permute.xlu0 %435
      %437 = vrot.lane.b32.xlu0 %v425, 88
      %v438 = vpop.permute.xlu0 %437
      %439 = vrot.lane.b32.xlu0 %v425, 80
      %v440 = vpop.permute.xlu0 %439
      %441 = vrot.lane.b32.xlu0 %v425, 72
      %v442 = vpop.permute.xlu0 %441
      %443 = vrot.lane.b32.xlu0 %v425, 64
      %v444 = vpop.permute.xlu0 %443
      %446 = vrot.lane.b32.xlu0 %v425, 56
      %v447 = vpop.permute.xlu0 %446
      %449 = vrot.lane.b32.xlu0 %v425, 48
      %v450 = vpop.permute.xlu0 %449
      %452 = vrot.lane.b32.xlu0 %v425, 40
      %v453 = vpop.permute.xlu0 %452
      %vm455 = vcmask 64512
      %v456 = vsel %vm455, %v425, 0
      %v458 = vsel %vm455, %v436, 0
      %460 = vmatprep.subr.mxu0 0.0
      %461 = vmatpush1.xpose.msra.mxu0 0.0
      %462 = vmatprep.subr.mxu0 0.0
      %463 = vmatpush1.xpose.msra.mxu0 0.0
      %464 = vmatprep.subr.mxu0 0.0
      %465 = vmatpush1.xpose.msra.mxu0 0.0
      %466 = vmatprep.subr.mxu0 0.0
      %467 = vmatpush1.xpose.msra.mxu0 0.0
      %468 = vmatprep.subr.mxu0 0.0
      %469 = vmatpush1.xpose.msra.mxu0 0.0
      %470 = vmatprep.subr.mxu0 0.0
      %471 = vmatpush1.xpose.msra.mxu0 0.0
      %472 = vmatprep.subr.mxu0 0.0
      %473 = vmatpush1.xpose.msra.mxu0 0.0
      %474 = vmatprep.subr.mxu0 0.0
      %475 = vmatpush1.xpose.msra.mxu0 0.0
      %476 = vmatprep.subr.mxu0 0.0
      %477 = vmatpush1.xpose.msra.mxu0 0.0
      %478 = vmatprep.subr.mxu0 0.0
      %479 = vmatpush1.xpose.msra.mxu0 0.0
      %480 = vmatprep.subr.mxu0 0.0
      %481 = vmatpush1.xpose.msra.mxu0 0.0
      %482 = vmatprep.subr.mxu0 0.0
      %483 = vmatpush1.xpose.msra.mxu0 0.0
      %484 = vmatprep.subr.mxu0 0.0
      %485 = vmatpush1.xpose.msra.mxu0 0.0
      %486 = vmatprep.subr.mxu0 0.0
      %487 = vmatpush1.xpose.msra.mxu0 0.0
      %488 = vmatprep.subr.mxu0 0.0
      %489 = vmatpush1.xpose.msra.mxu0 0.0
      %490 = vmatprep.subr.mxu0 0.0
      %491 = vmatpush1.xpose.msra.mxu0 %v458
      %492 = vmatprep.subr.mxu0 0.0
      %493 = vmatpush2.xpose.msra.mxu0 0.0
      %494 = vmatprep.subr.mxu0 0.0
      %495 = vmatpush2.xpose.msra.mxu0 0.0
      %496 = vmatprep.subr.mxu0 0.0
      %497 = vmatpush2.xpose.msra.mxu0 0.0
      %498 = vmatprep.subr.mxu0 0.0
      %499 = vmatpush2.xpose.msra.mxu0 0.0
      %500 = vmatprep.subr.mxu0 0.0
      %501 = vmatpush2.xpose.msra.mxu0 0.0
      %502 = vmatprep.subr.mxu0 0.0
      %503 = vmatpush2.xpose.msra.mxu0 0.0
      %504 = vmatprep.subr.mxu0 0.0
      %505 = vmatpush2.xpose.msra.mxu0 0.0
      %506 = vmatprep.subr.mxu0 0.0
      %507 = vmatpush2.xpose.msra.mxu0 0.0
      %508 = vmatprep.subr.mxu0 0.0
      %509 = vmatpush2.xpose.msra.mxu0 0.0
      %510 = vmatprep.subr.mxu0 0.0
      %511 = vmatpush2.xpose.msra.mxu0 0.0
      %512 = vmatprep.subr.mxu0 0.0
      %513 = vmatpush2.xpose.msra.mxu0 0.0
      %514 = vmatprep.subr.mxu0 0.0
      %515 = vmatpush2.xpose.msra.mxu0 0.0
      %516 = vmatprep.subr.mxu0 0.0
      %517 = vmatpush2.xpose.msra.mxu0 0.0
      %518 = vmatprep.subr.mxu0 0.0
      %519 = vmatpush2.xpose.msra.mxu0 0.0
      %520 = vmatprep.subr.mxu0 0.0
      %521 = vmatpush2.xpose.msra.mxu0 0.0
      %522 = vmatprep.subr.mxu0 0.0
      %523 = vmatpush2.xpose.msra.mxu0 0.0
      %524 = vmatprep.mubr.f32.mxu0 0.0
      %525 = vmatmul.mubr.f32.gmra.mxu0 %v456
      %v526 = vpop.f32.mrf.mxu0
      %v527 = vadd.f32 %v317, %v526
      %v528 = vpop.f32.mrf.mxu0
      %529 = vdwg.mxu0
      %v530 = vsel %vm455, %v430, 0
      %v532 = vsel %vm455, %v438, 0
      %534 = vmatprep.subr.mxu0 0.0
      %535 = vmatpush1.xpose.msra.mxu0 0.0
      %536 = vmatprep.subr.mxu0 0.0
      %537 = vmatpush1.xpose.msra.mxu0 0.0
      %538 = vmatprep.subr.mxu0 0.0
      %539 = vmatpush1.xpose.msra.mxu0 0.0
      %540 = vmatprep.subr.mxu0 0.0
      %541 = vmatpush1.xpose.msra.mxu0 0.0
      %542 = vmatprep.subr.mxu0 0.0
      %543 = vmatpush1.xpose.msra.mxu0 0.0
      %544 = vmatprep.subr.mxu0 0.0
      %545 = vmatpush1.xpose.msra.mxu0 0.0
      %546 = vmatprep.subr.mxu0 0.0
      %547 = vmatpush1.xpose.msra.mxu0 0.0
      %548 = vmatprep.subr.mxu0 0.0
      %549 = vmatpush1.xpose.msra.mxu0 0.0
      %550 = vmatprep.subr.mxu0 0.0
      %551 = vmatpush1.xpose.msra.mxu0 0.0
      %552 = vmatprep.subr.mxu0 0.0
      %553 = vmatpush1.xpose.msra.mxu0 0.0
      %554 = vmatprep.subr.mxu0 0.0
      %555 = vmatpush1.xpose.msra.mxu0 0.0
      %556 = vmatprep.subr.mxu0 0.0
      %557 = vmatpush1.xpose.msra.mxu0 0.0
      %558 = vmatprep.subr.mxu0 0.0
      %559 = vmatpush1.xpose.msra.mxu0 0.0
      %560 = vmatprep.subr.mxu0 0.0
      %561 = vmatpush1.xpose.msra.mxu0 0.0
      %562 = vmatprep.subr.mxu0 0.0
      %563 = vmatpush1.xpose.msra.mxu0 0.0
      %564 = vmatprep.subr.mxu0 0.0
      %565 = vmatpush1.xpose.msra.mxu0 %v532
      %566 = vmatprep.subr.mxu0 0.0
      %567 = vmatpush2.xpose.msra.mxu0 0.0
      %568 = vmatprep.subr.mxu0 0.0
      %569 = vmatpush2.xpose.msra.mxu0 0.0
      %570 = vmatprep.subr.mxu0 0.0
      %571 = vmatpush2.xpose.msra.mxu0 0.0
      %572 = vmatprep.subr.mxu0 0.0
      %573 = vmatpush2.xpose.msra.mxu0 0.0
      %574 = vmatprep.subr.mxu0 0.0
      %575 = vmatpush2.xpose.msra.mxu0 0.0
      %576 = vmatprep.subr.mxu0 0.0
      %577 = vmatpush2.xpose.msra.mxu0 0.0
      %578 = vmatprep.subr.mxu0 0.0
      %579 = vmatpush2.xpose.msra.mxu0 0.0
      %580 = vmatprep.subr.mxu0 0.0
      %581 = vmatpush2.xpose.msra.mxu0 0.0
      %582 = vmatprep.subr.mxu0 0.0
      %583 = vmatpush2.xpose.msra.mxu0 0.0
      %584 = vmatprep.subr.mxu0 0.0
      %585 = vmatpush2.xpose.msra.mxu0 0.0
      %586 = vmatprep.subr.mxu0 0.0
      %587 = vmatpush2.xpose.msra.mxu0 0.0
      %588 = vmatprep.subr.mxu0 0.0
      %589 = vmatpush2.xpose.msra.mxu0 0.0
      %590 = vmatprep.subr.mxu0 0.0
      %591 = vmatpush2.xpose.msra.mxu0 0.0
      %592 = vmatprep.subr.mxu0 0.0
      %593 = vmatpush2.xpose.msra.mxu0 0.0
      %594 = vmatprep.subr.mxu0 0.0
      %595 = vmatpush2.xpose.msra.mxu0 0.0
      %596 = vmatprep.subr.mxu0 0.0
      %597 = vmatpush2.xpose.msra.mxu0 0.0
      %598 = vmatprep.mubr.f32.mxu0 0.0
      %599 = vmatmul.mubr.f32.gmra.mxu0 %v530
      %v600 = vpop.f32.mrf.mxu0
      %v601 = vadd.f32 %v317, %v600
      %v602 = vpop.f32.mrf.mxu0
      %603 = vdwg.mxu0
      %v604 = vsel %vm455, %v432, 0
      %v606 = vsel %vm455, %v440, 0
      %608 = vmatprep.subr.mxu0 0.0
      %609 = vmatpush1.xpose.msra.mxu0 0.0
      %610 = vmatprep.subr.mxu0 0.0
      %611 = vmatpush1.xpose.msra.mxu0 0.0
      %612 = vmatprep.subr.mxu0 0.0
      %613 = vmatpush1.xpose.msra.mxu0 0.0
      %614 = vmatprep.subr.mxu0 0.0
      %615 = vmatpush1.xpose.msra.mxu0 0.0
      %616 = vmatprep.subr.mxu0 0.0
      %617 = vmatpush1.xpose.msra.mxu0 0.0
      %618 = vmatprep.subr.mxu0 0.0
      %619 = vmatpush1.xpose.msra.mxu0 0.0
      %620 = vmatprep.subr.mxu0 0.0
      %621 = vmatpush1.xpose.msra.mxu0 0.0
      %622 = vmatprep.subr.mxu0 0.0
      %623 = vmatpush1.xpose.msra.mxu0 0.0
      %624 = vmatprep.subr.mxu0 0.0
      %625 = vmatpush1.xpose.msra.mxu0 0.0
      %626 = vmatprep.subr.mxu0 0.0
      %627 = vmatpush1.xpose.msra.mxu0 0.0
      %628 = vmatprep.subr.mxu0 0.0
      %629 = vmatpush1.xpose.msra.mxu0 0.0
      %630 = vmatprep.subr.mxu0 0.0
      %631 = vmatpush1.xpose.msra.mxu0 0.0
      %632 = vmatprep.subr.mxu0 0.0
      %633 = vmatpush1.xpose.msra.mxu0 0.0
      %634 = vmatprep.subr.mxu0 0.0
      %635 = vmatpush1.xpose.msra.mxu0 0.0
      %636 = vmatprep.subr.mxu0 0.0
      %637 = vmatpush1.xpose.msra.mxu0 0.0
      %638 = vmatprep.subr.mxu0 0.0
      %639 = vmatpush1.xpose.msra.mxu0 %v606
      %640 = vmatprep.subr.mxu0 0.0
      %641 = vmatpush2.xpose.msra.mxu0 0.0
      %642 = vmatprep.subr.mxu0 0.0
      %643 = vmatpush2.xpose.msra.mxu0 0.0
      %644 = vmatprep.subr.mxu0 0.0
      %645 = vmatpush2.xpose.msra.mxu0 0.0
      %646 = vmatprep.subr.mxu0 0.0
      %647 = vmatpush2.xpose.msra.mxu0 0.0
      %648 = vmatprep.subr.mxu0 0.0
      %649 = vmatpush2.xpose.msra.mxu0 0.0
      %650 = vmatprep.subr.mxu0 0.0
      %651 = vmatpush2.xpose.msra.mxu0 0.0
      %652 = vmatprep.subr.mxu0 0.0
      %653 = vmatpush2.xpose.msra.mxu0 0.0
      %654 = vmatprep.subr.mxu0 0.0
      %655 = vmatpush2.xpose.msra.mxu0 0.0
      %656 = vmatprep.subr.mxu0 0.0
      %657 = vmatpush2.xpose.msra.mxu0 0.0
      %658 = vmatprep.subr.mxu0 0.0
      %659 = vmatpush2.xpose.msra.mxu0 0.0
      %660 = vmatprep.subr.mxu0 0.0
      %661 = vmatpush2.xpose.msra.mxu0 0.0
      %662 = vmatprep.subr.mxu0 0.0
      %663 = vmatpush2.xpose.msra.mxu0 0.0
      %664 = vmatprep.subr.mxu0 0.0
      %665 = vmatpush2.xpose.msra.mxu0 0.0
      %666 = vmatprep.subr.mxu0 0.0
      %667 = vmatpush2.xpose.msra.mxu0 0.0
      %668 = vmatprep.subr.mxu0 0.0
      %669 = vmatpush2.xpose.msra.mxu0 0.0
      %670 = vmatprep.subr.mxu0 0.0
      %671 = vmatpush2.xpose.msra.mxu0 0.0
      %672 = vmatprep.mubr.f32.mxu0 0.0
      %673 = vmatmul.mubr.f32.gmra.mxu0 %v604
      %v674 = vpop.f32.mrf.mxu0
      %v675 = vadd.f32 %v317, %v674
      %v676 = vpop.f32.mrf.mxu0
      %677 = vdwg.mxu0
      %v678 = vsel %vm455, %v434, 0
      %v680 = vsel %vm455, %v442, 0
      %682 = vmatprep.subr.mxu0 0.0
      %683 = vmatpush1.xpose.msra.mxu0 0.0
      %684 = vmatprep.subr.mxu0 0.0
      %685 = vmatpush1.xpose.msra.mxu0 0.0
      %686 = vmatprep.subr.mxu0 0.0
      %687 = vmatpush1.xpose.msra.mxu0 0.0
      %688 = vmatprep.subr.mxu0 0.0
      %689 = vmatpush1.xpose.msra.mxu0 0.0
      %690 = vmatprep.subr.mxu0 0.0
      %691 = vmatpush1.xpose.msra.mxu0 0.0
      %692 = vmatprep.subr.mxu0 0.0
      %693 = vmatpush1.xpose.msra.mxu0 0.0
      %694 = vmatprep.subr.mxu0 0.0
      %695 = vmatpush1.xpose.msra.mxu0 0.0
      %696 = vmatprep.subr.mxu0 0.0
      %697 = vmatpush1.xpose.msra.mxu0 0.0
      %698 = vmatprep.subr.mxu0 0.0
      %699 = vmatpush1.xpose.msra.mxu0 0.0
      %700 = vmatprep.subr.mxu0 0.0
      %701 = vmatpush1.xpose.msra.mxu0 0.0
      %702 = vmatprep.subr.mxu0 0.0
      %703 = vmatpush1.xpose.msra.mxu0 0.0
      %704 = vmatprep.subr.mxu0 0.0
      %705 = vmatpush1.xpose.msra.mxu0 0.0
      %706 = vmatprep.subr.mxu0 0.0
      %707 = vmatpush1.xpose.msra.mxu0 0.0
      %708 = vmatprep.subr.mxu0 0.0
      %709 = vmatpush1.xpose.msra.mxu0 0.0
      %710 = vmatprep.subr.mxu0 0.0
      %711 = vmatpush1.xpose.msra.mxu0 0.0
      %712 = vmatprep.subr.mxu0 0.0
      %713 = vmatpush1.xpose.msra.mxu0 %v680
      %714 = vmatprep.subr.mxu0 0.0
      %715 = vmatpush2.xpose.msra.mxu0 0.0
      %716 = vmatprep.subr.mxu0 0.0
      %717 = vmatpush2.xpose.msra.mxu0 0.0
      %718 = vmatprep.subr.mxu0 0.0
      %719 = vmatpush2.xpose.msra.mxu0 0.0
      %720 = vmatprep.subr.mxu0 0.0
      %721 = vmatpush2.xpose.msra.mxu0 0.0
      %722 = vmatprep.subr.mxu0 0.0
      %723 = vmatpush2.xpose.msra.mxu0 0.0
      %724 = vmatprep.subr.mxu0 0.0
      %725 = vmatpush2.xpose.msra.mxu0 0.0
      %726 = vmatprep.subr.mxu0 0.0
      %727 = vmatpush2.xpose.msra.mxu0 0.0
      %728 = vmatprep.subr.mxu0 0.0
      %729 = vmatpush2.xpose.msra.mxu0 0.0
      %730 = vmatprep.subr.mxu0 0.0
      %731 = vmatpush2.xpose.msra.mxu0 0.0
      %732 = vmatprep.subr.mxu0 0.0
      %733 = vmatpush2.xpose.msra.mxu0 0.0
      %734 = vmatprep.subr.mxu0 0.0
      %735 = vmatpush2.xpose.msra.mxu0 0.0
      %736 = vmatprep.subr.mxu0 0.0
      %737 = vmatpush2.xpose.msra.mxu0 0.0
      %738 = vmatprep.subr.mxu0 0.0
      %739 = vmatpush2.xpose.msra.mxu0 0.0
      %740 = vmatprep.subr.mxu0 0.0
      %741 = vmatpush2.xpose.msra.mxu0 0.0
      %742 = vmatprep.subr.mxu0 0.0
      %743 = vmatpush2.xpose.msra.mxu0 0.0
      %744 = vmatprep.subr.mxu0 0.0
      %745 = vmatpush2.xpose.msra.mxu0 0.0
      %746 = vmatprep.mubr.f32.mxu0 0.0
      %747 = vmatmul.mubr.f32.gmra.mxu0 %v678
      %v748 = vpop.f32.mrf.mxu0
      %v749 = vadd.f32 %v317, %v748
      %v750 = vpop.f32.mrf.mxu0
      %751 = vdwg.mxu0
      %v752 = vsel %vm455, %v527, -inf
      %753 = vmax.xlane.f32.xlu0 %v752
      %v754 = vpop.xlane.xlu0 %753
      %v755 = vsel %vm455, %v601, -inf
      %756 = vmax.xlane.f32.xlu0 %v755
      %v757 = vpop.xlane.xlu0 %756
      %v758 = vsel %vm455, %v675, -inf
      %759 = vmax.xlane.f32.xlu0 %v758
      %v760 = vpop.xlane.xlu0 %759
      %v761 = vsel %vm455, %v749, -inf
      %762 = vmax.xlane.f32.xlu0 %v761
      %v763 = vpop.xlane.xlu0 %762
      %v764 = vsub.f32 %v527, %v754
      %v765 = vsub.f32 %v601, %v757
      %v766 = vsub.f32 %v675, %v760
      %v767 = vsub.f32 %v749, %v763
      %v768 = vmul.f32 %v764, 1.442695
      %v769 = vpow.pop %v768
      %v770 = vmul.f32 %v765, 1.442695
      %v771 = vpow.pop %v770
      %v772 = vmul.f32 %v766, 1.442695
      %v773 = vpow.pop %v772
      %v774 = vmul.f32 %v767, 1.442695
      %v775 = vpow.pop %v774
      %v776 = vsel %vm455, %v769, 0.0
      %777 = vadd.xlane.f32.xlu0 %v776
      %v778 = vpop.xlane.xlu0 %777
      %v779 = vsel %vm455, %v771, 0.0
      %780 = vadd.xlane.f32.xlu0 %v779
      %v781 = vpop.xlane.xlu0 %780
      %v782 = vsel %vm455, %v773, 0.0
      %783 = vadd.xlane.f32.xlu0 %v782
      %v784 = vpop.xlane.xlu0 %783
      %v785 = vsel %vm455, %v775, 0.0
      %786 = vadd.xlane.f32.xlu0 %v785
      %v787 = vpop.xlane.xlu0 %786
      %v788 = vrcp.pop %v778
      %v789 = vrcp.pop %v781
      %v790 = vrcp.pop %v784
      %v791 = vrcp.pop %v787
      %v792 = vmul.f32 %v769, %v788
      %v793 = vmul.f32 %v771, %v789
      %v794 = vmul.f32 %v773, %v790
      %v795 = vmul.f32 %v775, %v791
      %v797 = vsel %vm455, %v792, 0
      %799 = vmatprep.subr.mxu0 0.0
      %800 = vmatpush1.msra.mxu0 0.0
      %801 = vmatprep.subr.mxu0 0.0
      %802 = vmatpush1.msra.mxu0 0.0
      %803 = vmatprep.subr.mxu0 0.0
      %804 = vmatpush1.msra.mxu0 0.0
      %805 = vmatprep.subr.mxu0 0.0
      %806 = vmatpush1.msra.mxu0 0.0
      %807 = vmatprep.subr.mxu0 0.0
      %808 = vmatpush1.msra.mxu0 0.0
      %809 = vmatprep.subr.mxu0 0.0
      %810 = vmatpush1.msra.mxu0 0.0
      %811 = vmatprep.subr.mxu0 0.0
      %812 = vmatpush1.msra.mxu0 0.0
      %813 = vmatprep.subr.mxu0 0.0
      %814 = vmatpush1.msra.mxu0 0.0
      %815 = vmatprep.subr.mxu0 0.0
      %816 = vmatpush1.msra.mxu0 0.0
      %817 = vmatprep.subr.mxu0 0.0
      %818 = vmatpush1.msra.mxu0 0.0
      %819 = vmatprep.subr.mxu0 0.0
      %820 = vmatpush1.msra.mxu0 0.0
      %821 = vmatprep.subr.mxu0 0.0
      %822 = vmatpush1.msra.mxu0 0.0
      %823 = vmatprep.subr.mxu0 0.0
      %824 = vmatpush1.msra.mxu0 0.0
      %825 = vmatprep.subr.mxu0 0.0
      %826 = vmatpush1.msra.mxu0 0.0
      %827 = vmatprep.subr.mxu0 0.0
      %828 = vmatpush1.msra.mxu0 0.0
      %829 = vmatprep.subr.mxu0 0.0
      %830 = vmatpush1.msra.mxu0 %v444
      %831 = vmatprep.subr.mxu0 0.0
      %832 = vmatpush2.msra.mxu0 0.0
      %833 = vmatprep.subr.mxu0 0.0
      %834 = vmatpush2.msra.mxu0 0.0
      %835 = vmatprep.subr.mxu0 0.0
      %836 = vmatpush2.msra.mxu0 0.0
      %837 = vmatprep.subr.mxu0 0.0
      %838 = vmatpush2.msra.mxu0 0.0
      %839 = vmatprep.subr.mxu0 0.0
      %840 = vmatpush2.msra.mxu0 0.0
      %841 = vmatprep.subr.mxu0 0.0
      %842 = vmatpush2.msra.mxu0 0.0
      %843 = vmatprep.subr.mxu0 0.0
      %844 = vmatpush2.msra.mxu0 0.0
      %845 = vmatprep.subr.mxu0 0.0
      %846 = vmatpush2.msra.mxu0 0.0
      %847 = vmatprep.subr.mxu0 0.0
      %848 = vmatpush2.msra.mxu0 0.0
      %849 = vmatprep.subr.mxu0 0.0
      %850 = vmatpush2.msra.mxu0 0.0
      %851 = vmatprep.subr.mxu0 0.0
      %852 = vmatpush2.msra.mxu0 0.0
      %853 = vmatprep.subr.mxu0 0.0
      %854 = vmatpush2.msra.mxu0 0.0
      %855 = vmatprep.subr.mxu0 0.0
      %856 = vmatpush2.msra.mxu0 0.0
      %857 = vmatprep.subr.mxu0 0.0
      %858 = vmatpush2.msra.mxu0 0.0
      %859 = vmatprep.subr.mxu0 0.0
      %860 = vmatpush2.msra.mxu0 0.0
      %861 = vmatprep.subr.mxu0 0.0
      %862 = vmatpush2.msra.mxu0 0.0
      %863 = vmatprep.mubr.f32.mxu0 0.0
      %864 = vmatmul.mubr.f32.gmra.mxu0 %v797
      %v865 = vpop.f32.mrf.mxu0
      %v866 = vadd.f32 0.0, %v865
      %v867 = vpop.f32.mrf.mxu0
      %868 = vdwg.mxu0
      %v870 = vsel %vm455, %v793, 0
      %872 = vmatprep.subr.mxu0 0.0
      %873 = vmatpush1.msra.mxu0 0.0
      %874 = vmatprep.subr.mxu0 0.0
      %875 = vmatpush1.msra.mxu0 0.0
      %876 = vmatprep.subr.mxu0 0.0
      %877 = vmatpush1.msra.mxu0 0.0
      %878 = vmatprep.subr.mxu0 0.0
      %879 = vmatpush1.msra.mxu0 0.0
      %880 = vmatprep.subr.mxu0 0.0
      %881 = vmatpush1.msra.mxu0 0.0
      %882 = vmatprep.subr.mxu0 0.0
      %883 = vmatpush1.msra.mxu0 0.0
      %884 = vmatprep.subr.mxu0 0.0
      %885 = vmatpush1.msra.mxu0 0.0
      %886 = vmatprep.subr.mxu0 0.0
      %887 = vmatpush1.msra.mxu0 0.0
      %888 = vmatprep.subr.mxu0 0.0
      %889 = vmatpush1.msra.mxu0 0.0
      %890 = vmatprep.subr.mxu0 0.0
      %891 = vmatpush1.msra.mxu0 0.0
      %892 = vmatprep.subr.mxu0 0.0
      %893 = vmatpush1.msra.mxu0 0.0
      %894 = vmatprep.subr.mxu0 0.0
      %895 = vmatpush1.msra.mxu0 0.0
      %896 = vmatprep.subr.mxu0 0.0
      %897 = vmatpush1.msra.mxu0 0.0
      %898 = vmatprep.subr.mxu0 0.0
      %899 = vmatpush1.msra.mxu0 0.0
      %900 = vmatprep.subr.mxu0 0.0
      %901 = vmatpush1.msra.mxu0 0.0
      %902 = vmatprep.subr.mxu0 0.0
      %903 = vmatpush1.msra.mxu0 %v447
      %904 = vmatprep.subr.mxu0 0.0
      %905 = vmatpush2.msra.mxu0 0.0
      %906 = vmatprep.subr.mxu0 0.0
      %907 = vmatpush2.msra.mxu0 0.0
      %908 = vmatprep.subr.mxu0 0.0
      %909 = vmatpush2.msra.mxu0 0.0
      %910 = vmatprep.subr.mxu0 0.0
      %911 = vmatpush2.msra.mxu0 0.0
      %912 = vmatprep.subr.mxu0 0.0
      %913 = vmatpush2.msra.mxu0 0.0
      %914 = vmatprep.subr.mxu0 0.0
      %915 = vmatpush2.msra.mxu0 0.0
      %916 = vmatprep.subr.mxu0 0.0
      %917 = vmatpush2.msra.mxu0 0.0
      %918 = vmatprep.subr.mxu0 0.0
      %919 = vmatpush2.msra.mxu0 0.0
      %920 = vmatprep.subr.mxu0 0.0
      %921 = vmatpush2.msra.mxu0 0.0
      %922 = vmatprep.subr.mxu0 0.0
      %923 = vmatpush2.msra.mxu0 0.0
      %924 = vmatprep.subr.mxu0 0.0
      %925 = vmatpush2.msra.mxu0 0.0
      %926 = vmatprep.subr.mxu0 0.0
      %927 = vmatpush2.msra.mxu0 0.0
      %928 = vmatprep.subr.mxu0 0.0
      %929 = vmatpush2.msra.mxu0 0.0
      %930 = vmatprep.subr.mxu0 0.0
      %931 = vmatpush2.msra.mxu0 0.0
      %932 = vmatprep.subr.mxu0 0.0
      %933 = vmatpush2.msra.mxu0 0.0
      %934 = vmatprep.subr.mxu0 0.0
      %935 = vmatpush2.msra.mxu0 0.0
      %936 = vmatprep.mubr.f32.mxu0 0.0
      %937 = vmatmul.mubr.f32.gmra.mxu0 %v870
      %v938 = vpop.f32.mrf.mxu0
      %v939 = vadd.f32 0.0, %v938
      %v940 = vpop.f32.mrf.mxu0
      %941 = vdwg.mxu0
      %v943 = vsel %vm455, %v794, 0
      %945 = vmatprep.subr.mxu0 0.0
      %946 = vmatpush1.msra.mxu0 0.0
      %947 = vmatprep.subr.mxu0 0.0
      %948 = vmatpush1.msra.mxu0 0.0
      %949 = vmatprep.subr.mxu0 0.0
      %950 = vmatpush1.msra.mxu0 0.0
      %951 = vmatprep.subr.mxu0 0.0
      %952 = vmatpush1.msra.mxu0 0.0
      %953 = vmatprep.subr.mxu0 0.0
      %954 = vmatpush1.msra.mxu0 0.0
      %955 = vmatprep.subr.mxu0 0.0
      %956 = vmatpush1.msra.mxu0 0.0
      %957 = vmatprep.subr.mxu0 0.0
      %958 = vmatpush1.msra.mxu0 0.0
      %959 = vmatprep.subr.mxu0 0.0
      %960 = vmatpush1.msra.mxu0 0.0
      %961 = vmatprep.subr.mxu0 0.0
      %962 = vmatpush1.msra.mxu0 0.0
      %963 = vmatprep.subr.mxu0 0.0
      %964 = vmatpush1.msra.mxu0 0.0
      %965 = vmatprep.subr.mxu0 0.0
      %966 = vmatpush1.msra.mxu0 0.0
      %967 = vmatprep.subr.mxu0 0.0
      %968 = vmatpush1.msra.mxu0 0.0
      %969 = vmatprep.subr.mxu0 0.0
      %970 = vmatpush1.msra.mxu0 0.0
      %971 = vmatprep.subr.mxu0 0.0
      %972 = vmatpush1.msra.mxu0 0.0
      %973 = vmatprep.subr.mxu0 0.0
      %974 = vmatpush1.msra.mxu0 0.0
      %975 = vmatprep.subr.mxu0 0.0
      %976 = vmatpush1.msra.mxu0 %v450
      %977 = vmatprep.subr.mxu0 0.0
      %978 = vmatpush2.msra.mxu0 0.0
      %979 = vmatprep.subr.mxu0 0.0
      %980 = vmatpush2.msra.mxu0 0.0
      %981 = vmatprep.subr.mxu0 0.0
      %982 = vmatpush2.msra.mxu0 0.0
      %983 = vmatprep.subr.mxu0 0.0
      %984 = vmatpush2.msra.mxu0 0.0
      %985 = vmatprep.subr.mxu0 0.0
      %986 = vmatpush2.msra.mxu0 0.0
      %987 = vmatprep.subr.mxu0 0.0
      %988 = vmatpush2.msra.mxu0 0.0
      %989 = vmatprep.subr.mxu0 0.0
      %990 = vmatpush2.msra.mxu0 0.0
      %991 = vmatprep.subr.mxu0 0.0
      %992 = vmatpush2.msra.mxu0 0.0
      %993 = vmatprep.subr.mxu0 0.0
      %994 = vmatpush2.msra.mxu0 0.0
      %995 = vmatprep.subr.mxu0 0.0
      %996 = vmatpush2.msra.mxu0 0.0
      %997 = vmatprep.subr.mxu0 0.0
      %998 = vmatpush2.msra.mxu0 0.0
      %999 = vmatprep.subr.mxu0 0.0
      %1000 = vmatpush2.msra.mxu0 0.0
      %1001 = vmatprep.subr.mxu0 0.0
      %1002 = vmatpush2.msra.mxu0 0.0
      %1003 = vmatprep.subr.mxu0 0.0
      %1004 = vmatpush2.msra.mxu0 0.0
      %1005 = vmatprep.subr.mxu0 0.0
      %1006 = vmatpush2.msra.mxu0 0.0
      %1007 = vmatprep.subr.mxu0 0.0
      %1008 = vmatpush2.msra.mxu0 0.0
      %1009 = vmatprep.mubr.f32.mxu0 0.0
      %1010 = vmatmul.mubr.f32.gmra.mxu0 %v943
      %v1011 = vpop.f32.mrf.mxu0
      %v1012 = vadd.f32 0.0, %v1011
      %v1013 = vpop.f32.mrf.mxu0
      %1014 = vdwg.mxu0
      %v1016 = vsel %vm455, %v795, 0
      %1018 = vmatprep.subr.mxu0 0.0
      %1019 = vmatpush1.msra.mxu0 0.0
      %1020 = vmatprep.subr.mxu0 0.0
      %1021 = vmatpush1.msra.mxu0 0.0
      %1022 = vmatprep.subr.mxu0 0.0
      %1023 = vmatpush1.msra.mxu0 0.0
      %1024 = vmatprep.subr.mxu0 0.0
      %1025 = vmatpush1.msra.mxu0 0.0
      %1026 = vmatprep.subr.mxu0 0.0
      %1027 = vmatpush1.msra.mxu0 0.0
      %1028 = vmatprep.subr.mxu0 0.0
      %1029 = vmatpush1.msra.mxu0 0.0
      %1030 = vmatprep.subr.mxu0 0.0
      %1031 = vmatpush1.msra.mxu0 0.0
      %1032 = vmatprep.subr.mxu0 0.0
      %1033 = vmatpush1.msra.mxu0 0.0
      %1034 = vmatprep.subr.mxu0 0.0
      %1035 = vmatpush1.msra.mxu0 0.0
      %1036 = vmatprep.subr.mxu0 0.0
      %1037 = vmatpush1.msra.mxu0 0.0
      %1038 = vmatprep.subr.mxu0 0.0
      %1039 = vmatpush1.msra.mxu0 0.0
      %1040 = vmatprep.subr.mxu0 0.0
      %1041 = vmatpush1.msra.mxu0 0.0
      %1042 = vmatprep.subr.mxu0 0.0
      %1043 = vmatpush1.msra.mxu0 0.0
      %1044 = vmatprep.subr.mxu0 0.0
      %1045 = vmatpush1.msra.mxu0 0.0
      %1046 = vmatprep.subr.mxu0 0.0
      %1047 = vmatpush1.msra.mxu0 0.0
      %1048 = vmatprep.subr.mxu0 0.0
      %1049 = vmatpush1.msra.mxu0 %v453
      %1050 = vmatprep.subr.mxu0 0.0
      %1051 = vmatpush2.msra.mxu0 0.0
      %1052 = vmatprep.subr.mxu0 0.0
      %1053 = vmatpush2.msra.mxu0 0.0
      %1054 = vmatprep.subr.mxu0 0.0
      %1055 = vmatpush2.msra.mxu0 0.0
      %1056 = vmatprep.subr.mxu0 0.0
      %1057 = vmatpush2.msra.mxu0 0.0
      %1058 = vmatprep.subr.mxu0 0.0
      %1059 = vmatpush2.msra.mxu0 0.0
      %1060 = vmatprep.subr.mxu0 0.0
      %1061 = vmatpush2.msra.mxu0 0.0
      %1062 = vmatprep.subr.mxu0 0.0
      %1063 = vmatpush2.msra.mxu0 0.0
      %1064 = vmatprep.subr.mxu0 0.0
      %1065 = vmatpush2.msra.mxu0 0.0
      %1066 = vmatprep.subr.mxu0 0.0
      %1067 = vmatpush2.msra.mxu0 0.0
      %1068 = vmatprep.subr.mxu0 0.0
      %1069 = vmatpush2.msra.mxu0 0.0
      %1070 = vmatprep.subr.mxu0 0.0
      %1071 = vmatpush2.msra.mxu0 0.0
      %1072 = vmatprep.subr.mxu0 0.0
      %1073 = vmatpush2.msra.mxu0 0.0
      %1074 = vmatprep.subr.mxu0 0.0
      %1075 = vmatpush2.msra.mxu0 0.0
      %1076 = vmatprep.subr.mxu0 0.0
      %1077 = vmatpush2.msra.mxu0 0.0
      %1078 = vmatprep.subr.mxu0 0.0
      %1079 = vmatpush2.msra.mxu0 0.0
      %1080 = vmatprep.subr.mxu0 0.0
      %1081 = vmatpush2.msra.mxu0 0.0
      %1082 = vmatprep.mubr.f32.mxu0 0.0
      %1083 = vmatmul.mubr.f32.gmra.mxu0 %v1016
      %v1084 = vpop.f32.mrf.mxu0
      %v1085 = vadd.f32 0.0, %v1084
      %v1086 = vpop.f32.mrf.mxu0
      %1087 = vdwg.mxu0
      %1089 = vrot.lane.b32.xlu0 %v939, 8
      %v1090 = vpop.permute.xlu0 %1089
      %1093 = vrot.lane.b32.xlu0 %v1012, 16
      %v1094 = vpop.permute.xlu0 %1093
      %1097 = vrot.lane.b32.xlu0 %v1085, 24
      %v1098 = vpop.permute.xlu0 %1097
      %v1100 = vsel %vm455, %v866, %v1090
      %vm1101 = vcmask 130048
      %v1102 = vsel %vm1101, %v1100, %v1094
      %vm1103 = vcmask 195584
      %v1104 = vsel %vm1103, %v1102, %v1098
      %v1105 = vld [vmem:[%s5] sm:$0xff]
      %v1106 = vld [vmem:[%s5 + $0x8] sm:$0xff]
      %v1107 = vld [vmem:[%s5 + $0x10] sm:$0xff]
      %v1108 = vld [vmem:[%s5 + $0x18] sm:$0xff]
      %v1110 = vsel %vm319, %v1104, 0
      %1112 = vmatprep.subr.mxu0 0.0
      %1113 = vmatpush1.msra.mxu0 0.0
      %1114 = vmatprep.subr.mxu0 0.0
      %1115 = vmatpush1.msra.mxu0 0.0
      %1116 = vmatprep.subr.mxu0 0.0
      %1117 = vmatpush1.msra.mxu0 0.0
      %1118 = vmatprep.subr.mxu0 0.0
      %1119 = vmatpush1.msra.mxu0 0.0
      %1120 = vmatprep.subr.mxu0 0.0
      %1121 = vmatpush1.msra.mxu0 0.0
      %1122 = vmatprep.subr.mxu0 0.0
      %1123 = vmatpush1.msra.mxu0 0.0
      %1124 = vmatprep.subr.mxu0 0.0
      %1125 = vmatpush1.msra.mxu0 0.0
      %1126 = vmatprep.subr.mxu0 0.0
      %1127 = vmatpush1.msra.mxu0 0.0
      %1128 = vmatprep.subr.mxu0 0.0
      %1129 = vmatpush1.msra.mxu0 0.0
      %1130 = vmatprep.subr.mxu0 0.0
      %1131 = vmatpush1.msra.mxu0 0.0
      %1132 = vmatprep.subr.mxu0 0.0
      %1133 = vmatpush1.msra.mxu0 0.0
      %1134 = vmatprep.subr.mxu0 0.0
      %1135 = vmatpush1.msra.mxu0 0.0
      %1136 = vmatprep.subr.mxu0 0.0
      %1137 = vmatpush1.msra.mxu0 %v1108
      %1138 = vmatprep.subr.mxu0 0.0
      %1139 = vmatpush1.msra.mxu0 %v1107
      %1140 = vmatprep.subr.mxu0 0.0
      %1141 = vmatpush1.msra.mxu0 %v1106
      %1142 = vmatprep.subr.mxu0 0.0
      %1143 = vmatpush1.msra.mxu0 %v1105
      %1144 = vmatprep.subr.mxu0 0.0
      %1145 = vmatpush2.msra.mxu0 0.0
      %1146 = vmatprep.subr.mxu0 0.0
      %1147 = vmatpush2.msra.mxu0 0.0
      %1148 = vmatprep.subr.mxu0 0.0
      %1149 = vmatpush2.msra.mxu0 0.0
      %1150 = vmatprep.subr.mxu0 0.0
      %1151 = vmatpush2.msra.mxu0 0.0
      %1152 = vmatprep.subr.mxu0 0.0
      %1153 = vmatpush2.msra.mxu0 0.0
      %1154 = vmatprep.subr.mxu0 0.0
      %1155 = vmatpush2.msra.mxu0 0.0
      %1156 = vmatprep.subr.mxu0 0.0
      %1157 = vmatpush2.msra.mxu0 0.0
      %1158 = vmatprep.subr.mxu0 0.0
      %1159 = vmatpush2.msra.mxu0 0.0
      %1160 = vmatprep.subr.mxu0 0.0
      %1161 = vmatpush2.msra.mxu0 0.0
      %1162 = vmatprep.subr.mxu0 0.0
      %1163 = vmatpush2.msra.mxu0 0.0
      %1164 = vmatprep.subr.mxu0 0.0
      %1165 = vmatpush2.msra.mxu0 0.0
      %1166 = vmatprep.subr.mxu0 0.0
      %1167 = vmatpush2.msra.mxu0 0.0
      %1168 = vmatprep.subr.mxu0 0.0
      %1169 = vmatpush2.msra.mxu0 0.0
      %1170 = vmatprep.subr.mxu0 0.0
      %1171 = vmatpush2.msra.mxu0 0.0
      %1172 = vmatprep.subr.mxu0 0.0
      %1173 = vmatpush2.msra.mxu0 0.0
      %1174 = vmatprep.subr.mxu0 0.0
      %1175 = vmatpush2.msra.mxu0 0.0
      %1176 = vmatprep.mubr.f32.mxu0 0.0
      %1177 = vmatmul.mubr.f32.gmra.mxu0 %v1110
      %v1178 = vpop.f32.mrf.mxu0
      %v1179 = vadd.f32 0.0, %v1178
      %v1180 = vpop.f32.mrf.mxu0
      %1181 = vdwg.mxu0
      %v1182 = vadd.f32 %v311, %v1179
      %1183 = vrot.lane.b32.xlu0 %v318, 32
      %v1184 = vpop.permute.xlu0 %1183
      %v1185 = vrot.slane %v1184, 1
      %v1186 = vlaneseq
      %v1187 = vshrl.u32 %v1186, 7
      %v1188 = vsub.s32 0, %v1187
      %v1189 = vrot.slane %v1185, %v1188
      %v1191 = vadd.f32 %v1182, %v1189
      %v1192 = vsel %vm319, %v1191, 0.0
      %1193 = vadd.xlane.f32.xlu0 %v1192
      %v1194 = vpop.xlane.xlu0 %1193
      %v1195 = vmul.f32 %v1194, %v323
      %v1196 = vsub.f32 %v1191, %v1195
      %v1197 = vmul.f32 %v1196, %v1196
      %v1198 = vsel %vm319, %v1197, 0.0
      %1199 = vadd.xlane.f32.xlu0 %v1198
      %v1200 = vpop.xlane.xlu0 %1199
      %v1201 = vmul.f32 %v1200, %v323
      %v1202 = vadd.f32 %v1201, 1e-05
      %v1203 = vrsqrt.pop %v1202
      %v1204 = vmul.f32 %v1196, %v1203
      %1205 = vrot.lane.b32.xlu0 %v338, 64
      %v1206 = vpop.permute.xlu0 %1205
      %v1208 = vmul.f32 %v1204, %v1206
      %1209 = vrot.lane.b32.xlu0 %v338, 32
      %v1210 = vpop.permute.xlu0 %1209
      %v1212 = vadd.f32 %v1208, %v1210
      %v1213 = vld [vmem:[%s6] sm:$0xff]
      %v1214 = vld [vmem:[%s6 + $0x8] sm:$0xff]
      %v1215 = vld [vmem:[%s6 + $0x10] sm:$0xff]
      %v1216 = vld [vmem:[%s6 + $0x18] sm:$0xff]
      %v1217 = vrot.slane %v318, 2
      %v1218 = vlaneseq
      %v1219 = vshrl.u32 %v1218, 7
      %v1220 = vsub.s32 0, %v1219
      %v1221 = vrot.slane %v1217, %v1220
      %v1224 = vsel %vm319, %v1212, 0
      %1226 = vmatprep.subr.mxu0 0.0
      %1227 = vmatpush1.msra.mxu0 0.0
      %1228 = vmatprep.subr.mxu0 0.0
      %1229 = vmatpush1.msra.mxu0 0.0
      %1230 = vmatprep.subr.mxu0 0.0
      %1231 = vmatpush1.msra.mxu0 0.0
      %1232 = vmatprep.subr.mxu0 0.0
      %1233 = vmatpush1.msra.mxu0 0.0
      %1234 = vmatprep.subr.mxu0 0.0
      %1235 = vmatpush1.msra.mxu0 0.0
      %1236 = vmatprep.subr.mxu0 0.0
      %1237 = vmatpush1.msra.mxu0 0.0
      %1238 = vmatprep.subr.mxu0 0.0
      %1239 = vmatpush1.msra.mxu0 0.0
      %1240 = vmatprep.subr.mxu0 0.0
      %1241 = vmatpush1.msra.mxu0 0.0
      %1242 = vmatprep.subr.mxu0 0.0
      %1243 = vmatpush1.msra.mxu0 0.0
      %1244 = vmatprep.subr.mxu0 0.0
      %1245 = vmatpush1.msra.mxu0 0.0
      %1246 = vmatprep.subr.mxu0 0.0
      %1247 = vmatpush1.msra.mxu0 0.0
      %1248 = vmatprep.subr.mxu0 0.0
      %1249 = vmatpush1.msra.mxu0 0.0
      %1250 = vmatprep.subr.mxu0 0.0
      %1251 = vmatpush1.msra.mxu0 %v1216
      %1252 = vmatprep.subr.mxu0 0.0
      %1253 = vmatpush1.msra.mxu0 %v1215
      %1254 = vmatprep.subr.mxu0 0.0
      %1255 = vmatpush1.msra.mxu0 %v1214
      %1256 = vmatprep.subr.mxu0 0.0
      %1257 = vmatpush1.msra.mxu0 %v1213
      %1258 = vmatprep.subr.mxu0 0.0
      %1259 = vmatpush2.msra.mxu0 0.0
      %1260 = vmatprep.subr.mxu0 0.0
      %1261 = vmatpush2.msra.mxu0 0.0
      %1262 = vmatprep.subr.mxu0 0.0
      %1263 = vmatpush2.msra.mxu0 0.0
      %1264 = vmatprep.subr.mxu0 0.0
      %1265 = vmatpush2.msra.mxu0 0.0
      %1266 = vmatprep.subr.mxu0 0.0
      %1267 = vmatpush2.msra.mxu0 0.0
      %1268 = vmatprep.subr.mxu0 0.0
      %1269 = vmatpush2.msra.mxu0 0.0
      %1270 = vmatprep.subr.mxu0 0.0
      %1271 = vmatpush2.msra.mxu0 0.0
      %1272 = vmatprep.subr.mxu0 0.0
      %1273 = vmatpush2.msra.mxu0 0.0
      %1274 = vmatprep.subr.mxu0 0.0
      %1275 = vmatpush2.msra.mxu0 0.0
      %1276 = vmatprep.subr.mxu0 0.0
      %1277 = vmatpush2.msra.mxu0 0.0
      %1278 = vmatprep.subr.mxu0 0.0
      %1279 = vmatpush2.msra.mxu0 0.0
      %1280 = vmatprep.subr.mxu0 0.0
      %1281 = vmatpush2.msra.mxu0 0.0
      %1282 = vmatprep.subr.mxu0 0.0
      %1283 = vmatpush2.msra.mxu0 0.0
      %1284 = vmatprep.subr.mxu0 0.0
      %1285 = vmatpush2.msra.mxu0 0.0
      %1286 = vmatprep.subr.mxu0 0.0
      %1287 = vmatpush2.msra.mxu0 0.0
      %1288 = vmatprep.subr.mxu0 0.0
      %1289 = vmatpush2.msra.mxu0 0.0
      %1290 = vmatprep.mubr.f32.mxu0 0.0
      %1291 = vmatmul.mubr.f32.gmra.mxu0 %v1224
      %v1292 = vpop.f32.mrf.mxu0
      %v1293 = vadd.f32 %v1221, %v1292
      %v1294 = vpop.f32.mrf.mxu0
      %1295 = vdwg.mxu0
      %v1296 = vmul.f32 %v1293, 1.702
      %v1297 = vxor.u32 %v1296, 2147483648
      %v1298 = vmul.f32 %v1297, 1.442695
      %v1299 = vpow.pop %v1298
      %v1300 = vadd.f32 %v1299, 1.0
      %v1301 = vrcp.pop %v1300
      %v1302 = vmul.f32 1.0, %v1301
      %v1303 = vmul.f32 %v1293, %v1302
      %v1304 = vld [vmem:[%s7] sm:$0xff]
      %v1305 = vld [vmem:[%s7 + $0x8] sm:$0xff]
      %v1306 = vld [vmem:[%s7 + $0x10] sm:$0xff]
      %v1307 = vld [vmem:[%s7 + $0x18] sm:$0xff]
      %v1308 = vld [vmem:[%s7 + $0x20] sm:$0xff]
      %v1309 = vld [vmem:[%s7 + $0x28] sm:$0xff]
      %v1310 = vld [vmem:[%s7 + $0x30] sm:$0xff]
      %v1311 = vld [vmem:[%s7 + $0x38] sm:$0xff]
      %v1312 = vld [vmem:[%s7 + $0x40] sm:$0xff]
      %v1313 = vld [vmem:[%s7 + $0x48] sm:$0xff]
      %v1314 = vld [vmem:[%s7 + $0x50] sm:$0xff]
      %v1315 = vld [vmem:[%s7 + $0x58] sm:$0xff]
      %v1316 = vld [vmem:[%s7 + $0x60] sm:$0xff]
      %v1317 = vld [vmem:[%s7 + $0x68] sm:$0xff]
      %v1318 = vld [vmem:[%s7 + $0x70] sm:$0xff]
      %v1319 = vld [vmem:[%s7 + $0x78] sm:$0xff]
      %1320 = vmatprep.subr.mxu0 0.0
      %1321 = vmatpush1.msra.mxu0 %v1319
      %1322 = vmatprep.subr.mxu0 0.0
      %1323 = vmatpush1.msra.mxu0 %v1318
      %1324 = vmatprep.subr.mxu0 0.0
      %1325 = vmatpush1.msra.mxu0 %v1317
      %1326 = vmatprep.subr.mxu0 0.0
      %1327 = vmatpush1.msra.mxu0 %v1316
      %1328 = vmatprep.subr.mxu0 0.0
      %1329 = vmatpush1.msra.mxu0 %v1315
      %1330 = vmatprep.subr.mxu0 0.0
      %1331 = vmatpush1.msra.mxu0 %v1314
      %1332 = vmatprep.subr.mxu0 0.0
      %1333 = vmatpush1.msra.mxu0 %v1313
      %1334 = vmatprep.subr.mxu0 0.0
      %1335 = vmatpush1.msra.mxu0 %v1312
      %1336 = vmatprep.subr.mxu0 0.0
      %1337 = vmatpush1.msra.mxu0 %v1311
      %1338 = vmatprep.subr.mxu0 0.0
      %1339 = vmatpush1.msra.mxu0 %v1310
      %1340 = vmatprep.subr.mxu0 0.0
      %1341 = vmatpush1.msra.mxu0 %v1309
      %1342 = vmatprep.subr.mxu0 0.0
      %1343 = vmatpush1.msra.mxu0 %v1308
      %1344 = vmatprep.subr.mxu0 0.0
      %1345 = vmatpush1.msra.mxu0 %v1307
      %1346 = vmatprep.subr.mxu0 0.0
      %1347 = vmatpush1.msra.mxu0 %v1306
      %1348 = vmatprep.subr.mxu0 0.0
      %1349 = vmatpush1.msra.mxu0 %v1305
      %1350 = vmatprep.subr.mxu0 0.0
      %1351 = vmatpush1.msra.mxu0 %v1304
      %1352 = vmatprep.subr.mxu0 0.0
      %1353 = vmatpush2.msra.mxu0 0.0
      %1354 = vmatprep.subr.mxu0 0.0
      %1355 = vmatpush2.msra.mxu0 0.0
      %1356 = vmatprep.subr.mxu0 0.0
      %1357 = vmatpush2.msra.mxu0 0.0
      %1358 = vmatprep.subr.mxu0 0.0
      %1359 = vmatpush2.msra.mxu0 0.0
      %1360 = vmatprep.subr.mxu0 0.0
      %1361 = vmatpush2.msra.mxu0 0.0
      %1362 = vmatprep.subr.mxu0 0.0
      %1363 = vmatpush2.msra.mxu0 0.0
      %1364 = vmatprep.subr.mxu0 0.0
      %1365 = vmatpush2.msra.mxu0 0.0
      %1366 = vmatprep.subr.mxu0 0.0
      %1367 = vmatpush2.msra.mxu0 0.0
      %1368 = vmatprep.subr.mxu0 0.0
      %1369 = vmatpush2.msra.mxu0 0.0
      %1370 = vmatprep.subr.mxu0 0.0
      %1371 = vmatpush2.msra.mxu0 0.0
      %1372 = vmatprep.subr.mxu0 0.0
      %1373 = vmatpush2.msra.mxu0 0.0
      %1374 = vmatprep.subr.mxu0 0.0
      %1375 = vmatpush2.msra.mxu0 0.0
      %1376 = vmatprep.subr.mxu0 0.0
      %1377 = vmatpush2.msra.mxu0 0.0
      %1378 = vmatprep.subr.mxu0 0.0
      %1379 = vmatpush2.msra.mxu0 0.0
      %1380 = vmatprep.subr.mxu0 0.0
      %1381 = vmatpush2.msra.mxu0 0.0
      %1382 = vmatprep.subr.mxu0 0.0
      %1383 = vmatpush2.msra.mxu0 0.0
      %1384 = vmatprep.mubr.f32.mxu0 0.0
      %1385 = vmatmul.mubr.f32.gmra.mxu0 %v1303
      %v1386 = vpop.f32.mrf.mxu0
      %v1387 = vadd.f32 0.0, %v1386
      %v1388 = vpop.f32.mrf.mxu0
      %1389 = vdwg.mxu0
      %v1390 = vadd.f32 %v1191, %v1387
      %v1391 = vrot.slane %v318, 3
      %v1392 = vlaneseq
      %v1393 = vshrl.u32 %v1392, 7
      %v1394 = vsub.s32 0, %v1393
      %v1395 = vrot.slane %v1391, %v1394
      %v1397 = vadd.f32 %v1390, %v1395
      %s1398 = scalar_lea.vmem %s3, 1
      %v1399 = vld [vmem:[%s1398] ss:$2 sm:$0xf]
      %v1400 = vsel %vm319, %v1397, 0.0
      %1401 = vadd.xlane.f32.xlu0 %v1400
      %v1402 = vpop.xlane.xlu0 %1401
      %v1403 = vmul.f32 %v1402, %v323
      %v1404 = vsub.f32 %v1397, %v1403
      %v1405 = vmul.f32 %v1404, %v1404
      %v1406 = vsel %vm319, %v1405, 0.0
      %1407 = vadd.xlane.f32.xlu0 %v1406
      %v1408 = vpop.xlane.xlu0 %1407
      %v1409 = vmul.f32 %v1408, %v323
      %v1410 = vadd.f32 %v1409, 1e-05
      %v1411 = vrsqrt.pop %v1410
      %v1412 = vmul.f32 %v1404, %v1411
      %v1414 = vlaneseq
      %v1415 = vshrl.u32 %v1414, 7
      %v1416 = vsub.s32 0, %v1415
      %v1417 = vrot.slane %v1399, %v1416
      %v1419 = vmul.f32 %v1412, %v1417
      %1420 = vrot.lane.b32.xlu0 %v1417, 96
      %v1421 = vpop.permute.xlu0 %1420
      %v1423 = vadd.f32 %v1419, %v1421
      %s1424 = scalar_lea.vmem %s4, 32
      %v1425 = vld [vmem:[%s1424] sm:$0xff]
      %v1426 = vld [vmem:[%s1424 + $0x8] sm:$0xff]
      %v1427 = vld [vmem:[%s1424 + $0x10] sm:$0xff]
      %v1428 = vld [vmem:[%s1424 + $0x18] sm:$0xff]
      %v1429 = vrot.slane %v1399, 1
      %v1430 = vlaneseq
      %v1431 = vshrl.u32 %v1430, 7
      %v1432 = vsub.s32 0, %v1431
      %v1433 = vrot.slane %v1429, %v1432
      %v1436 = vsel %vm319, %v1423, 0
      %1438 = vmatprep.subr.mxu0 0.0
      %1439 = vmatpush1.msra.mxu0 0.0
      %1440 = vmatprep.subr.mxu0 0.0
      %1441 = vmatpush1.msra.mxu0 0.0
      %1442 = vmatprep.subr.mxu0 0.0
      %1443 = vmatpush1.msra.mxu0 0.0
      %1444 = vmatprep.subr.mxu0 0.0
      %1445 = vmatpush1.msra.mxu0 0.0
      %1446 = vmatprep.subr.mxu0 0.0
      %1447 = vmatpush1.msra.mxu0 0.0
      %1448 = vmatprep.subr.mxu0 0.0
      %1449 = vmatpush1.msra.mxu0 0.0
      %1450 = vmatprep.subr.mxu0 0.0
      %1451 = vmatpush1.msra.mxu0 0.0
      %1452 = vmatprep.subr.mxu0 0.0
      %1453 = vmatpush1.msra.mxu0 0.0
      %1454 = vmatprep.subr.mxu0 0.0
      %1455 = vmatpush1.msra.mxu0 0.0
      %1456 = vmatprep.subr.mxu0 0.0
      %1457 = vmatpush1.msra.mxu0 0.0
      %1458 = vmatprep.subr.mxu0 0.0
      %1459 = vmatpush1.msra.mxu0 0.0
      %1460 = vmatprep.subr.mxu0 0.0
      %1461 = vmatpush1.msra.mxu0 0.0
      %1462 = vmatprep.subr.mxu0 0.0
      %1463 = vmatpush1.msra.mxu0 %v1428
      %1464 = vmatprep.subr.mxu0 0.0
      %1465 = vmatpush1.msra.mxu0 %v1427
      %1466 = vmatprep.subr.mxu0 0.0
      %1467 = vmatpush1.msra.mxu0 %v1426
      %1468 = vmatprep.subr.mxu0 0.0
      %1469 = vmatpush1.msra.mxu0 %v1425
      %1470 = vmatprep.subr.mxu0 0.0
      %1471 = vmatpush2.msra.mxu0 0.0
      %1472 = vmatprep.subr.mxu0 0.0
      %1473 = vmatpush2.msra.mxu0 0.0
      %1474 = vmatprep.subr.mxu0 0.0
      %1475 = vmatpush2.msra.mxu0 0.0
      %1476 = vmatprep.subr.mxu0 0.0
      %1477 = vmatpush2.msra.mxu0 0.0
      %1478 = vmatprep.subr.mxu0 0.0
      %1479 = vmatpush2.msra.mxu0 0.0
      %1480 = vmatprep.subr.mxu0 0.0
      %1481 = vmatpush2.msra.mxu0 0.0
      %1482 = vmatprep.subr.mxu0 0.0
      %1483 = vmatpush2.msra.mxu0 0.0
      %1484 = vmatprep.subr.mxu0 0.0
      %1485 = vmatpush2.msra.mxu0 0.0
      %1486 = vmatprep.subr.mxu0 0.0
      %1487 = vmatpush2.msra.mxu0 0.0
      %1488 = vmatprep.subr.mxu0 0.0
      %1489 = vmatpush2.msra.mxu0 0.0
      %1490 = vmatprep.subr.mxu0 0.0
      %1491 = vmatpush2.msra.mxu0 0.0
      %1492 = vmatprep.subr.mxu0 0.0
      %1493 = vmatpush2.msra.mxu0 0.0
      %1494 = vmatprep.subr.mxu0 0.0
      %1495 = vmatpush2.msra.mxu0 0.0
      %1496 = vmatprep.subr.mxu0 0.0
      %1497 = vmatpush2.msra.mxu0 0.0
      %1498 = vmatprep.subr.mxu0 0.0
      %1499 = vmatpush2.msra.mxu0 0.0
      %1500 = vmatprep.subr.mxu0 0.0
      %1501 = vmatpush2.msra.mxu0 0.0
      %1502 = vmatprep.mubr.f32.mxu0 0.0
      %1503 = vmatmul.mubr.f32.gmra.mxu0 %v1436
      %v1504 = vpop.f32.mrf.mxu0
      %v1505 = vadd.f32 %v1433, %v1504
      %v1506 = vpop.f32.mrf.mxu0
      %1507 = vdwg.mxu0
      %1509 = vrot.lane.b32.xlu0 %v1505, 120
      %v1510 = vpop.permute.xlu0 %1509
      %1511 = vrot.lane.b32.xlu0 %v1505, 112
      %v1512 = vpop.permute.xlu0 %1511
      %1513 = vrot.lane.b32.xlu0 %v1505, 104
      %v1514 = vpop.permute.xlu0 %1513
      %1515 = vrot.lane.b32.xlu0 %v1505, 96
      %v1516 = vpop.permute.xlu0 %1515
      %1517 = vrot.lane.b32.xlu0 %v1505, 88
      %v1518 = vpop.permute.xlu0 %1517
      %1519 = vrot.lane.b32.xlu0 %v1505, 80
      %v1520 = vpop.permute.xlu0 %1519
      %1521 = vrot.lane.b32.xlu0 %v1505, 72
      %v1522 = vpop.permute.xlu0 %1521
      %1523 = vrot.lane.b32.xlu0 %v1505, 64
      %v1524 = vpop.permute.xlu0 %1523
      %1526 = vrot.lane.b32.xlu0 %v1505, 56
      %v1527 = vpop.permute.xlu0 %1526
      %1529 = vrot.lane.b32.xlu0 %v1505, 48
      %v1530 = vpop.permute.xlu0 %1529
      %1532 = vrot.lane.b32.xlu0 %v1505, 40
      %v1533 = vpop.permute.xlu0 %1532
      %v1535 = vsel %vm455, %v1505, 0
      %v1537 = vsel %vm455, %v1516, 0
      %1539 = vmatprep.subr.mxu0 0.0
      %1540 = vmatpush1.xpose.msra.mxu0 0.0
      %1541 = vmatprep.subr.mxu0 0.0
      %1542 = vmatpush1.xpose.msra.mxu0 0.0
      %1543 = vmatprep.subr.mxu0 0.0
      %1544 = vmatpush1.xpose.msra.mxu0 0.0
      %1545 = vmatprep.subr.mxu0 0.0
      %1546 = vmatpush1.xpose.msra.mxu0 0.0
      %1547 = vmatprep.subr.mxu0 0.0
      %1548 = vmatpush1.xpose.msra.mxu0 0.0
      %1549 = vmatprep.subr.mxu0 0.0
      %1550 = vmatpush1.xpose.msra.mxu0 0.0
      %1551 = vmatprep.subr.mxu0 0.0
      %1552 = vmatpush1.xpose.msra.mxu0 0.0
      %1553 = vmatprep.subr.mxu0 0.0
      %1554 = vmatpush1.xpose.msra.mxu0 0.0
      %1555 = vmatprep.subr.mxu0 0.0
      %1556 = vmatpush1.xpose.msra.mxu0 0.0
      %1557 = vmatprep.subr.mxu0 0.0
      %1558 = vmatpush1.xpose.msra.mxu0 0.0
      %1559 = vmatprep.subr.mxu0 0.0
      %1560 = vmatpush1.xpose.msra.mxu0 0.0
      %1561 = vmatprep.subr.mxu0 0.0
      %1562 = vmatpush1.xpose.msra.mxu0 0.0
      %1563 = vmatprep.subr.mxu0 0.0
      %1564 = vmatpush1.xpose.msra.mxu0 0.0
      %1565 = vmatprep.subr.mxu0 0.0
      %1566 = vmatpush1.xpose.msra.mxu0 0.0
      %1567 = vmatprep.subr.mxu0 0.0
      %1568 = vmatpush1.xpose.msra.mxu0 0.0
      %1569 = vmatprep.subr.mxu0 0.0
      %1570 = vmatpush1.xpose.msra.mxu0 %v1537
      %1571 = vmatprep.subr.mxu0 0.0
      %1572 = vmatpush2.xpose.msra.mxu0 0.0
      %1573 = vmatprep.subr.mxu0 0.0
      %1574 = vmatpush2.xpose.msra.mxu0 0.0
      %1575 = vmatprep.subr.mxu0 0.0
      %1576 = vmatpush2.xpose.msra.mxu0 0.0
      %1577 = vmatprep.subr.mxu0 0.0
      %1578 = vmatpush2.xpose.msra.mxu0 0.0
      %1579 = vmatprep.subr.mxu0 0.0
      %1580 = vmatpush2.xpose.msra.mxu0 0.0
      %1581 = vmatprep.subr.mxu0 0.0
      %1582 = vmatpush2.xpose.msra.mxu0 0.0
      %1583 = vmatprep.subr.mxu0 0.0
      %1584 = vmatpush2.xpose.msra.mxu0 0.0
      %1585 = vmatprep.subr.mxu0 0.0
      %1586 = vmatpush2.xpose.msra.mxu0 0.0
      %1587 = vmatprep.subr.mxu0 0.0
      %1588 = vmatpush2.xpose.msra.mxu0 0.0
      %1589 = vmatprep.subr.mxu0 0.0
      %1590 = vmatpush2.xpose.msra.mxu0 0.0
      %1591 = vmatprep.subr.mxu0 0.0
      %1592 = vmatpush2.xpose.msra.mxu0 0.0
      %1593 = vmatprep.subr.mxu0 0.0
      %1594 = vmatpush2.xpose.msra.mxu0 0.0
      %1595 = vmatprep.subr.mxu0 0.0
      %1596 = vmatpush2.xpose.msra.mxu0 0.0
      %1597 = vmatprep.subr.mxu0 0.0
      %1598 = vmatpush2.xpose.msra.mxu0 0.0
      %1599 = vmatprep.subr.mxu0 0.0
      %1600 = vmatpush2.xpose.msra.mxu0 0.0
      %1601 = vmatprep.subr.mxu0 0.0
      %1602 = vmatpush2.xpose.msra.mxu0 0.0
      %1603 = vmatprep.mubr.f32.mxu0 0.0
      %1604 = vmatmul.mubr.f32.gmra.mxu0 %v1535
      %v1605 = vpop.f32.mrf.mxu0
      %v1606 = vadd.f32 %v317, %v1605
      %v1607 = vpop.f32.mrf.mxu0
      %1608 = vdwg.mxu0
      %v1609 = vsel %vm455, %v1510, 0
      %v1611 = vsel %vm455, %v1518, 0
      %1613 = vmatprep.subr.mxu0 0.0
      %1614 = vmatpush1.xpose.msra.mxu0 0.0
      %1615 = vmatprep.subr.mxu0 0.0
      %1616 = vmatpush1.xpose.msra.mxu0 0.0
      %1617 = vmatprep.subr.mxu0 0.0
      %1618 = vmatpush1.xpose.msra.mxu0 0.0
      %1619 = vmatprep.subr.mxu0 0.0
      %1620 = vmatpush1.xpose.msra.mxu0 0.0
      %1621 = vmatprep.subr.mxu0 0.0
      %1622 = vmatpush1.xpose.msra.mxu0 0.0
      %1623 = vmatprep.subr.mxu0 0.0
      %1624 = vmatpush1.xpose.msra.mxu0 0.0
      %1625 = vmatprep.subr.mxu0 0.0
      %1626 = vmatpush1.xpose.msra.mxu0 0.0
      %1627 = vmatprep.subr.mxu0 0.0
      %1628 = vmatpush1.xpose.msra.mxu0 0.0
      %1629 = vmatprep.subr.mxu0 0.0
      %1630 = vmatpush1.xpose.msra.mxu0 0.0
      %1631 = vmatprep.subr.mxu0 0.0
      %1632 = vmatpush1.xpose.msra.mxu0 0.0
      %1633 = vmatprep.subr.mxu0 0.0
      %1634 = vmatpush1.xpose.msra.mxu0 0.0
      %1635 = vmatprep.subr.mxu0 0.0
      %1636 = vmatpush1.xpose.msra.mxu0 0.0
      %1637 = vmatprep.subr.mxu0 0.0
      %1638 = vmatpush1.xpose.msra.mxu0 0.0
      %1639 = vmatprep.subr.mxu0 0.0
      %1640 = vmatpush1.xpose.msra.mxu0 0.0
      %1641 = vmatprep.subr.mxu0 0.0
      %1642 = vmatpush1.xpose.msra.mxu0 0.0
      %1643 = vmatprep.subr.mxu0 0.0
      %1644 = vmatpush1.xpose.msra.mxu0 %v1611
      %1645 = vmatprep.subr.mxu0 0.0
      %1646 = vmatpush2.xpose.msra.mxu0 0.0
      %1647 = vmatprep.subr.mxu0 0.0
      %1648 = vmatpush2.xpose.msra.mxu0 0.0
      %1649 = vmatprep.subr.mxu0 0.0
      %1650 = vmatpush2.xpose.msra.mxu0 0.0
      %1651 = vmatprep.subr.mxu0 0.0
      %1652 = vmatpush2.xpose.msra.mxu0 0.0
      %1653 = vmatprep.subr.mxu0 0.0
      %1654 = vmatpush2.xpose.msra.mxu0 0.0
      %1655 = vmatprep.subr.mxu0 0.0
      %1656 = vmatpush2.xpose.msra.mxu0 0.0
      %1657 = vmatprep.subr.mxu0 0.0
      %1658 = vmatpush2.xpose.msra.mxu0 0.0
      %1659 = vmatprep.subr.mxu0 0.0
      %1660 = vmatpush2.xpose.msra.mxu0 0.0
      %1661 = vmatprep.subr.mxu0 0.0
      %1662 = vmatpush2.xpose.msra.mxu0 0.0
      %1663 = vmatprep.subr.mxu0 0.0
      %1664 = vmatpush2.xpose.msra.mxu0 0.0
      %1665 = vmatprep.subr.mxu0 0.0
      %1666 = vmatpush2.xpose.msra.mxu0 0.0
      %1667 = vmatprep.subr.mxu0 0.0
      %1668 = vmatpush2.xpose.msra.mxu0 0.0
      %1669 = vmatprep.subr.mxu0 0.0
      %1670 = vmatpush2.xpose.msra.mxu0 0.0
      %1671 = vmatprep.subr.mxu0 0.0
      %1672 = vmatpush2.xpose.msra.mxu0 0.0
      %1673 = vmatprep.subr.mxu0 0.0
      %1674 = vmatpush2.xpose.msra.mxu0 0.0
      %1675 = vmatprep.subr.mxu0 0.0
      %1676 = vmatpush2.xpose.msra.mxu0 0.0
      %1677 = vmatprep.mubr.f32.mxu0 0.0
      %1678 = vmatmul.mubr.f32.gmra.mxu0 %v1609
      %v1679 = vpop.f32.mrf.mxu0
      %v1680 = vadd.f32 %v317, %v1679
      %v1681 = vpop.f32.mrf.mxu0
      %1682 = vdwg.mxu0
      %v1683 = vsel %vm455, %v1512, 0
      %v1685 = vsel %vm455, %v1520, 0
      %1687 = vmatprep.subr.mxu0 0.0
      %1688 = vmatpush1.xpose.msra.mxu0 0.0
      %1689 = vmatprep.subr.mxu0 0.0
      %1690 = vmatpush1.xpose.msra.mxu0 0.0
      %1691 = vmatprep.subr.mxu0 0.0
      %1692 = vmatpush1.xpose.msra.mxu0 0.0
      %1693 = vmatprep.subr.mxu0 0.0
      %1694 = vmatpush1.xpose.msra.mxu0 0.0
      %1695 = vmatprep.subr.mxu0 0.0
      %1696 = vmatpush1.xpose.msra.mxu0 0.0
      %1697 = vmatprep.subr.mxu0 0.0
      %1698 = vmatpush1.xpose.msra.mxu0 0.0
      %1699 = vmatprep.subr.mxu0 0.0
      %1700 = vmatpush1.xpose.msra.mxu0 0.0
      %1701 = vmatprep.subr.mxu0 0.0
      %1702 = vmatpush1.xpose.msra.mxu0 0.0
      %1703 = vmatprep.subr.mxu0 0.0
      %1704 = vmatpush1.xpose.msra.mxu0 0.0
      %1705 = vmatprep.subr.mxu0 0.0
      %1706 = vmatpush1.xpose.msra.mxu0 0.0
      %1707 = vmatprep.subr.mxu0 0.0
      %1708 = vmatpush1.xpose.msra.mxu0 0.0
      %1709 = vmatprep.subr.mxu0 0.0
      %1710 = vmatpush1.xpose.msra.mxu0 0.0
      %1711 = vmatprep.subr.mxu0 0.0
      %1712 = vmatpush1.xpose.msra.mxu0 0.0
      %1713 = vmatprep.subr.mxu0 0.0
      %1714 = vmatpush1.xpose.msra.mxu0 0.0
      %1715 = vmatprep.subr.mxu0 0.0
      %1716 = vmatpush1.xpose.msra.mxu0 0.0
      %1717 = vmatprep.subr.mxu0 0.0
      %1718 = vmatpush1.xpose.msra.mxu0 %v1685
      %1719 = vmatprep.subr.mxu0 0.0
      %1720 = vmatpush2.xpose.msra.mxu0 0.0
      %1721 = vmatprep.subr.mxu0 0.0
      %1722 = vmatpush2.xpose.msra.mxu0 0.0
      %1723 = vmatprep.subr.mxu0 0.0
      %1724 = vmatpush2.xpose.msra.mxu0 0.0
      %1725 = vmatprep.subr.mxu0 0.0
      %1726 = vmatpush2.xpose.msra.mxu0 0.0
      %1727 = vmatprep.subr.mxu0 0.0
      %1728 = vmatpush2.xpose.msra.mxu0 0.0
      %1729 = vmatprep.subr.mxu0 0.0
      %1730 = vmatpush2.xpose.msra.mxu0 0.0
      %1731 = vmatprep.subr.mxu0 0.0
      %1732 = vmatpush2.xpose.msra.mxu0 0.0
      %1733 = vmatprep.subr.mxu0 0.0
      %1734 = vmatpush2.xpose.msra.mxu0 0.0
      %1735 = vmatprep.subr.mxu0 0.0
      %1736 = vmatpush2.xpose.msra.mxu0 0.0
      %1737 = vmatprep.subr.mxu0 0.0
      %1738 = vmatpush2.xpose.msra.mxu0 0.0
      %1739 = vmatprep.subr.mxu0 0.0
      %1740 = vmatpush2.xpose.msra.mxu0 0.0
      %1741 = vmatprep.subr.mxu0 0.0
      %1742 = vmatpush2.xpose.msra.mxu0 0.0
      %1743 = vmatprep.subr.mxu0 0.0
      %1744 = vmatpush2.xpose.msra.mxu0 0.0
      %1745 = vmatprep.subr.mxu0 0.0
      %1746 = vmatpush2.xpose.msra.mxu0 0.0
      %1747 = vmatprep.subr.mxu0 0.0
      %1748 = vmatpush2.xpose.msra.mxu0 0.0
      %1749 = vmatprep.subr.mxu0 0.0
      %1750 = vmatpush2.xpose.msra.mxu0 0.0
      %1751 = vmatprep.mubr.f32.mxu0 0.0
      %1752 = vmatmul.mubr.f32.gmra.mxu0 %v1683
      %v1753 = vpop.f32.mrf.mxu0
      %v1754 = vadd.f32 %v317, %v1753
      %v1755 = vpop.f32.mrf.mxu0
      %1756 = vdwg.mxu0
      %v1757 = vsel %vm455, %v1514, 0
      %v1759 = vsel %vm455, %v1522, 0
      %1761 = vmatprep.subr.mxu0 0.0
      %1762 = vmatpush1.xpose.msra.mxu0 0.0
      %1763 = vmatprep.subr.mxu0 0.0
      %1764 = vmatpush1.xpose.msra.mxu0 0.0
      %1765 = vmatprep.subr.mxu0 0.0
      %1766 = vmatpush1.xpose.msra.mxu0 0.0
      %1767 = vmatprep.subr.mxu0 0.0
      %1768 = vmatpush1.xpose.msra.mxu0 0.0
      %1769 = vmatprep.subr.mxu0 0.0
      %1770 = vmatpush1.xpose.msra.mxu0 0.0
      %1771 = vmatprep.subr.mxu0 0.0
      %1772 = vmatpush1.xpose.msra.mxu0 0.0
      %1773 = vmatprep.subr.mxu0 0.0
      %1774 = vmatpush1.xpose.msra.mxu0 0.0
      %1775 = vmatprep.subr.mxu0 0.0
      %1776 = vmatpush1.xpose.msra.mxu0 0.0
      %1777 = vmatprep.subr.mxu0 0.0
      %1778 = vmatpush1.xpose.msra.mxu0 0.0
      %1779 = vmatprep.subr.mxu0 0.0
      %1780 = vmatpush1.xpose.msra.mxu0 0.0
      %1781 = vmatprep.subr.mxu0 0.0
      %1782 = vmatpush1.xpose.msra.mxu0 0.0
      %1783 = vmatprep.subr.mxu0 0.0
      %1784 = vmatpush1.xpose.msra.mxu0 0.0
      %1785 = vmatprep.subr.mxu0 0.0
      %1786 = vmatpush1.xpose.msra.mxu0 0.0
      %1787 = vmatprep.subr.mxu0 0.0
      %1788 = vmatpush1.xpose.msra.mxu0 0.0
      %1789 = vmatprep.subr.mxu0 0.0
      %1790 = vmatpush1.xpose.msra.mxu0 0.0
      %1791 = vmatprep.subr.mxu0 0.0
      %1792 = vmatpush1.xpose.msra.mxu0 %v1759
      %1793 = vmatprep.subr.mxu0 0.0
      %1794 = vmatpush2.xpose.msra.mxu0 0.0
      %1795 = vmatprep.subr.mxu0 0.0
      %1796 = vmatpush2.xpose.msra.mxu0 0.0
      %1797 = vmatprep.subr.mxu0 0.0
      %1798 = vmatpush2.xpose.msra.mxu0 0.0
      %1799 = vmatprep.subr.mxu0 0.0
      %1800 = vmatpush2.xpose.msra.mxu0 0.0
      %1801 = vmatprep.subr.mxu0 0.0
      %1802 = vmatpush2.xpose.msra.mxu0 0.0
      %1803 = vmatprep.subr.mxu0 0.0
      %1804 = vmatpush2.xpose.msra.mxu0 0.0
      %1805 = vmatprep.subr.mxu0 0.0
      %1806 = vmatpush2.xpose.msra.mxu0 0.0
      %1807 = vmatprep.subr.mxu0 0.0
      %1808 = vmatpush2.xpose.msra.mxu0 0.0
      %1809 = vmatprep.subr.mxu0 0.0
      %1810 = vmatpush2.xpose.msra.mxu0 0.0
      %1811 = vmatprep.subr.mxu0 0.0
      %1812 = vmatpush2.xpose.msra.mxu0 0.0
      %1813 = vmatprep.subr.mxu0 0.0
      %1814 = vmatpush2.xpose.msra.mxu0 0.0
      %1815 = vmatprep.subr.mxu0 0.0
      %1816 = vmatpush2.xpose.msra.mxu0 0.0
      %1817 = vmatprep.subr.mxu0 0.0
      %1818 = vmatpush2.xpose.msra.mxu0 0.0
      %1819 = vmatprep.subr.mxu0 0.0
      %1820 = vmatpush2.xpose.msra.mxu0 0.0
      %1821 = vmatprep.subr.mxu0 0.0
      %1822 = vmatpush2.xpose.msra.mxu0 0.0
      %1823 = vmatprep.subr.mxu0 0.0
      %1824 = vmatpush2.xpose.msra.mxu0 0.0
      %1825 = vmatprep.mubr.f32.mxu0 0.0
      %1826 = vmatmul.mubr.f32.gmra.mxu0 %v1757
      %v1827 = vpop.f32.mrf.mxu0
      %v1828 = vadd.f32 %v317, %v1827
      %v1829 = vpop.f32.mrf.mxu0
      %1830 = vdwg.mxu0
      %v1831 = vsel %vm455, %v1606, -inf
      %1832 = vmax.xlane.f32.xlu0 %v1831
      %v1833 = vpop.xlane.xlu0 %1832
      %v1834 = vsel %vm455, %v1680, -inf
      %1835 = vmax.xlane.f32.xlu0 %v1834
      %v1836 = vpop.xlane.xlu0 %1835
      %v1837 = vsel %vm455, %v1754, -inf
      %1838 = vmax.xlane.f32.xlu0 %v1837
      %v1839 = vpop.xlane.xlu0 %1838
      %v1840 = vsel %vm455, %v1828, -inf
      %1841 = vmax.xlane.f32.xlu0 %v1840
      %v1842 = vpop.xlane.xlu0 %1841
      %v1843 = vsub.f32 %v1606, %v1833
      %v1844 = vsub.f32 %v1680, %v1836
      %v1845 = vsub.f32 %v1754, %v1839
      %v1846 = vsub.f32 %v1828, %v1842
      %v1847 = vmul.f32 %v1843, 1.442695
      %v1848 = vpow.pop %v1847
      %v1849 = vmul.f32 %v1844, 1.442695
      %v1850 = vpow.pop %v1849
      %v1851 = vmul.f32 %v1845, 1.442695
      %v1852 = vpow.pop %v1851
      %v1853 = vmul.f32 %v1846, 1.442695
      %v1854 = vpow.pop %v1853
      %v1855 = vsel %vm455, %v1848, 0.0
      %1856 = vadd.xlane.f32.xlu0 %v1855
      %v1857 = vpop.xlane.xlu0 %1856
      %v1858 = vsel %vm455, %v1850, 0.0
      %1859 = vadd.xlane.f32.xlu0 %v1858
      %v1860 = vpop.xlane.xlu0 %1859
      %v1861 = vsel %vm455, %v1852, 0.0
      %1862 = vadd.xlane.f32.xlu0 %v1861
      %v1863 = vpop.xlane.xlu0 %1862
      %v1864 = vsel %vm455, %v1854, 0.0
      %1865 = vadd.xlane.f32.xlu0 %v1864
      %v1866 = vpop.xlane.xlu0 %1865
      %v1867 = vrcp.pop %v1857
      %v1868 = vrcp.pop %v1860
      %v1869 = vrcp.pop %v1863
      %v1870 = vrcp.pop %v1866
      %v1871 = vmul.f32 %v1848, %v1867
      %v1872 = vmul.f32 %v1850, %v1868
      %v1873 = vmul.f32 %v1852, %v1869
      %v1874 = vmul.f32 %v1854, %v1870
      %v1876 = vsel %vm455, %v1871, 0
      %1878 = vmatprep.subr.mxu0 0.0
      %1879 = vmatpush1.msra.mxu0 0.0
      %1880 = vmatprep.subr.mxu0 0.0
      %1881 = vmatpush1.msra.mxu0 0.0
      %1882 = vmatprep.subr.mxu0 0.0
      %1883 = vmatpush1.msra.mxu0 0.0
      %1884 = vmatprep.subr.mxu0 0.0
      %1885 = vmatpush1.msra.mxu0 0.0
      %1886 = vmatprep.subr.mxu0 0.0
      %1887 = vmatpush1.msra.mxu0 0.0
      %1888 = vmatprep.subr.mxu0 0.0
      %1889 = vmatpush1.msra.mxu0 0.0
      %1890 = vmatprep.subr.mxu0 0.0
      %1891 = vmatpush1.msra.mxu0 0.0
      %1892 = vmatprep.subr.mxu0 0.0
      %1893 = vmatpush1.msra.mxu0 0.0
      %1894 = vmatprep.subr.mxu0 0.0
      %1895 = vmatpush1.msra.mxu0 0.0
      %1896 = vmatprep.subr.mxu0 0.0
      %1897 = vmatpush1.msra.mxu0 0.0
      %1898 = vmatprep.subr.mxu0 0.0
      %1899 = vmatpush1.msra.mxu0 0.0
      %1900 = vmatprep.subr.mxu0 0.0
      %1901 = vmatpush1.msra.mxu0 0.0
      %1902 = vmatprep.subr.mxu0 0.0
      %1903 = vmatpush1.msra.mxu0 0.0
      %1904 = vmatprep.subr.mxu0 0.0
      %1905 = vmatpush1.msra.mxu0 0.0
      %1906 = vmatprep.subr.mxu0 0.0
      %1907 = vmatpush1.msra.mxu0 0.0
      %1908 = vmatprep.subr.mxu0 0.0
      %1909 = vmatpush1.msra.mxu0 %v1524
      %1910 = vmatprep.subr.mxu0 0.0
      %1911 = vmatpush2.msra.mxu0 0.0
      %1912 = vmatprep.subr.mxu0 0.0
      %1913 = vmatpush2.msra.mxu0 0.0
      %1914 = vmatprep.subr.mxu0 0.0
      %1915 = vmatpush2.msra.mxu0 0.0
      %1916 = vmatprep.subr.mxu0 0.0
      %1917 = vmatpush2.msra.mxu0 0.0
      %1918 = vmatprep.subr.mxu0 0.0
      %1919 = vmatpush2.msra.mxu0 0.0
      %1920 = vmatprep.subr.mxu0 0.0
      %1921 = vmatpush2.msra.mxu0 0.0
      %1922 = vmatprep.subr.mxu0 0.0
      %1923 = vmatpush2.msra.mxu0 0.0
      %1924 = vmatprep.subr.mxu0 0.0
      %1925 = vmatpush2.msra.mxu0 0.0
      %1926 = vmatprep.subr.mxu0 0.0
      %1927 = vmatpush2.msra.mxu0 0.0
      %1928 = vmatprep.subr.mxu0 0.0
      %1929 = vmatpush2.msra.mxu0 0.0
      %1930 = vmatprep.subr.mxu0 0.0
      %1931 = vmatpush2.msra.mxu0 0.0
      %1932 = vmatprep.subr.mxu0 0.0
      %1933 = vmatpush2.msra.mxu0 0.0
      %1934 = vmatprep.subr.mxu0 0.0
      %1935 = vmatpush2.msra.mxu0 0.0
      %1936 = vmatprep.subr.mxu0 0.0
      %1937 = vmatpush2.msra.mxu0 0.0
      %1938 = vmatprep.subr.mxu0 0.0
      %1939 = vmatpush2.msra.mxu0 0.0
      %1940 = vmatprep.subr.mxu0 0.0
      %1941 = vmatpush2.msra.mxu0 0.0
      %1942 = vmatprep.mubr.f32.mxu0 0.0
      %1943 = vmatmul.mubr.f32.gmra.mxu0 %v1876
      %v1944 = vpop.f32.mrf.mxu0
      %v1945 = vadd.f32 0.0, %v1944
      %v1946 = vpop.f32.mrf.mxu0
      %1947 = vdwg.mxu0
      %v1949 = vsel %vm455, %v1872, 0
      %1951 = vmatprep.subr.mxu0 0.0
      %1952 = vmatpush1.msra.mxu0 0.0
      %1953 = vmatprep.subr.mxu0 0.0
      %1954 = vmatpush1.msra.mxu0 0.0
      %1955 = vmatprep.subr.mxu0 0.0
      %1956 = vmatpush1.msra.mxu0 0.0
      %1957 = vmatprep.subr.mxu0 0.0
      %1958 = vmatpush1.msra.mxu0 0.0
      %1959 = vmatprep.subr.mxu0 0.0
      %1960 = vmatpush1.msra.mxu0 0.0
      %1961 = vmatprep.subr.mxu0 0.0
      %1962 = vmatpush1.msra.mxu0 0.0
      %1963 = vmatprep.subr.mxu0 0.0
      %1964 = vmatpush1.msra.mxu0 0.0
      %1965 = vmatprep.subr.mxu0 0.0
      %1966 = vmatpush1.msra.mxu0 0.0
      %1967 = vmatprep.subr.mxu0 0.0
      %1968 = vmatpush1.msra.mxu0 0.0
      %1969 = vmatprep.subr.mxu0 0.0
      %1970 = vmatpush1.msra.mxu0 0.0
      %1971 = vmatprep.subr.mxu0 0.0
      %1972 = vmatpush1.msra.mxu0 0.0
      %1973 = vmatprep.subr.mxu0 0.0
      %1974 = vmatpush1.msra.mxu0 0.0
      %1975 = vmatprep.subr.mxu0 0.0
      %1976 = vmatpush1.msra.mxu0 0.0
      %1977 = vmatprep.subr.mxu0 0.0
      %1978 = vmatpush1.msra.mxu0 0.0
      %1979 = vmatprep.subr.mxu0 0.0
      %1980 = vmatpush1.msra.mxu0 0.0
      %1981 = vmatprep.subr.mxu0 0.0
      %1982 = vmatpush1.msra.mxu0 %v1527
      %1983 = vmatprep.subr.mxu0 0.0
      %1984 = vmatpush2.msra.mxu0 0.0
      %1985 = vmatprep.subr.mxu0 0.0
      %1986 = vmatpush2.msra.mxu0 0.0
      %1987 = vmatprep.subr.mxu0 0.0
      %1988 = vmatpush2.msra.mxu0 0.0
      %1989 = vmatprep.subr.mxu0 0.0
      %1990 = vmatpush2.msra.mxu0 0.0
      %1991 = vmatprep.subr.mxu0 0.0
      %1992 = vmatpush2.msra.mxu0 0.0
      %1993 = vmatprep.subr.mxu0 0.0
      %1994 = vmatpush2.msra.mxu0 0.0
      %1995 = vmatprep.subr.mxu0 0.0
      %1996 = vmatpush2.msra.mxu0 0.0
      %1997 = vmatprep.subr.mxu0 0.0
      %1998 = vmatpush2.msra.mxu0 0.0
      %1999 = vmatprep.subr.mxu0 0.0
      %2000 = vmatpush2.msra.mxu0 0.0
      %2001 = vmatprep.subr.mxu0 0.0
      %2002 = vmatpush2.msra.mxu0 0.0
      %2003 = vmatprep.subr.mxu0 0.0
      %2004 = vmatpush2.msra.mxu0 0.0
      %2005 = vmatprep.subr.mxu0 0.0
      %2006 = vmatpush2.msra.mxu0 0.0
      %2007 = vmatprep.subr.mxu0 0.0
      %2008 = vmatpush2.msra.mxu0 0.0
      %2009 = vmatprep.subr.mxu0 0.0
      %2010 = vmatpush2.msra.mxu0 0.0
      %2011 = vmatprep.subr.mxu0 0.0
      %2012 = vmatpush2.msra.mxu0 0.0
      %2013 = vmatprep.subr.mxu0 0.0
      %2014 = vmatpush2.msra.mxu0 0.0
      %2015 = vmatprep.mubr.f32.mxu0 0.0
      %2016 = vmatmul.mubr.f32.gmra.mxu0 %v1949
      %v2017 = vpop.f32.mrf.mxu0
      %v2018 = vadd.f32 0.0, %v2017
      %v2019 = vpop.f32.mrf.mxu0
      %2020 = vdwg.mxu0
      %v2022 = vsel %vm455, %v1873, 0
      %2024 = vmatprep.subr.mxu0 0.0
      %2025 = vmatpush1.msra.mxu0 0.0
      %2026 = vmatprep.subr.mxu0 0.0
      %2027 = vmatpush1.msra.mxu0 0.0
      %2028 = vmatprep.subr.mxu0 0.0
      %2029 = vmatpush1.msra.mxu0 0.0
      %2030 = vmatprep.subr.mxu0 0.0
      %2031 = vmatpush1.msra.mxu0 0.0
      %2032 = vmatprep.subr.mxu0 0.0
      %2033 = vmatpush1.msra.mxu0 0.0
      %2034 = vmatprep.subr.mxu0 0.0
      %2035 = vmatpush1.msra.mxu0 0.0
      %2036 = vmatprep.subr.mxu0 0.0
      %2037 = vmatpush1.msra.mxu0 0.0
      %2038 = vmatprep.subr.mxu0 0.0
      %2039 = vmatpush1.msra.mxu0 0.0
      %2040 = vmatprep.subr.mxu0 0.0
      %2041 = vmatpush1.msra.mxu0 0.0
      %2042 = vmatprep.subr.mxu0 0.0
      %2043 = vmatpush1.msra.mxu0 0.0
      %2044 = vmatprep.subr.mxu0 0.0
      %2045 = vmatpush1.msra.mxu0 0.0
      %2046 = vmatprep.subr.mxu0 0.0
      %2047 = vmatpush1.msra.mxu0 0.0
      %2048 = vmatprep.subr.mxu0 0.0
      %2049 = vmatpush1.msra.mxu0 0.0
      %2050 = vmatprep.subr.mxu0 0.0
      %2051 = vmatpush1.msra.mxu0 0.0
      %2052 = vmatprep.subr.mxu0 0.0
      %2053 = vmatpush1.msra.mxu0 0.0
      %2054 = vmatprep.subr.mxu0 0.0
      %2055 = vmatpush1.msra.mxu0 %v1530
      %2056 = vmatprep.subr.mxu0 0.0
      %2057 = vmatpush2.msra.mxu0 0.0
      %2058 = vmatprep.subr.mxu0 0.0
      %2059 = vmatpush2.msra.mxu0 0.0
      %2060 = vmatprep.subr.mxu0 0.0
      %2061 = vmatpush2.msra.mxu0 0.0
      %2062 = vmatprep.subr.mxu0 0.0
      %2063 = vmatpush2.msra.mxu0 0.0
      %2064 = vmatprep.subr.mxu0 0.0
      %2065 = vmatpush2.msra.mxu0 0.0
      %2066 = vmatprep.subr.mxu0 0.0
      %2067 = vmatpush2.msra.mxu0 0.0
      %2068 = vmatprep.subr.mxu0 0.0
      %2069 = vmatpush2.msra.mxu0 0.0
      %2070 = vmatprep.subr.mxu0 0.0
      %2071 = vmatpush2.msra.mxu0 0.0
      %2072 = vmatprep.subr.mxu0 0.0
      %2073 = vmatpush2.msra.mxu0 0.0
      %2074 = vmatprep.subr.mxu0 0.0
      %2075 = vmatpush2.msra.mxu0 0.0
      %2076 = vmatprep.subr.mxu0 0.0
      %2077 = vmatpush2.msra.mxu0 0.0
      %2078 = vmatprep.subr.mxu0 0.0
      %2079 = vmatpush2.msra.mxu0 0.0
      %2080 = vmatprep.subr.mxu0 0.0
      %2081 = vmatpush2.msra.mxu0 0.0
      %2082 = vmatprep.subr.mxu0 0.0
      %2083 = vmatpush2.msra.mxu0 0.0
      %2084 = vmatprep.subr.mxu0 0.0
      %2085 = vmatpush2.msra.mxu0 0.0
      %2086 = vmatprep.subr.mxu0 0.0
      %2087 = vmatpush2.msra.mxu0 0.0
      %2088 = vmatprep.mubr.f32.mxu0 0.0
      %2089 = vmatmul.mubr.f32.gmra.mxu0 %v2022
      %v2090 = vpop.f32.mrf.mxu0
      %v2091 = vadd.f32 0.0, %v2090
      %v2092 = vpop.f32.mrf.mxu0
      %2093 = vdwg.mxu0
      %v2095 = vsel %vm455, %v1874, 0
      %2097 = vmatprep.subr.mxu0 0.0
      %2098 = vmatpush1.msra.mxu0 0.0
      %2099 = vmatprep.subr.mxu0 0.0
      %2100 = vmatpush1.msra.mxu0 0.0
      %2101 = vmatprep.subr.mxu0 0.0
      %2102 = vmatpush1.msra.mxu0 0.0
      %2103 = vmatprep.subr.mxu0 0.0
      %2104 = vmatpush1.msra.mxu0 0.0
      %2105 = vmatprep.subr.mxu0 0.0
      %2106 = vmatpush1.msra.mxu0 0.0
      %2107 = vmatprep.subr.mxu0 0.0
      %2108 = vmatpush1.msra.mxu0 0.0
      %2109 = vmatprep.subr.mxu0 0.0
      %2110 = vmatpush1.msra.mxu0 0.0
      %2111 = vmatprep.subr.mxu0 0.0
      %2112 = vmatpush1.msra.mxu0 0.0
      %2113 = vmatprep.subr.mxu0 0.0
      %2114 = vmatpush1.msra.mxu0 0.0
      %2115 = vmatprep.subr.mxu0 0.0
      %2116 = vmatpush1.msra.mxu0 0.0
      %2117 = vmatprep.subr.mxu0 0.0
      %2118 = vmatpush1.msra.mxu0 0.0
      %2119 = vmatprep.subr.mxu0 0.0
      %2120 = vmatpush1.msra.mxu0 0.0
      %2121 = vmatprep.subr.mxu0 0.0
      %2122 = vmatpush1.msra.mxu0 0.0
      %2123 = vmatprep.subr.mxu0 0.0
      %2124 = vmatpush1.msra.mxu0 0.0
      %2125 = vmatprep.subr.mxu0 0.0
      %2126 = vmatpush1.msra.mxu0 0.0
      %2127 = vmatprep.subr.mxu0 0.0
      %2128 = vmatpush1.msra.mxu0 %v1533
      %2129 = vmatprep.subr.mxu0 0.0
      %2130 = vmatpush2.msra.mxu0 0.0
      %2131 = vmatprep.subr.mxu0 0.0
      %2132 = vmatpush2.msra.mxu0 0.0
      %2133 = vmatprep.subr.mxu0 0.0
      %2134 = vmatpush2.msra.mxu0 0.0
      %2135 = vmatprep.subr.mxu0 0.0
      %2136 = vmatpush2.msra.mxu0 0.0
      %2137 = vmatprep.subr.mxu0 0.0
      %2138 = vmatpush2.msra.mxu0 0.0
      %2139 = vmatprep.subr.mxu0 0.0
      %2140 = vmatpush2.msra.mxu0 0.0
      %2141 = vmatprep.subr.mxu0 0.0
      %2142 = vmatpush2.msra.mxu0 0.0
      %2143 = vmatprep.subr.mxu0 0.0
      %2144 = vmatpush2.msra.mxu0 0.0
      %2145 = vmatprep.subr.mxu0 0.0
      %2146 = vmatpush2.msra.mxu0 0.0
      %2147 = vmatprep.subr.mxu0 0.0
      %2148 = vmatpush2.msra.mxu0 0.0
      %2149 = vmatprep.subr.mxu0 0.0
      %2150 = vmatpush2.msra.mxu0 0.0
      %2151 = vmatprep.subr.mxu0 0.0
      %2152 = vmatpush2.msra.mxu0 0.0
      %2153 = vmatprep.subr.mxu0 0.0
      %2154 = vmatpush2.msra.mxu0 0.0
      %2155 = vmatprep.subr.mxu0 0.0
      %2156 = vmatpush2.msra.mxu0 0.0
      %2157 = vmatprep.subr.mxu0 0.0
      %2158 = vmatpush2.msra.mxu0 0.0
      %2159 = vmatprep.subr.mxu0 0.0
      %2160 = vmatpush2.msra.mxu0 0.0
      %2161 = vmatprep.mubr.f32.mxu0 0.0
      %2162 = vmatmul.mubr.f32.gmra.mxu0 %v2095
      %v2163 = vpop.f32.mrf.mxu0
      %v2164 = vadd.f32 0.0, %v2163
      %v2165 = vpop.f32.mrf.mxu0
      %2166 = vdwg.mxu0
      %2168 = vrot.lane.b32.xlu0 %v2018, 8
      %v2169 = vpop.permute.xlu0 %2168
      %2172 = vrot.lane.b32.xlu0 %v2091, 16
      %v2173 = vpop.permute.xlu0 %2172
      %2176 = vrot.lane.b32.xlu0 %v2164, 24
      %v2177 = vpop.permute.xlu0 %2176
      %v2179 = vsel %vm455, %v1945, %v2169
      %v2180 = vsel %vm1101, %v2179, %v2173
      %v2181 = vsel %vm1103, %v2180, %v2177
      %s2182 = scalar_lea.vmem %s5, 32
      %v2183 = vld [vmem:[%s2182] sm:$0xff]
      %v2184 = vld [vmem:[%s2182 + $0x8] sm:$0xff]
      %v2185 = vld [vmem:[%s2182 + $0x10] sm:$0xff]
      %v2186 = vld [vmem:[%s2182 + $0x18] sm:$0xff]
      %v2188 = vsel %vm319, %v2181, 0
      %2190 = vmatprep.subr.mxu0 0.0
      %2191 = vmatpush1.msra.mxu0 0.0
      %2192 = vmatprep.subr.mxu0 0.0
      %2193 = vmatpush1.msra.mxu0 0.0
      %2194 = vmatprep.subr.mxu0 0.0
      %2195 = vmatpush1.msra.mxu0 0.0
      %2196 = vmatprep.subr.mxu0 0.0
      %2197 = vmatpush1.msra.mxu0 0.0
      %2198 = vmatprep.subr.mxu0 0.0
      %2199 = vmatpush1.msra.mxu0 0.0
      %2200 = vmatprep.subr.mxu0 0.0
      %2201 = vmatpush1.msra.mxu0 0.0
      %2202 = vmatprep.subr.mxu0 0.0
      %2203 = vmatpush1.msra.mxu0 0.0
      %2204 = vmatprep.subr.mxu0 0.0
      %2205 = vmatpush1.msra.mxu0 0.0
      %2206 = vmatprep.subr.mxu0 0.0
      %2207 = vmatpush1.msra.mxu0 0.0
      %2208 = vmatprep.subr.mxu0 0.0
      %2209 = vmatpush1.msra.mxu0 0.0
      %2210 = vmatprep.subr.mxu0 0.0
      %2211 = vmatpush1.msra.mxu0 0.0
      %2212 = vmatprep.subr.mxu0 0.0
      %2213 = vmatpush1.msra.mxu0 0.0
      %2214 = vmatprep.subr.mxu0 0.0
      %2215 = vmatpush1.msra.mxu0 %v2186
      %2216 = vmatprep.subr.mxu0 0.0
      %2217 = vmatpush1.msra.mxu0 %v2185
      %2218 = vmatprep.subr.mxu0 0.0
      %2219 = vmatpush1.msra.mxu0 %v2184
      %2220 = vmatprep.subr.mxu0 0.0
      %2221 = vmatpush1.msra.mxu0 %v2183
      %2222 = vmatprep.subr.mxu0 0.0
      %2223 = vmatpush2.msra.mxu0 0.0
      %2224 = vmatprep.subr.mxu0 0.0
      %2225 = vmatpush2.msra.mxu0 0.0
      %2226 = vmatprep.subr.mxu0 0.0
      %2227 = vmatpush2.msra.mxu0 0.0
      %2228 = vmatprep.subr.mxu0 0.0
      %2229 = vmatpush2.msra.mxu0 0.0
      %2230 = vmatprep.subr.mxu0 0.0
      %2231 = vmatpush2.msra.mxu0 0.0
      %2232 = vmatprep.subr.mxu0 0.0
      %2233 = vmatpush2.msra.mxu0 0.0
      %2234 = vmatprep.subr.mxu0 0.0
      %2235 = vmatpush2.msra.mxu0 0.0
      %2236 = vmatprep.subr.mxu0 0.0
      %2237 = vmatpush2.msra.mxu0 0.0
      %2238 = vmatprep.subr.mxu0 0.0
      %2239 = vmatpush2.msra.mxu0 0.0
      %2240 = vmatprep.subr.mxu0 0.0
      %2241 = vmatpush2.msra.mxu0 0.0
      %2242 = vmatprep.subr.mxu0 0.0
      %2243 = vmatpush2.msra.mxu0 0.0
      %2244 = vmatprep.subr.mxu0 0.0
      %2245 = vmatpush2.msra.mxu0 0.0
      %2246 = vmatprep.subr.mxu0 0.0
      %2247 = vmatpush2.msra.mxu0 0.0
      %2248 = vmatprep.subr.mxu0 0.0
      %2249 = vmatpush2.msra.mxu0 0.0
      %2250 = vmatprep.subr.mxu0 0.0
      %2251 = vmatpush2.msra.mxu0 0.0
      %2252 = vmatprep.subr.mxu0 0.0
      %2253 = vmatpush2.msra.mxu0 0.0
      %2254 = vmatprep.mubr.f32.mxu0 0.0
      %2255 = vmatmul.mubr.f32.gmra.mxu0 %v2188
      %v2256 = vpop.f32.mrf.mxu0
      %v2257 = vadd.f32 0.0, %v2256
      %v2258 = vpop.f32.mrf.mxu0
      %2259 = vdwg.mxu0
      %v2260 = vadd.f32 %v1397, %v2257
      %2261 = vrot.lane.b32.xlu0 %v1399, 32
      %v2262 = vpop.permute.xlu0 %2261
      %v2263 = vrot.slane %v2262, 1
      %v2264 = vlaneseq
      %v2265 = vshrl.u32 %v2264, 7
      %v2266 = vsub.s32 0, %v2265
      %v2267 = vrot.slane %v2263, %v2266
      %v2269 = vadd.f32 %v2260, %v2267
      %v2270 = vsel %vm319, %v2269, 0.0
      %2271 = vadd.xlane.f32.xlu0 %v2270
      %v2272 = vpop.xlane.xlu0 %2271
      %v2273 = vmul.f32 %v2272, %v323
      %v2274 = vsub.f32 %v2269, %v2273
      %v2275 = vmul.f32 %v2274, %v2274
      %v2276 = vsel %vm319, %v2275, 0.0
      %2277 = vadd.xlane.f32.xlu0 %v2276
      %v2278 = vpop.xlane.xlu0 %2277
      %v2279 = vmul.f32 %v2278, %v323
      %v2280 = vadd.f32 %v2279, 1e-05
      %v2281 = vrsqrt.pop %v2280
      %v2282 = vmul.f32 %v2274, %v2281
      %2283 = vrot.lane.b32.xlu0 %v1417, 64
      %v2284 = vpop.permute.xlu0 %2283
      %v2286 = vmul.f32 %v2282, %v2284
      %2287 = vrot.lane.b32.xlu0 %v1417, 32
      %v2288 = vpop.permute.xlu0 %2287
      %v2290 = vadd.f32 %v2286, %v2288
      %s2291 = scalar_lea.vmem %s6, 32
      %v2292 = vld [vmem:[%s2291] sm:$0xff]
      %v2293 = vld [vmem:[%s2291 + $0x8] sm:$0xff]
      %v2294 = vld [vmem:[%s2291 + $0x10] sm:$0xff]
      %v2295 = vld [vmem:[%s2291 + $0x18] sm:$0xff]
      %v2296 = vrot.slane %v1399, 2
      %v2297 = vlaneseq
      %v2298 = vshrl.u32 %v2297, 7
      %v2299 = vsub.s32 0, %v2298
      %v2300 = vrot.slane %v2296, %v2299
      %v2303 = vsel %vm319, %v2290, 0
      %2305 = vmatprep.subr.mxu0 0.0
      %2306 = vmatpush1.msra.mxu0 0.0
      %2307 = vmatprep.subr.mxu0 0.0
      %2308 = vmatpush1.msra.mxu0 0.0
      %2309 = vmatprep.subr.mxu0 0.0
      %2310 = vmatpush1.msra.mxu0 0.0
      %2311 = vmatprep.subr.mxu0 0.0
      %2312 = vmatpush1.msra.mxu0 0.0
      %2313 = vmatprep.subr.mxu0 0.0
      %2314 = vmatpush1.msra.mxu0 0.0
      %2315 = vmatprep.subr.mxu0 0.0
      %2316 = vmatpush1.msra.mxu0 0.0
      %2317 = vmatprep.subr.mxu0 0.0
      %2318 = vmatpush1.msra.mxu0 0.0
      %2319 = vmatprep.subr.mxu0 0.0
      %2320 = vmatpush1.msra.mxu0 0.0
      %2321 = vmatprep.subr.mxu0 0.0
      %2322 = vmatpush1.msra.mxu0 0.0
      %2323 = vmatprep.subr.mxu0 0.0
      %2324 = vmatpush1.msra.mxu0 0.0
      %2325 = vmatprep.subr.mxu0 0.0
      %2326 = vmatpush1.msra.mxu0 0.0
      %2327 = vmatprep.subr.mxu0 0.0
      %2328 = vmatpush1.msra.mxu0 0.0
      %2329 = vmatprep.subr.mxu0 0.0
      %2330 = vmatpush1.msra.mxu0 %v2295
      %2331 = vmatprep.subr.mxu0 0.0
      %2332 = vmatpush1.msra.mxu0 %v2294
      %2333 = vmatprep.subr.mxu0 0.0
      %2334 = vmatpush1.msra.mxu0 %v2293
      %2335 = vmatprep.subr.mxu0 0.0
      %2336 = vmatpush1.msra.mxu0 %v2292
      %2337 = vmatprep.subr.mxu0 0.0
      %2338 = vmatpush2.msra.mxu0 0.0
      %2339 = vmatprep.subr.mxu0 0.0
      %2340 = vmatpush2.msra.mxu0 0.0
      %2341 = vmatprep.subr.mxu0 0.0
      %2342 = vmatpush2.msra.mxu0 0.0
      %2343 = vmatprep.subr.mxu0 0.0
      %2344 = vmatpush2.msra.mxu0 0.0
      %2345 = vmatprep.subr.mxu0 0.0
      %2346 = vmatpush2.msra.mxu0 0.0
      %2347 = vmatprep.subr.mxu0 0.0
      %2348 = vmatpush2.msra.mxu0 0.0
      %2349 = vmatprep.subr.mxu0 0.0
      %2350 = vmatpush2.msra.mxu0 0.0
      %2351 = vmatprep.subr.mxu0 0.0
      %2352 = vmatpush2.msra.mxu0 0.0
      %2353 = vmatprep.subr.mxu0 0.0
      %2354 = vmatpush2.msra.mxu0 0.0
      %2355 = vmatprep.subr.mxu0 0.0
      %2356 = vmatpush2.msra.mxu0 0.0
      %2357 = vmatprep.subr.mxu0 0.0
      %2358 = vmatpush2.msra.mxu0 0.0
      %2359 = vmatprep.subr.mxu0 0.0
      %2360 = vmatpush2.msra.mxu0 0.0
      %2361 = vmatprep.subr.mxu0 0.0
      %2362 = vmatpush2.msra.mxu0 0.0
      %2363 = vmatprep.subr.mxu0 0.0
      %2364 = vmatpush2.msra.mxu0 0.0
      %2365 = vmatprep.subr.mxu0 0.0
      %2366 = vmatpush2.msra.mxu0 0.0
      %2367 = vmatprep.subr.mxu0 0.0
      %2368 = vmatpush2.msra.mxu0 0.0
      %2369 = vmatprep.mubr.f32.mxu0 0.0
      %2370 = vmatmul.mubr.f32.gmra.mxu0 %v2303
      %v2371 = vpop.f32.mrf.mxu0
      %v2372 = vadd.f32 %v2300, %v2371
      %v2373 = vpop.f32.mrf.mxu0
      %2374 = vdwg.mxu0
      %v2375 = vmul.f32 %v2372, 1.702
      %v2376 = vxor.u32 %v2375, 2147483648
      %v2377 = vmul.f32 %v2376, 1.442695
      %v2378 = vpow.pop %v2377
      %v2379 = vadd.f32 %v2378, 1.0
      %v2380 = vrcp.pop %v2379
      %v2381 = vmul.f32 1.0, %v2380
      %v2382 = vmul.f32 %v2372, %v2381
      %s2383 = scalar_lea.vmem %s7, 128
      %v2384 = vld [vmem:[%s2383] sm:$0xff]
      %v2385 = vld [vmem:[%s2383 + $0x8] sm:$0xff]
      %v2386 = vld [vmem:[%s2383 + $0x10] sm:$0xff]
      %v2387 = vld [vmem:[%s2383 + $0x18] sm:$0xff]
      %v2388 = vld [vmem:[%s2383 + $0x20] sm:$0xff]
      %v2389 = vld [vmem:[%s2383 + $0x28] sm:$0xff]
      %v2390 = vld [vmem:[%s2383 + $0x30] sm:$0xff]
      %v2391 = vld [vmem:[%s2383 + $0x38] sm:$0xff]
      %v2392 = vld [vmem:[%s2383 + $0x40] sm:$0xff]
      %v2393 = vld [vmem:[%s2383 + $0x48] sm:$0xff]
      %v2394 = vld [vmem:[%s2383 + $0x50] sm:$0xff]
      %v2395 = vld [vmem:[%s2383 + $0x58] sm:$0xff]
      %v2396 = vld [vmem:[%s2383 + $0x60] sm:$0xff]
      %v2397 = vld [vmem:[%s2383 + $0x68] sm:$0xff]
      %v2398 = vld [vmem:[%s2383 + $0x70] sm:$0xff]
      %v2399 = vld [vmem:[%s2383 + $0x78] sm:$0xff]
      %2400 = vmatprep.subr.mxu0 0.0
      %2401 = vmatpush1.msra.mxu0 %v2399
      %2402 = vmatprep.subr.mxu0 0.0
      %2403 = vmatpush1.msra.mxu0 %v2398
      %2404 = vmatprep.subr.mxu0 0.0
      %2405 = vmatpush1.msra.mxu0 %v2397
      %2406 = vmatprep.subr.mxu0 0.0
      %2407 = vmatpush1.msra.mxu0 %v2396
      %2408 = vmatprep.subr.mxu0 0.0
      %2409 = vmatpush1.msra.mxu0 %v2395
      %2410 = vmatprep.subr.mxu0 0.0
      %2411 = vmatpush1.msra.mxu0 %v2394
      %2412 = vmatprep.subr.mxu0 0.0
      %2413 = vmatpush1.msra.mxu0 %v2393
      %2414 = vmatprep.subr.mxu0 0.0
      %2415 = vmatpush1.msra.mxu0 %v2392
      %2416 = vmatprep.subr.mxu0 0.0
      %2417 = vmatpush1.msra.mxu0 %v2391
      %2418 = vmatprep.subr.mxu0 0.0
      %2419 = vmatpush1.msra.mxu0 %v2390
      %2420 = vmatprep.subr.mxu0 0.0
      %2421 = vmatpush1.msra.mxu0 %v2389
      %2422 = vmatprep.subr.mxu0 0.0
      %2423 = vmatpush1.msra.mxu0 %v2388
      %2424 = vmatprep.subr.mxu0 0.0
      %2425 = vmatpush1.msra.mxu0 %v2387
      %2426 = vmatprep.subr.mxu0 0.0
      %2427 = vmatpush1.msra.mxu0 %v2386
      %2428 = vmatprep.subr.mxu0 0.0
      %2429 = vmatpush1.msra.mxu0 %v2385
      %2430 = vmatprep.subr.mxu0 0.0
      %2431 = vmatpush1.msra.mxu0 %v2384
      %2432 = vmatprep.subr.mxu0 0.0
      %2433 = vmatpush2.msra.mxu0 0.0
      %2434 = vmatprep.subr.mxu0 0.0
      %2435 = vmatpush2.msra.mxu0 0.0
      %2436 = vmatprep.subr.mxu0 0.0
      %2437 = vmatpush2.msra.mxu0 0.0
      %2438 = vmatprep.subr.mxu0 0.0
      %2439 = vmatpush2.msra.mxu0 0.0
      %2440 = vmatprep.subr.mxu0 0.0
      %2441 = vmatpush2.msra.mxu0 0.0
      %2442 = vmatprep.subr.mxu0 0.0
      %2443 = vmatpush2.msra.mxu0 0.0
      %2444 = vmatprep.subr.mxu0 0.0
      %2445 = vmatpush2.msra.mxu0 0.0
      %2446 = vmatprep.subr.mxu0 0.0
      %2447 = vmatpush2.msra.mxu0 0.0
      %2448 = vmatprep.subr.mxu0 0.0
      %2449 = vmatpush2.msra.mxu0 0.0
      %2450 = vmatprep.subr.mxu0 0.0
      %2451 = vmatpush2.msra.mxu0 0.0
      %2452 = vmatprep.subr.mxu0 0.0
      %2453 = vmatpush2.msra.mxu0 0.0
      %2454 = vmatprep.subr.mxu0 0.0
      %2455 = vmatpush2.msra.mxu0 0.0
      %2456 = vmatprep.subr.mxu0 0.0
      %2457 = vmatpush2.msra.mxu0 0.0
      %2458 = vmatprep.subr.mxu0 0.0
      %2459 = vmatpush2.msra.mxu0 0.0
      %2460 = vmatprep.subr.mxu0 0.0
      %2461 = vmatpush2.msra.mxu0 0.0
      %2462 = vmatprep.subr.mxu0 0.0
      %2463 = vmatpush2.msra.mxu0 0.0
      %2464 = vmatprep.mubr.f32.mxu0 0.0
      %2465 = vmatmul.mubr.f32.gmra.mxu0 %v2382
      %v2466 = vpop.f32.mrf.mxu0
      %v2467 = vadd.f32 0.0, %v2466
      %v2468 = vpop.f32.mrf.mxu0
      %2469 = vdwg.mxu0
      %v2470 = vadd.f32 %v2269, %v2467
      %v2471 = vrot.slane %v1399, 3
      %v2472 = vlaneseq
      %v2473 = vshrl.u32 %v2472, 7
      %v2474 = vsub.s32 0, %v2473
      %v2475 = vrot.slane %v2471, %v2474
      %v2477 = vadd.f32 %v2470, %v2475
      %2478 = vst.msk [vmem:[#allocation2] sm:$0xff] %vm319, %v2477
      %s2479 = sld [smem:[#allocation4 + %s26]]
      %s2480 = scalar_lea.vmem [#allocation2], %s2479
      %v2481 = vld [vmem:[%s2480] sm:$0x1]
      %vm2482 = vcmask 253952
      %v2483 = vsel %vm2482, %v2481, 0.0
      %2484 = vadd.xlane.f32.xlu0 %v2483
      %v2485 = vpop.xlane.xlu0 %2484
      %v2486 = vmul.f32 %v2485, %v323
      %v2487 = vsub.f32 %v2481, %v2486
      %v2488 = vmul.f32 %v2487, %v2487
      %v2489 = vsel %vm2482, %v2488, 0.0
      %2490 = vadd.xlane.f32.xlu0 %v2489
      %v2491 = vpop.xlane.xlu0 %2490
      %v2492 = vmul.f32 %v2491, %v323
      %v2493 = vadd.f32 %v2492, 1e-05
      %v2494 = vrsqrt.pop %v2493
      %v2495 = vmul.f32 %v2487, %v2494
      %v2496 = vmul.f32 %v2495, %v309
      %v2498 = vrot.slane %v309, 1
      %v2500 = vadd.f32 %v2496, %v2498
      %v2501 = vld [vmem:[%s8] sm:$0xff]
      %v2502 = vld [vmem:[%s8 + $0x8] sm:$0xff]
      %v2503 = vld [vmem:[%s8 + $0x10] sm:$0xff]
      %v2504 = vld [vmem:[%s8 + $0x18] sm:$0xff]
      %v2506 = vsel %vm319, %v2500, 0
      %2508 = vmatprep.subr.mxu0 0.0
      %2509 = vmatpush1.msra.mxu0 0.0
      %2510 = vmatprep.subr.mxu0 0.0
      %2511 = vmatpush1.msra.mxu0 0.0
      %2512 = vmatprep.subr.mxu0 0.0
      %2513 = vmatpush1.msra.mxu0 0.0
      %2514 = vmatprep.subr.mxu0 0.0
      %2515 = vmatpush1.msra.mxu0 0.0
      %2516 = vmatprep.subr.mxu0 0.0
      %2517 = vmatpush1.msra.mxu0 0.0
      %2518 = vmatprep.subr.mxu0 0.0
      %2519 = vmatpush1.msra.mxu0 0.0
      %2520 = vmatprep.subr.mxu0 0.0
      %2521 = vmatpush1.msra.mxu0 0.0
      %2522 = vmatprep.subr.mxu0 0.0
      %2523 = vmatpush1.msra.mxu0 0.0
      %2524 = vmatprep.subr.mxu0 0.0
      %2525 = vmatpush1.msra.mxu0 0.0
      %2526 = vmatprep.subr.mxu0 0.0
      %2527 = vmatpush1.msra.mxu0 0.0
      %2528 = vmatprep.subr.mxu0 0.0
      %2529 = vmatpush1.msra.mxu0 0.0
      %2530 = vmatprep.subr.mxu0 0.0
      %2531 = vmatpush1.msra.mxu0 0.0
      %2532 = vmatprep.subr.mxu0 0.0
      %2533 = vmatpush1.msra.mxu0 %v2504
      %2534 = vmatprep.subr.mxu0 0.0
      %2535 = vmatpush1.msra.mxu0 %v2503
      %2536 = vmatprep.subr.mxu0 0.0
      %2537 = vmatpush1.msra.mxu0 %v2502
      %2538 = vmatprep.subr.mxu0 0.0
      %2539 = vmatpush1.msra.mxu0 %v2501
      %2540 = vmatprep.subr.mxu0 0.0
      %2541 = vmatpush2.msra.mxu0 0.0
      %2542 = vmatprep.subr.mxu0 0.0
      %2543 = vmatpush2.msra.mxu0 0.0
      %2544 = vmatprep.subr.mxu0 0.0
      %2545 = vmatpush2.msra.mxu0 0.0
      %2546 = vmatprep.subr.mxu0 0.0
      %2547 = vmatpush2.msra.mxu0 0.0
      %2548 = vmatprep.subr.mxu0 0.0
      %2549 = vmatpush2.msra.mxu0 0.0
      %2550 = vmatprep.subr.mxu0 0.0
      %2551 = vmatpush2.msra.mxu0 0.0
      %2552 = vmatprep.subr.mxu0 0.0
      %2553 = vmatpush2.msra.mxu0 0.0
      %2554 = vmatprep.subr.mxu0 0.0
      %2555 = vmatpush2.msra.mxu0 0.0
      %2556 = vmatprep.subr.mxu0 0.0
      %2557 = vmatpush2.msra.mxu0 0.0
      %2558 = vmatprep.subr.mxu0 0.0
      %2559 = vmatpush2.msra.mxu0 0.0
      %2560 = vmatprep.subr.mxu0 0.0
      %2561 = vmatpush2.msra.mxu0 0.0
      %2562 = vmatprep.subr.mxu0 0.0
      %2563 = vmatpush2.msra.mxu0 0.0
      %2564 = vmatprep.subr.mxu0 0.0
      %2565 = vmatpush2.msra.mxu0 0.0
      %2566 = vmatprep.subr.mxu0 0.0
      %2567 = vmatpush2.msra.mxu0 0.0
      %2568 = vmatprep.subr.mxu0 0.0
      %2569 = vmatpush2.msra.mxu0 0.0
      %2570 = vmatprep.subr.mxu0 0.0
      %2571 = vmatpush2.msra.mxu0 0.0
      %2572 = vmatprep.mubr.f32.mxu0 0.0
      %2573 = vmatmul.mubr.f32.gmra.mxu0 %v2506
      %v2574 = vpop.f32.mrf.mxu0
      %v2575 = vadd.f32 0.0, %v2574
      %v2576 = vpop.f32.mrf.mxu0
      %2577 = vdwg.mxu0
      %v2578 = vlaneseq
      %v2579 = vshrl.u32 %v2578, 7
      %v2580 = vsub.s32 0, %v2579
      %v2581 = vrot.slane %v2575, %v2580
      %2582 = vst [vmem:[%s307] sm:$0xff] %v2581
      %p2583 = scmp.lt.s32.totalorder %s26, 1
      %s2584 = scalar_select %p2583, %s26, 1
      %s2585 = smul.addr %s2584, 8
      %s2586 = scalar_lea.vmem %s9, %s2585
      // Predicated region
      $region53: #{text_encoder.1} parent=51 // pred_check
        %p2587 = pneg %p217
      $region54: #{text_encoder.1} parent=51 // pred_check_branch
        %2589 = sbr.rel (%p2587) target = $region56
      $region55: #{text_encoder.1} parent=51 // pred_region
        _
      $region56: #{text_encoder.1} parent=51 // pred_fallthru
        _
    $region52: #{text_encoder.1} parent=5 // pred_fallthru
      _
    %p2590 = scmp.le.s32.totalorder 2, %s21
    // Predicated region
    $region57: #{text_encoder.1} parent=5 // pred_check
      %p2591 = pneg %p2590
    $region58: #{text_encoder.1} parent=5 // pred_check_branch
      %2593 = sbr.rel (%p2591) target = $region60
    $region59: #{text_encoder.1} parent=5 // pred_region
      %s2594 = ssub.s32 %s21, 2
      // Predicated region
      $region61: #{text_encoder.1} parent=59 // pred_check
        %p2595 = pneg %p223
      $region62: #{text_encoder.1} parent=59 // pred_check_branch
        %2597 = sbr.rel (%p2595) target = $region64
      $region63: #{text_encoder.1} parent=59 // pred_region
        %p2598 = scmp.lt.s32.totalorder %s27, 1
        %s2599 = scalar_select %p2598, %s27, 1
        %s2600 = smul.addr %s2599, 8
        %s2601 = scalar_lea.vmem %s9, %s2600
      $region64: #{text_encoder.1} parent=59 // pred_fallthru
        _
    $region60: #{text_encoder.1} parent=5 // pred_fallthru
      _
  $region6: #{text_encoder.1} parent=0 // loop_footer
    %s25 = sadd.s32 1, %s21
  $region7: #{text_encoder.1} parent=0 // loop_footer_branch
    %20 = sbr.rel target = $region3
  $region8: #{text_encoder.1} parent=0 // loop_exit
    _

</llo_original>
